<compile_context>
chip_gen: v5e
topology: v5e:2x2
jax: 0.10.0
libtpu: 0.0.40
codegen_flags: <defaults>
</compile_context>

<pallas_src>
import functools

import jax
import jax.numpy as jnp
from jax.experimental import pallas as pl
from jax.experimental.pallas import tpu as pltpu


_LN_EPS = 1e-6

# Attention projections (prepared to head-major layout) and grid-resident params.
ATTN_PARAMS = ("wq", "wk", "wv", "wo")
RESIDENT_PARAMS = ("g_mha", "b_mha", "g3", "b3",
                   "w1", "b1", "w2", "b2",
                   "g_ffn", "b_ffn", "g4", "b4")


def prepare_params(params, *, n_head, d_k, d_v):
    """One-time (outside the per-call path) re-layout of the attention weights into
    head-major form, so each head's slice is a whole, lane-aligned block for the
    pipeline DMA (no sub-128-lane slicing inside the kernel)."""
    d_model = params["wq"].shape[0]
    p = dict(params)
    p["wq"] = params["wq"].reshape(d_model, n_head, d_k).transpose(1, 0, 2)  # (H, D, dk)
    p["wk"] = params["wk"].reshape(d_model, n_head, d_k).transpose(1, 0, 2)  # (H, D, dk)
    p["wv"] = params["wv"].reshape(d_model, n_head, d_v).transpose(1, 0, 2)  # (H, D, dv)
    p["wo"] = params["wo"].reshape(n_head, d_v, d_model)                     # (H, dv, D)
    return p


def _layer_norm(x, g, b, eps=_LN_EPS):
    # Centered two-pass LayerNorm (robust; matches nn.LayerNorm numerics).
    mu = jnp.mean(x, axis=-1, keepdims=True)
    xc = x - mu
    var = jnp.mean(xc * xc, axis=-1, keepdims=True)
    return xc * jax.lax.rsqrt(var + eps) * g + b


def _decoder_layer_kernel(inv_sqrt_dk, mm_dtype,
                          dec_ref, enc_ref, mask_ref,
                          wq_ref, wk_ref, wv_ref, wo_ref,
                          g_mha_ref, b_mha_ref, g3_ref, b3_ref,
                          w1_ref, b1_ref, w2_ref, b2_ref,
                          g_ffn_ref, b_ffn_ref, g4_ref, b4_ref,
                          out_ref, attn_ref, acc_ref):
    head = pl.program_id(1)
    n_head = pl.num_programs(1)
    Bt, Lq, D = dec_ref.shape
    Lk = enc_ref.shape[1]
    d_k = wq_ref.shape[2]
    d_v = wv_ref.shape[2]
    Mq, Mk = Bt * Lq, Bt * Lk

    def mm(a, b):
        # f32 accumulation always; optionally bf16 operands at the MXU boundary.
        return jnp.dot(a.astype(mm_dtype), b.astype(mm_dtype),
                       preferred_element_type=jnp.float32)

    x2 = dec_ref[...].reshape(Mq, D)        # fold batch into the matmul M dimension
    e2 = enc_ref[...].reshape(Mk, D)

    # This head's projections (weight slicing done by the BlockSpec DMA, not in-kernel).
    # 1/sqrt(d_k) is a single VPU multiply, hidden under the MXU.
    q = mm(x2, wq_ref[0]) * inv_sqrt_dk     # (Mq, d_k) f32
    k = mm(e2, wk_ref[0])                   # (Mk, d_k) f32
    v = mm(e2, wv_ref[0])                   # (Mk, d_v) f32

    # Scores batched over the batch dim; masked softmax stays in f32.
    s = jnp.einsum("bqd,bkd->bqk",
                   q.reshape(Bt, Lq, d_k).astype(mm_dtype),
                   k.reshape(Bt, Lk, d_k).astype(mm_dtype),
                   preferred_element_type=jnp.float32)          # (Bt, Lq, Lk)
    s = s + jnp.where(mask_ref[...] == 0.0, -1e9, 0.0)          # (Bt, 1, Lk) broadcast
    s = s - jnp.max(s, axis=-1, keepdims=True)
    ex = jnp.exp(s)
    denom = jnp.sum(ex, axis=-1, keepdims=True)
    r = pl.reciprocal(denom, approx=True)                       # EUP seed (off the VALU)
    r = r * (2.0 - denom * r)                                   # one Newton step -> ~exact
    p = ex * r                                                  # (Bt, Lq, Lk)

    # Per-head attention store (no (Bt, H, Lq, Lk) slab is ever materialized).
    attn_ref[...] = p.reshape(Bt, 1, Lq, Lk).astype(attn_ref.dtype)

    # Context for this head; accumulate ctx @ wo_h into the persistent scratch.
    ctx = jnp.einsum("bqk,bkd->bqd",
                     p.astype(mm_dtype),
                     v.reshape(Bt, Lk, d_v).astype(mm_dtype),
                     preferred_element_type=jnp.float32)        # (Bt, Lq, d_v)

    @pl.when(head == 0)
    def _():
        acc_ref[...] = jnp.zeros_like(acc_ref)

    acc_ref[...] += mm(ctx.reshape(Mq, d_v), wo_ref[0])         # (Mq, D)

    # Epilogue once per batch block: residual + LNs + FFN + residual + LNs.
    @pl.when(head == n_head - 1)
    def _():
        xa = acc_ref[...] + x2                                   # MHA residual
        xa = _layer_norm(xa, g_mha_ref[...], b_mha_ref[...])     # MHA-internal LN
        xa = _layer_norm(xa, g3_ref[...], b3_ref[...])           # layer_norm_3
        h1 = jnp.maximum(mm(xa, w1_ref[...]) + b1_ref[...], 0.0)  # FFN up + ReLU
        h2 = mm(h1, w2_ref[...]) + b2_ref[...]                    # FFN down
        y = h2 + xa                                               # FFN residual
        y = _layer_norm(y, g_ffn_ref[...], b_ffn_ref[...])        # FFN-internal LN
        y = _layer_norm(y, g4_ref[...], b4_ref[...])              # layer_norm_4
        out_ref[...] = y.reshape(Bt, Lq, D).astype(out_ref.dtype)


def _nbytes(shape, dtype=jnp.float32):
    n = 1
    for s in shape:
        n *= int(s)
    return n * jnp.dtype(dtype).itemsize


def _estimate_vmem_bytes(Bt, Lq, Lk, D, d_inner, d_k, d_v, prepared):
    """Rough VMEM budget: pipeline buffers + scratch + in-kernel temporaries."""
    Mq, Mk = Bt * Lq, Bt * Lk
    # Double-buffered blocks (activations, per-head weight slices, outputs).
    blocks = 2 * (_nbytes((Bt, Lq, D)) + _nbytes((Bt, Lk, D)) + _nbytes((Bt, 1, Lk)))
    blocks += 2 * (2 * _nbytes((1, D, d_k)) + _nbytes((1, D, d_v)) + _nbytes((1, d_v, D)))
    blocks += 2 * (_nbytes((Bt, Lq, D)) + _nbytes((Bt, 1, Lq, Lk)))
    # Single-buffered (Buffered(1)) resident weights.
    blocks += sum(_nbytes(prepared[n].shape) for n in RESIDENT_PARAMS)
    scratch = _nbytes((Mq, D))
    # Concurrent-live in-kernel temporaries (upper bound, f32).
    tmp = _nbytes((Mq, d_k)) + _nbytes((Mk, d_k)) + _nbytes((Mk, d_v))
    tmp += 4 * _nbytes((Bt, Lq, Lk)) + _nbytes((Bt, Lq, d_v))
    tmp += _nbytes((Mq, d_inner)) + 5 * _nbytes((Mq, D))
    return blocks + scratch + tmp


def decoder_layer_d(dec_input, enc_output, enc_mask, prepared_params, *,
                    n_head, d_k, d_v, batch_block=None, use_bf16_matmul=False):
    B, Lq, D = dec_input.shape
    _, Lk, _ = enc_output.shape
    d_inner = prepared_params["w1"].shape[1]

    if batch_block is None:
        # >= 2 batch grid steps: lets the "parallel" axis shard across v7x's two
        # TensorCores and gives DMA/compute prefetch overlap on v5e/v6e.
        batch_block = B // 2 if (B % 2 == 0 and B >= 2) else B
    Bt = batch_block
    assert B % Bt == 0, "batch_block must divide the batch size"
    nb = B // Bt

    mm_dtype = jnp.bfloat16 if use_bf16_matmul else jnp.float32
    kernel = functools.partial(_decoder_layer_kernel,
                               float(1.0 / (d_k ** 0.5)), mm_dtype)

    # VMEM budget from actual block/temporary sizes, capped at ~80% of physical VMEM.
    try:
        vmem_cap = int(pltpu.get_tpu_info().vmem_capacity_bytes)
    except Exception:
        vmem_cap = 64 << 20                          # v7x-safe fallback
    est = _estimate_vmem_bytes(Bt, Lq, Lk, D, d_inner, d_k, d_v, prepared_params)
    vmem_limit = int(min(int(0.8 * vmem_cap), max(est, 16 << 20)))

    out_shape = [
        jax.ShapeDtypeStruct((B, Lq, D), jnp.float32),
        jax.ShapeDtypeStruct((B, n_head, Lq, Lk), jnp.float32),
    ]
    out_specs = [
        pl.BlockSpec((Bt, Lq, D), lambda b, h: (b, 0, 0)),
        pl.BlockSpec((Bt, 1, Lq, Lk), lambda b, h: (b, h, 0, 0)),   # per-head attn store
    ]

    def build(single_buffer_weights):
        def resident_spec(shape):
            idx = lambda b, h, _n=len(shape): (0,) * _n
            if single_buffer_weights:
                # Constant block index -> never re-fetched; single buffer halves
                # weight-resident VMEM vs default double buffering.
                return pl.BlockSpec(shape, idx, pipeline_mode=pl.Buffered(1))
            return pl.BlockSpec(shape, idx)

        in_specs = [
            pl.BlockSpec((Bt, Lq, D), lambda b, h: (b, 0, 0)),      # dec_input
            pl.BlockSpec((Bt, Lk, D), lambda b, h: (b, 0, 0)),      # enc_output
            pl.BlockSpec((Bt, 1, Lk), lambda b, h: (b, 0, 0)),      # enc_mask
            pl.BlockSpec((1, D, d_k), lambda b, h: (h, 0, 0)),      # wq  (head-major)
            pl.BlockSpec((1, D, d_k), lambda b, h: (h, 0, 0)),      # wk  (head-major)
            pl.BlockSpec((1, D, d_v), lambda b, h: (h, 0, 0)),      # wv  (head-major)
            pl.BlockSpec((1, d_v, D), lambda b, h: (h, 0, 0)),      # wo  (head-major)
        ] + [resident_spec(prepared_params[name].shape) for name in RESIDENT_PARAMS]

        return pl.pallas_call(
            kernel,
            out_shape=out_shape,
            grid_spec=pltpu.PrefetchScalarGridSpec(
                num_scalar_prefetch=0,
                grid=(nb, n_head),
                in_specs=in_specs,
                out_specs=out_specs,
                scratch_shapes=[pltpu.VMEM((Bt * Lq, D), jnp.float32)],
            ),
            compiler_params=pltpu.CompilerParams(
                dimension_semantics=("parallel", "arbitrary"),
                vmem_limit_bytes=vmem_limit,
            ),
        )

    args = ([dec_input, enc_output, enc_mask]
            + [prepared_params[n] for n in ATTN_PARAMS]
            + [prepared_params[n] for n in RESIDENT_PARAMS])
    try:
        return build(single_buffer_weights=True)(*args)
    except Exception:
        # Fallback if this Pallas version rejects pipeline_mode=Buffered(1);
        # identical numerics, just default double-buffered weights.
        return build(single_buffer_weights=False)(*args)


def _layer_norm_ref(x, g, b, eps=_LN_EPS):
    mu = jnp.mean(x, axis=-1, keepdims=True)
    var = jnp.mean((x - mu) ** 2, axis=-1, keepdims=True)
    return (x - mu) * jax.lax.rsqrt(var + eps) * g + b


def reference(dec, enc, mask, params, *, n_head, d_k, d_v):
    """Pure-JAX reference (mirrors the PyTorch forward in eval mode)."""
    B, Lq, D = dec.shape
    Lk = enc.shape[1]
    q = (dec @ params["wq"]).reshape(B, Lq, n_head, d_k).transpose(0, 2, 1, 3)
    k = (enc @ params["wk"]).reshape(B, Lk, n_head, d_k).transpose(0, 2, 1, 3)
    v = (enc @ params["wv"]).reshape(B, Lk, n_head, d_v).transpose(0, 2, 1, 3)
    s = jnp.einsum("bhqd,bhkd->bhqk", q / (d_k ** 0.5), k)
    m = mask[:, None, :, :]                               # (B,1,1,Lk)
    s = jnp.where(m == 0.0, -1e9, s)
    attn = jax.nn.softmax(s, axis=-1)
    o = jnp.einsum("bhqk,bhkd->bhqd", attn, v)
    o = o.transpose(0, 2, 1, 3).reshape(B, Lq, n_head * d_v)
    x = o @ params["wo"] + dec
    x = _layer_norm_ref(x, params["g_mha"], params["b_mha"])
    x = _layer_norm_ref(x, params["g3"], params["b3"])
    h = jax.nn.relu(x @ params["w1"] + params["b1"])
    y = h @ params["w2"] + params["b2"] + x
    y = _layer_norm_ref(y, params["g_ffn"], params["b_ffn"])
    y = _layer_norm_ref(y, params["g4"], params["b4"])
    return y, attn


if __name__ == "__main__":
    # Small, forward-consistent shapes.
    B, Lq, Lk = 2, 8, 16
    d_model, d_inner, n_head, d_k, d_v = 32, 64, 4, 8, 8

    key = jax.random.PRNGKey(0)
    ks = jax.random.split(key, 24)

    def init(k, shape, scale=0.1):
        return jax.random.normal(k, shape, jnp.float32) * scale

    params = {
        "wq": init(ks[0], (d_model, n_head * d_k)),
        "wk": init(ks[1], (d_model, n_head * d_k)),
        "wv": init(ks[2], (d_model, n_head * d_v)),
        "wo": init(ks[3], (n_head * d_v, d_model)),
        "g_mha": 1.0 + init(ks[4], (1, d_model), 0.05),
        "b_mha": init(ks[5], (1, d_model), 0.05),
        "g3": 1.0 + init(ks[6], (1, d_model), 0.05),
        "b3": init(ks[7], (1, d_model), 0.05),
        "w1": init(ks[8], (d_model, d_inner)),
        "b1": init(ks[9], (1, d_inner), 0.05),
        "w2": init(ks[10], (d_inner, d_model)),
        "b2": init(ks[11], (1, d_model), 0.05),
        "g_ffn": 1.0 + init(ks[12], (1, d_model), 0.05),
        "b_ffn": init(ks[13], (1, d_model), 0.05),
        "g4": 1.0 + init(ks[14], (1, d_model), 0.05),
        "b4": init(ks[15], (1, d_model), 0.05),
    }

    dec_input = init(ks[16], (B, Lq, d_model), 1.0)
    enc_output = init(ks[17], (B, Lk, d_model), 1.0)
    lengths = jnp.array([Lk, Lk - 6])
    enc_mask = (jnp.arange(Lk)[None, :] < lengths[:, None]
                ).astype(jnp.float32)[:, None, :]          # (B, 1, Lk) pad mask

    # One-time parameter preparation (head-major attention weight layout).
    prepped = prepare_params(params, n_head=n_head, d_k=d_k, d_v=d_v)

    ref_out, ref_attn = reference(dec_input, enc_output, enc_mask, params,
                                  n_head=n_head, d_k=d_k, d_v=d_v)

    # f32 matmuls: matches the PyTorch module's numerics.
    out, attn = decoder_layer_d(dec_input, enc_output, enc_mask, prepped,
                                n_head=n_head, d_k=d_k, d_v=d_v)
    jax.block_until_ready((out, attn))
    assert out.shape == (B, Lq, d_model) and attn.shape == (B, n_head, Lq, Lk)
    assert jnp.allclose(out, ref_out, atol=1e-4, rtol=1e-4), "f32 output mismatch"
    assert jnp.allclose(attn, ref_attn, atol=1e-4, rtol=1e-4), "f32 attn mismatch"

    # bf16 operands at the matmul boundaries (v6e/v7x MXU-rate path); f32 epilogue.
    out_bf, attn_bf = decoder_layer_d(dec_input, enc_output, enc_mask, prepped,
                                      n_head=n_head, d_k=d_k, d_v=d_v,
                                      use_bf16_matmul=True)
    jax.block_until_ready((out_bf, attn_bf))
    assert jnp.allclose(out_bf, ref_out, atol=5e-2, rtol=5e-2), "bf16 output mismatch"
    assert jnp.allclose(attn_bf, ref_attn, atol=5e-2, rtol=5e-2), "bf16 attn mismatch"

    print("KERNEL_OK")
</pallas_src>

<mosaic_0001>
module attributes {stable_mosaic.version = 11 : i64} {
  func.func @_decoder_layer_kernel(%arg0: i32, %arg1: i32, %arg2: memref<1x8x32xf32, #tpu.memory_space<vmem>>, %arg3: memref<1x16x32xf32, #tpu.memory_space<vmem>>, %arg4: memref<1x1x16xf32, #tpu.memory_space<vmem>>, %arg5: memref<1x32x8xf32, #tpu.memory_space<vmem>>, %arg6: memref<1x32x8xf32, #tpu.memory_space<vmem>>, %arg7: memref<1x32x8xf32, #tpu.memory_space<vmem>>, %arg8: memref<1x8x32xf32, #tpu.memory_space<vmem>>, %arg9: memref<1x32xf32, #tpu.memory_space<vmem>>, %arg10: memref<1x32xf32, #tpu.memory_space<vmem>>, %arg11: memref<1x32xf32, #tpu.memory_space<vmem>>, %arg12: memref<1x32xf32, #tpu.memory_space<vmem>>, %arg13: memref<32x64xf32, #tpu.memory_space<vmem>>, %arg14: memref<1x64xf32, #tpu.memory_space<vmem>>, %arg15: memref<64x32xf32, #tpu.memory_space<vmem>>, %arg16: memref<1x32xf32, #tpu.memory_space<vmem>>, %arg17: memref<1x32xf32, #tpu.memory_space<vmem>>, %arg18: memref<1x32xf32, #tpu.memory_space<vmem>>, %arg19: memref<1x32xf32, #tpu.memory_space<vmem>>, %arg20: memref<1x32xf32, #tpu.memory_space<vmem>>, %arg21: memref<1x8x32xf32, #tpu.memory_space<vmem>>, %arg22: memref<1x1x8x16xf32, #tpu.memory_space<vmem>>, %arg23: memref<8x32xf32, #tpu.memory_space<vmem>>) attributes {dimension_semantics = [#tpu.dimension_semantics<parallel>, #tpu.dimension_semantics<arbitrary>], iteration_bounds = array<i64: 2, 4>, scalar_prefetch = 0 : i64, scratch_operands = 1 : i64, tpu.core_type = #tpu.core_type<tc>, window_params = [{transform_indices = @transform_0, window_bounds = array<i64: 1, 8, 32>}, {transform_indices = @transform_1, window_bounds = array<i64: 1, 16, 32>}, {transform_indices = @transform_2, window_bounds = array<i64: 1, 1, 16>}, {transform_indices = @transform_3, window_bounds = array<i64: 1, 32, 8>}, {transform_indices = @transform_4, window_bounds = array<i64: 1, 32, 8>}, {transform_indices = @transform_5, window_bounds = array<i64: 1, 32, 8>}, {transform_indices = @transform_6, window_bounds = array<i64: 1, 8, 32>}, {pipeline_mode = #tpu.pipeline_mode<synchronous>, transform_indices = @transform_7, window_bounds = array<i64: 1, 32>}, {pipeline_mode = #tpu.pipeline_mode<synchronous>, transform_indices = @transform_8, window_bounds = array<i64: 1, 32>}, {pipeline_mode = #tpu.pipeline_mode<synchronous>, transform_indices = @transform_9, window_bounds = array<i64: 1, 32>}, {pipeline_mode = #tpu.pipeline_mode<synchronous>, transform_indices = @transform_10, window_bounds = array<i64: 1, 32>}, {pipeline_mode = #tpu.pipeline_mode<synchronous>, transform_indices = @transform_11, window_bounds = array<i64: 32, 64>}, {pipeline_mode = #tpu.pipeline_mode<synchronous>, transform_indices = @transform_12, window_bounds = array<i64: 1, 64>}, {pipeline_mode = #tpu.pipeline_mode<synchronous>, transform_indices = @transform_13, window_bounds = array<i64: 64, 32>}, {pipeline_mode = #tpu.pipeline_mode<synchronous>, transform_indices = @transform_14, window_bounds = array<i64: 1, 32>}, {pipeline_mode = #tpu.pipeline_mode<synchronous>, transform_indices = @transform_15, window_bounds = array<i64: 1, 32>}, {pipeline_mode = #tpu.pipeline_mode<synchronous>, transform_indices = @transform_16, window_bounds = array<i64: 1, 32>}, {pipeline_mode = #tpu.pipeline_mode<synchronous>, transform_indices = @transform_17, window_bounds = array<i64: 1, 32>}, {pipeline_mode = #tpu.pipeline_mode<synchronous>, transform_indices = @transform_18, window_bounds = array<i64: 1, 32>}, {transform_indices = @transform_19, window_bounds = array<i64: 1, 8, 32>}, {transform_indices = @transform_20, window_bounds = array<i64: 1, 1, 8, 16>}]} {
    %c0 = arith.constant 0 : index
    %c0_0 = arith.constant 0 : index
    %c0_1 = arith.constant 0 : index
    %0 = vector.load %arg2[%c0, %c0_0, %c0_1] : memref<1x8x32xf32, #tpu.memory_space<vmem>>, vector<1x8x32xf32>
    %1 = vector.shape_cast %0 : vector<1x8x32xf32> to vector<8x32xf32>
    %c0_2 = arith.constant 0 : index
    %c0_3 = arith.constant 0 : index
    %c0_4 = arith.constant 0 : index
    %2 = vector.load %arg3[%c0_2, %c0_3, %c0_4] : memref<1x16x32xf32, #tpu.memory_space<vmem>>, vector<1x16x32xf32>
    %3 = vector.shape_cast %2 : vector<1x16x32xf32> to vector<16x32xf32>
    %c0_5 = arith.constant 0 : index
    %c0_6 = arith.constant 0 : index
    %c0_7 = arith.constant 0 : index
    %4 = vector.load %arg5[%c0_5, %c0_6, %c0_7] : memref<1x32x8xf32, #tpu.memory_space<vmem>>, vector<1x32x8xf32>
    %5 = vector.shape_cast %4 : vector<1x32x8xf32> to vector<32x8xf32>
    %cst = arith.constant dense<0.000000e+00> : vector<8x8xf32>
    %6 = tpu.matmul %1, %5, %cst {dimension_numbers = #tpu.dot_dimension_numbers<[1], [0], [0], [1], [0, 0, 1, 1], [], []>} : vector<8x32xf32>, vector<32x8xf32>, vector<8x8xf32> -> vector<8x8xf32>
    %cst_8 = arith.constant 0.353553385 : f32
    %7 = vector.broadcast %cst_8 : f32 to vector<8x8xf32>
    %8 = arith.mulf %6, %7 : vector<8x8xf32>
    %c0_9 = arith.constant 0 : index
    %c0_10 = arith.constant 0 : index
    %c0_11 = arith.constant 0 : index
    %9 = vector.load %arg6[%c0_9, %c0_10, %c0_11] : memref<1x32x8xf32, #tpu.memory_space<vmem>>, vector<1x32x8xf32>
    %10 = vector.shape_cast %9 : vector<1x32x8xf32> to vector<32x8xf32>
    %cst_12 = arith.constant dense<0.000000e+00> : vector<16x8xf32>
    %11 = tpu.matmul %3, %10, %cst_12 {dimension_numbers = #tpu.dot_dimension_numbers<[1], [0], [0], [1], [0, 0, 1, 1], [], []>} : vector<16x32xf32>, vector<32x8xf32>, vector<16x8xf32> -> vector<16x8xf32>
    %c0_13 = arith.constant 0 : index
    %c0_14 = arith.constant 0 : index
    %c0_15 = arith.constant 0 : index
    %12 = vector.load %arg7[%c0_13, %c0_14, %c0_15] : memref<1x32x8xf32, #tpu.memory_space<vmem>>, vector<1x32x8xf32>
    %13 = vector.shape_cast %12 : vector<1x32x8xf32> to vector<32x8xf32>
    %cst_16 = arith.constant dense<0.000000e+00> : vector<16x8xf32>
    %14 = tpu.matmul %3, %13, %cst_16 {dimension_numbers = #tpu.dot_dimension_numbers<[1], [0], [0], [1], [0, 0, 1, 1], [], []>} : vector<16x32xf32>, vector<32x8xf32>, vector<16x8xf32> -> vector<16x8xf32>
    %15 = vector.shape_cast %8 : vector<8x8xf32> to vector<1x8x8xf32>
    %16 = vector.shape_cast %11 : vector<16x8xf32> to vector<1x16x8xf32>
    "tpu.trace_start"() <{level = 10 : i32, message = "bqd,bkd->bqk"}> : () -> ()
    %cst_17 = arith.constant dense<0.000000e+00> : vector<1x8x16xf32>
    %17 = tpu.matmul %15, %16, %cst_17 {dimension_numbers = #tpu.dot_dimension_numbers<[2], [2], [1], [1], [0, 0, 0, 1, 1, 1], [0], [0]>} : vector<1x8x8xf32>, vector<1x16x8xf32>, vector<1x8x16xf32> -> vector<1x8x16xf32>
    "tpu.trace_stop"() : () -> ()
    %c0_18 = arith.constant 0 : index
    %c0_19 = arith.constant 0 : index
    %c0_20 = arith.constant 0 : index
    %18 = vector.load %arg4[%c0_18, %c0_19, %c0_20] : memref<1x1x16xf32, #tpu.memory_space<vmem>>, vector<1x1x16xf32>
    %cst_21 = arith.constant 0.000000e+00 : f32
    %19 = vector.broadcast %cst_21 : f32 to vector<1x1x16xf32>
    %20 = arith.cmpf oeq, %18, %19 : vector<1x1x16xf32>
    %cst_22 = arith.constant -1.000000e+09 : f32
    %cst_23 = arith.constant 0.000000e+00 : f32
    %21 = vector.broadcast %cst_22 : f32 to vector<1x1x16xf32>
    %22 = vector.broadcast %cst_23 : f32 to vector<1x1x16xf32>
    %23 = arith.select %20, %21, %22 : vector<1x1x16xi1>, vector<1x1x16xf32>
    %24 = vector.broadcast %23 : vector<1x1x16xf32> to vector<1x8x16xf32>
    %25 = arith.addf %17, %24 : vector<1x8x16xf32>
    %cst_24 = arith.constant dense<0xFF800000> : vector<1x8xf32>
    %26 = vector.multi_reduction <maximumf>, %25, %cst_24 [2] : vector<1x8x16xf32> to vector<1x8xf32>
    %27 = vector.shape_cast %26 : vector<1x8xf32> to vector<1x8x1xf32>
    %28 = vector.broadcast %27 : vector<1x8x1xf32> to vector<1x8x16xf32>
    %29 = arith.subf %25, %28 : vector<1x8x16xf32>
    %30 = math.exp %29 : vector<1x8x16xf32>
    %cst_25 = arith.constant dense<0.000000e+00> : vector<1x8xf32>
    %31 = vector.multi_reduction <add>, %30, %cst_25 [2] : vector<1x8x16xf32> to vector<1x8xf32>
    %32 = vector.shape_cast %31 : vector<1x8xf32> to vector<1x8x1xf32>
    %33 = tpu.reciprocal %32 {approx = true} : vector<1x8x1xf32> -> vector<1x8x1xf32>
    %34 = arith.mulf %32, %33 : vector<1x8x1xf32>
    %cst_26 = arith.constant 2.000000e+00 : f32
    %35 = vector.broadcast %cst_26 : f32 to vector<1x8x1xf32>
    %36 = arith.subf %35, %34 : vector<1x8x1xf32>
    %37 = arith.mulf %33, %36 : vector<1x8x1xf32>
    %38 = vector.broadcast %37 : vector<1x8x1xf32> to vector<1x8x16xf32>
    %39 = arith.mulf %30, %38 : vector<1x8x16xf32>
    %40 = vector.shape_cast %39 : vector<1x8x16xf32> to vector<1x1x8x16xf32>
    %c0_27 = arith.constant 0 : index
    %c0_28 = arith.constant 0 : index
    %c0_29 = arith.constant 0 : index
    %c0_30 = arith.constant 0 : index
    %41 = vector.load %arg22[%c0_27, %c0_28, %c0_29, %c0_30] : memref<1x1x8x16xf32, #tpu.memory_space<vmem>>, vector<1x1x8x16xf32>
    tpu.vector_store %arg22[%c0_27, %c0_28, %c0_29, %c0_30], %40 {strides = array<i32>} : memref<1x1x8x16xf32, #tpu.memory_space<vmem>>, vector<1x1x8x16xf32>,
    %42 = vector.shape_cast %14 : vector<16x8xf32> to vector<1x16x8xf32>
    "tpu.trace_start"() <{level = 10 : i32, message = "bqk,bkd->bqd"}> : () -> ()
    %cst_31 = arith.constant dense<0.000000e+00> : vector<1x8x8xf32>
    %43 = tpu.matmul %39, %42, %cst_31 {dimension_numbers = #tpu.dot_dimension_numbers<[2], [1], [1], [2], [0, 0, 0, 1, 1, 2], [0], [0]>} : vector<1x8x16xf32>, vector<1x16x8xf32>, vector<1x8x8xf32> -> vector<1x8x8xf32>
    %c0_i32 = arith.constant 0 : i32
    "tpu.trace_stop"() : () -> ()
    %44 = arith.cmpi eq, %arg1, %c0_i32 : i32
    %45 = arith.extui %44 : i1 to i32
    %c0_i32_32 = arith.constant 0 : i32
    %46 = arith.cmpi ne, %45, %c0_i32_32 : i32
    scf.if %46 {
      %cst_42 = arith.constant 0.000000e+00 : f32
      %57 = vector.broadcast %cst_42 : f32 to vector<8x32xf32>
      %c0_43 = arith.constant 0 : index
      %c0_44 = arith.constant 0 : index
      %58 = vector.load %arg23[%c0_43, %c0_44] : memref<8x32xf32, #tpu.memory_space<vmem>>, vector<8x32xf32>
      tpu.vector_store %arg23[%c0_43, %c0_44], %57 {strides = array<i32>} : memref<8x32xf32, #tpu.memory_space<vmem>>, vector<8x32xf32>,
    } else {
    }
    %c0_33 = arith.constant 0 : index
    %c0_34 = arith.constant 0 : index
    %47 = vector.load %arg23[%c0_33, %c0_34] : memref<8x32xf32, #tpu.memory_space<vmem>>, vector<8x32xf32>
    %48 = vector.shape_cast %43 : vector<1x8x8xf32> to vector<8x8xf32>
    %c0_35 = arith.constant 0 : index
    %c0_36 = arith.constant 0 : index
    %c0_37 = arith.constant 0 : index
    %49 = vector.load %arg8[%c0_35, %c0_36, %c0_37] : memref<1x8x32xf32, #tpu.memory_space<vmem>>, vector<1x8x32xf32>
    %50 = vector.shape_cast %49 : vector<1x8x32xf32> to vector<8x32xf32>
    %cst_38 = arith.constant dense<0.000000e+00> : vector<8x32xf32>
    %51 = tpu.matmul %48, %50, %cst_38 {dimension_numbers = #tpu.dot_dimension_numbers<[1], [0], [0], [1], [0, 0, 1, 1], [], []>} : vector<8x8xf32>, vector<8x32xf32>, vector<8x32xf32> -> vector<8x32xf32>
    %52 = arith.addf %47, %51 : vector<8x32xf32>
    %c0_39 = arith.constant 0 : index
    %c0_40 = arith.constant 0 : index
    %53 = vector.load %arg23[%c0_39, %c0_40] : memref<8x32xf32, #tpu.memory_space<vmem>>, vector<8x32xf32>
    tpu.vector_store %arg23[%c0_39, %c0_40], %52 {strides = array<i32>} : memref<8x32xf32, #tpu.memory_space<vmem>>, vector<8x32xf32>,
    %c3_i32 = arith.constant 3 : i32
    %54 = arith.cmpi eq, %arg1, %c3_i32 : i32
    %55 = arith.extui %54 : i1 to i32
    %c0_i32_41 = arith.constant 0 : i32
    %56 = arith.cmpi ne, %55, %c0_i32_41 : i32
    scf.if %56 {
      %c0_42 = arith.constant 0 : index
      %c0_43 = arith.constant 0 : index
      %57 = vector.load %arg23[%c0_42, %c0_43] : memref<8x32xf32, #tpu.memory_space<vmem>>, vector<8x32xf32>
      %58 = arith.addf %57, %1 : vector<8x32xf32>
      %c0_44 = arith.constant 0 : index
      %c0_45 = arith.constant 0 : index
      %59 = vector.load %arg9[%c0_44, %c0_45] : memref<1x32xf32, #tpu.memory_space<vmem>>, vector<1x32xf32>
      %c0_46 = arith.constant 0 : index
      %c0_47 = arith.constant 0 : index
      %60 = vector.load %arg10[%c0_46, %c0_47] : memref<1x32xf32, #tpu.memory_space<vmem>>, vector<1x32xf32>
      %cst_48 = arith.constant dense<0.000000e+00> : vector<8xf32>
      %61 = vector.multi_reduction <add>, %58, %cst_48 [1] : vector<8x32xf32> to vector<8xf32>
      %62 = vector.shape_cast %61 : vector<8xf32> to vector<8x1xf32>
      %cst_49 = arith.constant 3.200000e+01 : f32
      %63 = vector.broadcast %cst_49 : f32 to vector<8x1xf32>
      %64 = arith.divf %62, %63 : vector<8x1xf32>
      %65 = vector.broadcast %64 : vector<8x1xf32> to vector<8x32xf32>
      %66 = arith.subf %58, %65 : vector<8x32xf32>
      %67 = arith.mulf %66, %66 : vector<8x32xf32>
      %cst_50 = arith.constant dense<0.000000e+00> : vector<8xf32>
      %68 = vector.multi_reduction <add>, %67, %cst_50 [1] : vector<8x32xf32> to vector<8xf32>
      %69 = vector.shape_cast %68 : vector<8xf32> to vector<8x1xf32>
      %cst_51 = arith.constant 3.200000e+01 : f32
      %70 = vector.broadcast %cst_51 : f32 to vector<8x1xf32>
      %71 = arith.divf %69, %70 : vector<8x1xf32>
      %cst_52 = arith.constant 9.99999997E-7 : f32
      %72 = vector.broadcast %cst_52 : f32 to vector<8x1xf32>
      %73 = arith.addf %71, %72 : vector<8x1xf32>
      %74 = math.rsqrt %73 : vector<8x1xf32>
      %75 = vector.broadcast %74 : vector<8x1xf32> to vector<8x32xf32>
      %76 = arith.mulf %66, %75 : vector<8x32xf32>
      %77 = vector.broadcast %59 : vector<1x32xf32> to vector<8x32xf32>
      %78 = arith.mulf %76, %77 : vector<8x32xf32>
      %79 = vector.broadcast %60 : vector<1x32xf32> to vector<8x32xf32>
      %80 = arith.addf %78, %79 : vector<8x32xf32>
      %c0_53 = arith.constant 0 : index
      %c0_54 = arith.constant 0 : index
      %81 = vector.load %arg11[%c0_53, %c0_54] : memref<1x32xf32, #tpu.memory_space<vmem>>, vector<1x32xf32>
      %c0_55 = arith.constant 0 : index
      %c0_56 = arith.constant 0 : index
      %82 = vector.load %arg12[%c0_55, %c0_56] : memref<1x32xf32, #tpu.memory_space<vmem>>, vector<1x32xf32>
      %cst_57 = arith.constant dense<0.000000e+00> : vector<8xf32>
      %83 = vector.multi_reduction <add>, %80, %cst_57 [1] : vector<8x32xf32> to vector<8xf32>
      %84 = vector.shape_cast %83 : vector<8xf32> to vector<8x1xf32>
      %cst_58 = arith.constant 3.200000e+01 : f32
      %85 = vector.broadcast %cst_58 : f32 to vector<8x1xf32>
      %86 = arith.divf %84, %85 : vector<8x1xf32>
      %87 = vector.broadcast %86 : vector<8x1xf32> to vector<8x32xf32>
      %88 = arith.subf %80, %87 : vector<8x32xf32>
      %89 = arith.mulf %88, %88 : vector<8x32xf32>
      %cst_59 = arith.constant dense<0.000000e+00> : vector<8xf32>
      %90 = vector.multi_reduction <add>, %89, %cst_59 [1] : vector<8x32xf32> to vector<8xf32>
      %91 = vector.shape_cast %90 : vector<8xf32> to vector<8x1xf32>
      %cst_60 = arith.constant 3.200000e+01 : f32
      %92 = vector.broadcast %cst_60 : f32 to vector<8x1xf32>
      %93 = arith.divf %91, %92 : vector<8x1xf32>
      %cst_61 = arith.constant 9.99999997E-7 : f32
      %94 = vector.broadcast %cst_61 : f32 to vector<8x1xf32>
      %95 = arith.addf %93, %94 : vector<8x1xf32>
      %96 = math.rsqrt %95 : vector<8x1xf32>
      %97 = vector.broadcast %96 : vector<8x1xf32> to vector<8x32xf32>
      %98 = arith.mulf %88, %97 : vector<8x32xf32>
      %99 = vector.broadcast %81 : vector<1x32xf32> to vector<8x32xf32>
      %100 = arith.mulf %98, %99 : vector<8x32xf32>
      %101 = vector.broadcast %82 : vector<1x32xf32> to vector<8x32xf32>
      %102 = arith.addf %100, %101 : vector<8x32xf32>
      %c0_62 = arith.constant 0 : index
      %c0_63 = arith.constant 0 : index
      %103 = vector.load %arg13[%c0_62, %c0_63] : memref<32x64xf32, #tpu.memory_space<vmem>>, vector<32x64xf32>
      %cst_64 = arith.constant dense<0.000000e+00> : vector<8x64xf32>
      %104 = tpu.matmul %102, %103, %cst_64 {dimension_numbers = #tpu.dot_dimension_numbers<[1], [0], [0], [1], [0, 0, 1, 1], [], []>} : vector<8x32xf32>, vector<32x64xf32>, vector<8x64xf32> -> vector<8x64xf32>
      %c0_65 = arith.constant 0 : index
      %c0_66 = arith.constant 0 : index
      %105 = vector.load %arg14[%c0_65, %c0_66] : memref<1x64xf32, #tpu.memory_space<vmem>>, vector<1x64xf32>
      %106 = vector.broadcast %105 : vector<1x64xf32> to vector<8x64xf32>
      %107 = arith.addf %104, %106 : vector<8x64xf32>
      %cst_67 = arith.constant 0.000000e+00 : f32
      %108 = vector.broadcast %cst_67 : f32 to vector<8x64xf32>
      %109 = arith.maximumf %107, %108 : vector<8x64xf32>
      %c0_68 = arith.constant 0 : index
      %c0_69 = arith.constant 0 : index
      %110 = vector.load %arg15[%c0_68, %c0_69] : memref<64x32xf32, #tpu.memory_space<vmem>>, vector<64x32xf32>
      %cst_70 = arith.constant dense<0.000000e+00> : vector<8x32xf32>
      %111 = tpu.matmul %109, %110, %cst_70 {dimension_numbers = #tpu.dot_dimension_numbers<[1], [0], [0], [1], [0, 0, 1, 1], [], []>} : vector<8x64xf32>, vector<64x32xf32>, vector<8x32xf32> -> vector<8x32xf32>
      %c0_71 = arith.constant 0 : index
      %c0_72 = arith.constant 0 : index
      %112 = vector.load %arg16[%c0_71, %c0_72] : memref<1x32xf32, #tpu.memory_space<vmem>>, vector<1x32xf32>
      %113 = vector.broadcast %112 : vector<1x32xf32> to vector<8x32xf32>
      %114 = arith.addf %111, %113 : vector<8x32xf32>
      %115 = arith.addf %114, %102 : vector<8x32xf32>
      %c0_73 = arith.constant 0 : index
      %c0_74 = arith.constant 0 : index
      %116 = vector.load %arg17[%c0_73, %c0_74] : memref<1x32xf32, #tpu.memory_space<vmem>>, vector<1x32xf32>
      %c0_75 = arith.constant 0 : index
      %c0_76 = arith.constant 0 : index
      %117 = vector.load %arg18[%c0_75, %c0_76] : memref<1x32xf32, #tpu.memory_space<vmem>>, vector<1x32xf32>
      %cst_77 = arith.constant dense<0.000000e+00> : vector<8xf32>
      %118 = vector.multi_reduction <add>, %115, %cst_77 [1] : vector<8x32xf32> to vector<8xf32>
      %119 = vector.shape_cast %118 : vector<8xf32> to vector<8x1xf32>
      %cst_78 = arith.constant 3.200000e+01 : f32
      %120 = vector.broadcast %cst_78 : f32 to vector<8x1xf32>
      %121 = arith.divf %119, %120 : vector<8x1xf32>
      %122 = vector.broadcast %121 : vector<8x1xf32> to vector<8x32xf32>
      %123 = arith.subf %115, %122 : vector<8x32xf32>
      %124 = arith.mulf %123, %123 : vector<8x32xf32>
      %cst_79 = arith.constant dense<0.000000e+00> : vector<8xf32>
      %125 = vector.multi_reduction <add>, %124, %cst_79 [1] : vector<8x32xf32> to vector<8xf32>
      %126 = vector.shape_cast %125 : vector<8xf32> to vector<8x1xf32>
      %cst_80 = arith.constant 3.200000e+01 : f32
      %127 = vector.broadcast %cst_80 : f32 to vector<8x1xf32>
      %128 = arith.divf %126, %127 : vector<8x1xf32>
      %cst_81 = arith.constant 9.99999997E-7 : f32
      %129 = vector.broadcast %cst_81 : f32 to vector<8x1xf32>
      %130 = arith.addf %128, %129 : vector<8x1xf32>
      %131 = math.rsqrt %130 : vector<8x1xf32>
      %132 = vector.broadcast %131 : vector<8x1xf32> to vector<8x32xf32>
      %133 = arith.mulf %123, %132 : vector<8x32xf32>
      %134 = vector.broadcast %116 : vector<1x32xf32> to vector<8x32xf32>
      %135 = arith.mulf %133, %134 : vector<8x32xf32>
      %136 = vector.broadcast %117 : vector<1x32xf32> to vector<8x32xf32>
      %137 = arith.addf %135, %136 : vector<8x32xf32>
      %c0_82 = arith.constant 0 : index
      %c0_83 = arith.constant 0 : index
      %138 = vector.load %arg19[%c0_82, %c0_83] : memref<1x32xf32, #tpu.memory_space<vmem>>, vector<1x32xf32>
      %c0_84 = arith.constant 0 : index
      %c0_85 = arith.constant 0 : index
      %139 = vector.load %arg20[%c0_84, %c0_85] : memref<1x32xf32, #tpu.memory_space<vmem>>, vector<1x32xf32>
      %cst_86 = arith.constant dense<0.000000e+00> : vector<8xf32>
      %140 = vector.multi_reduction <add>, %137, %cst_86 [1] : vector<8x32xf32> to vector<8xf32>
      %141 = vector.shape_cast %140 : vector<8xf32> to vector<8x1xf32>
      %cst_87 = arith.constant 3.200000e+01 : f32
      %142 = vector.broadcast %cst_87 : f32 to vector<8x1xf32>
      %143 = arith.divf %141, %142 : vector<8x1xf32>
      %144 = vector.broadcast %143 : vector<8x1xf32> to vector<8x32xf32>
      %145 = arith.subf %137, %144 : vector<8x32xf32>
      %146 = arith.mulf %145, %145 : vector<8x32xf32>
      %cst_88 = arith.constant dense<0.000000e+00> : vector<8xf32>
      %147 = vector.multi_reduction <add>, %146, %cst_88 [1] : vector<8x32xf32> to vector<8xf32>
      %148 = vector.shape_cast %147 : vector<8xf32> to vector<8x1xf32>
      %cst_89 = arith.constant 3.200000e+01 : f32
      %149 = vector.broadcast %cst_89 : f32 to vector<8x1xf32>
      %150 = arith.divf %148, %149 : vector<8x1xf32>
      %cst_90 = arith.constant 9.99999997E-7 : f32
      %151 = vector.broadcast %cst_90 : f32 to vector<8x1xf32>
      %152 = arith.addf %150, %151 : vector<8x1xf32>
      %153 = math.rsqrt %152 : vector<8x1xf32>
      %154 = vector.broadcast %153 : vector<8x1xf32> to vector<8x32xf32>
      %155 = arith.mulf %145, %154 : vector<8x32xf32>
      %156 = vector.broadcast %138 : vector<1x32xf32> to vector<8x32xf32>
      %157 = arith.mulf %155, %156 : vector<8x32xf32>
      %158 = vector.broadcast %139 : vector<1x32xf32> to vector<8x32xf32>
      %159 = arith.addf %157, %158 : vector<8x32xf32>
      %160 = vector.shape_cast %159 : vector<8x32xf32> to vector<1x8x32xf32>
      %c0_91 = arith.constant 0 : index
      %c0_92 = arith.constant 0 : index
      %c0_93 = arith.constant 0 : index
      %161 = vector.load %arg21[%c0_91, %c0_92, %c0_93] : memref<1x8x32xf32, #tpu.memory_space<vmem>>, vector<1x8x32xf32>
      tpu.vector_store %arg21[%c0_91, %c0_92, %c0_93], %160 {strides = array<i32>} : memref<1x8x32xf32, #tpu.memory_space<vmem>>, vector<1x8x32xf32>,
    } else {
    }
    return
  }
  func.func @transform_0(%arg0: i32, %arg1: i32) -> (i32, i32, i32) {
    %c0_i32 = arith.constant 0 : i32
    %c0_i32_0 = arith.constant 0 : i32
    %c0_i32_1 = arith.constant 0 : i32
    return %arg0, %c0_i32, %c0_i32_0 : i32, i32, i32
  }
  func.func @transform_1(%arg0: i32, %arg1: i32) -> (i32, i32, i32) {
    %c0_i32 = arith.constant 0 : i32
    %c0_i32_0 = arith.constant 0 : i32
    %c0_i32_1 = arith.constant 0 : i32
    return %arg0, %c0_i32, %c0_i32_0 : i32, i32, i32
  }
  func.func @transform_2(%arg0: i32, %arg1: i32) -> (i32, i32, i32) {
    %c0_i32 = arith.constant 0 : i32
    %c0_i32_0 = arith.constant 0 : i32
    %c0_i32_1 = arith.constant 0 : i32
    return %arg0, %c0_i32, %c0_i32_0 : i32, i32, i32
  }
  func.func @transform_3(%arg0: i32, %arg1: i32) -> (i32, i32, i32) {
    %c0_i32 = arith.constant 0 : i32
    %c0_i32_0 = arith.constant 0 : i32
    %c0_i32_1 = arith.constant 0 : i32
    return %arg1, %c0_i32, %c0_i32_0 : i32, i32, i32
  }
  func.func @transform_4(%arg0: i32, %arg1: i32) -> (i32, i32, i32) {
    %c0_i32 = arith.constant 0 : i32
    %c0_i32_0 = arith.constant 0 : i32
    %c0_i32_1 = arith.constant 0 : i32
    return %arg1, %c0_i32, %c0_i32_0 : i32, i32, i32
  }
  func.func @transform_5(%arg0: i32, %arg1: i32) -> (i32, i32, i32) {
    %c0_i32 = arith.constant 0 : i32
    %c0_i32_0 = arith.constant 0 : i32
    %c0_i32_1 = arith.constant 0 : i32
    return %arg1, %c0_i32, %c0_i32_0 : i32, i32, i32
  }
  func.func @transform_6(%arg0: i32, %arg1: i32) -> (i32, i32, i32) {
    %c0_i32 = arith.constant 0 : i32
    %c0_i32_0 = arith.constant 0 : i32
    %c0_i32_1 = arith.constant 0 : i32
    return %arg1, %c0_i32, %c0_i32_0 : i32, i32, i32
  }
  func.func @transform_7(%arg0: i32, %arg1: i32) -> (i32, i32) {
    %c0_i32 = arith.constant 0 : i32
    %c0_i32_0 = arith.constant 0 : i32
    %c0_i32_1 = arith.constant 0 : i32
    return %c0_i32, %c0_i32_0 : i32, i32
  }
  func.func @transform_8(%arg0: i32, %arg1: i32) -> (i32, i32) {
    %c0_i32 = arith.constant 0 : i32
    %c0_i32_0 = arith.constant 0 : i32
    %c0_i32_1 = arith.constant 0 : i32
    return %c0_i32, %c0_i32_0 : i32, i32
  }
  func.func @transform_9(%arg0: i32, %arg1: i32) -> (i32, i32) {
    %c0_i32 = arith.constant 0 : i32
    %c0_i32_0 = arith.constant 0 : i32
    %c0_i32_1 = arith.constant 0 : i32
    return %c0_i32, %c0_i32_0 : i32, i32
  }
  func.func @transform_10(%arg0: i32, %arg1: i32) -> (i32, i32) {
    %c0_i32 = arith.constant 0 : i32
    %c0_i32_0 = arith.constant 0 : i32
    %c0_i32_1 = arith.constant 0 : i32
    return %c0_i32, %c0_i32_0 : i32, i32
  }
  func.func @transform_11(%arg0: i32, %arg1: i32) -> (i32, i32) {
    %c0_i32 = arith.constant 0 : i32
    %c0_i32_0 = arith.constant 0 : i32
    %c0_i32_1 = arith.constant 0 : i32
    return %c0_i32, %c0_i32_0 : i32, i32
  }
  func.func @transform_12(%arg0: i32, %arg1: i32) -> (i32, i32) {
    %c0_i32 = arith.constant 0 : i32
    %c0_i32_0 = arith.constant 0 : i32
    %c0_i32_1 = arith.constant 0 : i32
    return %c0_i32, %c0_i32_0 : i32, i32
  }
  func.func @transform_13(%arg0: i32, %arg1: i32) -> (i32, i32) {
    %c0_i32 = arith.constant 0 : i32
    %c0_i32_0 = arith.constant 0 : i32
    %c0_i32_1 = arith.constant 0 : i32
    return %c0_i32, %c0_i32_0 : i32, i32
  }
  func.func @transform_14(%arg0: i32, %arg1: i32) -> (i32, i32) {
    %c0_i32 = arith.constant 0 : i32
    %c0_i32_0 = arith.constant 0 : i32
    %c0_i32_1 = arith.constant 0 : i32
    return %c0_i32, %c0_i32_0 : i32, i32
  }
  func.func @transform_15(%arg0: i32, %arg1: i32) -> (i32, i32) {
    %c0_i32 = arith.constant 0 : i32
    %c0_i32_0 = arith.constant 0 : i32
    %c0_i32_1 = arith.constant 0 : i32
    return %c0_i32, %c0_i32_0 : i32, i32
  }
  func.func @transform_16(%arg0: i32, %arg1: i32) -> (i32, i32) {
    %c0_i32 = arith.constant 0 : i32
    %c0_i32_0 = arith.constant 0 : i32
    %c0_i32_1 = arith.constant 0 : i32
    return %c0_i32, %c0_i32_0 : i32, i32
  }
  func.func @transform_17(%arg0: i32, %arg1: i32) -> (i32, i32) {
    %c0_i32 = arith.constant 0 : i32
    %c0_i32_0 = arith.constant 0 : i32
    %c0_i32_1 = arith.constant 0 : i32
    return %c0_i32, %c0_i32_0 : i32, i32
  }
  func.func @transform_18(%arg0: i32, %arg1: i32) -> (i32, i32) {
    %c0_i32 = arith.constant 0 : i32
    %c0_i32_0 = arith.constant 0 : i32
    %c0_i32_1 = arith.constant 0 : i32
    return %c0_i32, %c0_i32_0 : i32, i32
  }
  func.func @transform_19(%arg0: i32, %arg1: i32) -> (i32, i32, i32) {
    %c0_i32 = arith.constant 0 : i32
    %c0_i32_0 = arith.constant 0 : i32
    %c0_i32_1 = arith.constant 0 : i32
    return %arg0, %c0_i32, %c0_i32_0 : i32, i32, i32
  }
  func.func @transform_20(%arg0: i32, %arg1: i32) -> (i32, i32, i32, i32) {
    %c0_i32 = arith.constant 0 : i32
    %c0_i32_0 = arith.constant 0 : i32
    %c0_i32_1 = arith.constant 0 : i32
    return %arg0, %arg1, %c0_i32, %c0_i32_0 : i32, i32, i32, i32
  }
}

module attributes {stable_mosaic.version = 11 : i64} {
  func.func @_decoder_layer_kernel(%arg0: i32, %arg1: i32, %arg2: memref<1x8x32xf32, #tpu.memory_space<vmem>>, %arg3: memref<1x16x32xf32, #tpu.memory_space<vmem>>, %arg4: memref<1x1x16xf32, #tpu.memory_space<vmem>>, %arg5: memref<1x32x8xf32, #tpu.memory_space<vmem>>, %arg6: memref<1x32x8xf32, #tpu.memory_space<vmem>>, %arg7: memref<1x32x8xf32, #tpu.memory_space<vmem>>, %arg8: memref<1x8x32xf32, #tpu.memory_space<vmem>>, %arg9: memref<1x32xf32, #tpu.memory_space<vmem>>, %arg10: memref<1x32xf32, #tpu.memory_space<vmem>>, %arg11: memref<1x32xf32, #tpu.memory_space<vmem>>, %arg12: memref<1x32xf32, #tpu.memory_space<vmem>>, %arg13: memref<32x64xf32, #tpu.memory_space<vmem>>, %arg14: memref<1x64xf32, #tpu.memory_space<vmem>>, %arg15: memref<64x32xf32, #tpu.memory_space<vmem>>, %arg16: memref<1x32xf32, #tpu.memory_space<vmem>>, %arg17: memref<1x32xf32, #tpu.memory_space<vmem>>, %arg18: memref<1x32xf32, #tpu.memory_space<vmem>>, %arg19: memref<1x32xf32, #tpu.memory_space<vmem>>, %arg20: memref<1x32xf32, #tpu.memory_space<vmem>>, %arg21: memref<1x8x32xf32, #tpu.memory_space<vmem>>, %arg22: memref<1x1x8x16xf32, #tpu.memory_space<vmem>>, %arg23: memref<8x32xf32, #tpu.memory_space<vmem>>) attributes {dimension_semantics = [#tpu.dimension_semantics<parallel>, #tpu.dimension_semantics<arbitrary>], iteration_bounds = array<i64: 2, 4>, scalar_prefetch = 0 : i64, scratch_operands = 1 : i64, tpu.core_type = #tpu.core_type<tc>, window_params = [{transform_indices = @transform_0, window_bounds = array<i64: 1, 8, 32>}, {transform_indices = @transform_1, window_bounds = array<i64: 1, 16, 32>}, {transform_indices = @transform_2, window_bounds = array<i64: 1, 1, 16>}, {transform_indices = @transform_3, window_bounds = array<i64: 1, 32, 8>}, {transform_indices = @transform_4, window_bounds = array<i64: 1, 32, 8>}, {transform_indices = @transform_5, window_bounds = array<i64: 1, 32, 8>}, {transform_indices = @transform_6, window_bounds = array<i64: 1, 8, 32>}, {pipeline_mode = #tpu.pipeline_mode<synchronous>, transform_indices = @transform_7, window_bounds = array<i64: 1, 32>}, {pipeline_mode = #tpu.pipeline_mode<synchronous>, transform_indices = @transform_8, window_bounds = array<i64: 1, 32>}, {pipeline_mode = #tpu.pipeline_mode<synchronous>, transform_indices = @transform_9, window_bounds = array<i64: 1, 32>}, {pipeline_mode = #tpu.pipeline_mode<synchronous>, transform_indices = @transform_10, window_bounds = array<i64: 1, 32>}, {pipeline_mode = #tpu.pipeline_mode<synchronous>, transform_indices = @transform_11, window_bounds = array<i64: 32, 64>}, {pipeline_mode = #tpu.pipeline_mode<synchronous>, transform_indices = @transform_12, window_bounds = array<i64: 1, 64>}, {pipeline_mode = #tpu.pipeline_mode<synchronous>, transform_indices = @transform_13, window_bounds = array<i64: 64, 32>}, {pipeline_mode = #tpu.pipeline_mode<synchronous>, transform_indices = @transform_14, window_bounds = array<i64: 1, 32>}, {pipeline_mode = #tpu.pipeline_mode<synchronous>, transform_indices = @transform_15, window_bounds = array<i64: 1, 32>}, {pipeline_mode = #tpu.pipeline_mode<synchronous>, transform_indices = @transform_16, window_bounds = array<i64: 1, 32>}, {pipeline_mode = #tpu.pipeline_mode<synchronous>, transform_indices = @transform_17, window_bounds = array<i64: 1, 32>}, {pipeline_mode = #tpu.pipeline_mode<synchronous>, transform_indices = @transform_18, window_bounds = array<i64: 1, 32>}, {transform_indices = @transform_19, window_bounds = array<i64: 1, 8, 32>}, {transform_indices = @transform_20, window_bounds = array<i64: 1, 1, 8, 16>}]} {
    %c0 = arith.constant 0 : index
    %c0_0 = arith.constant 0 : index
    %c0_1 = arith.constant 0 : index
    %0 = vector.load %arg2[%c0, %c0_0, %c0_1] : memref<1x8x32xf32, #tpu.memory_space<vmem>>, vector<1x8x32xf32>
    %1 = vector.shape_cast %0 : vector<1x8x32xf32> to vector<8x32xf32>
    %c0_2 = arith.constant 0 : index
    %c0_3 = arith.constant 0 : index
    %c0_4 = arith.constant 0 : index
    %2 = vector.load %arg3[%c0_2, %c0_3, %c0_4] : memref<1x16x32xf32, #tpu.memory_space<vmem>>, vector<1x16x32xf32>
    %3 = vector.shape_cast %2 : vector<1x16x32xf32> to vector<16x32xf32>
    %c0_5 = arith.constant 0 : index
    %c0_6 = arith.constant 0 : index
    %c0_7 = arith.constant 0 : index
    %4 = vector.load %arg5[%c0_5, %c0_6, %c0_7] : memref<1x32x8xf32, #tpu.memory_space<vmem>>, vector<1x32x8xf32>
    %5 = vector.shape_cast %4 : vector<1x32x8xf32> to vector<32x8xf32>
    %cst = arith.constant dense<0.000000e+00> : vector<8x8xf32>
    %6 = tpu.matmul %1, %5, %cst {dimension_numbers = #tpu.dot_dimension_numbers<[1], [0], [0], [1], [0, 0, 1, 1], [], []>} : vector<8x32xf32>, vector<32x8xf32>, vector<8x8xf32> -> vector<8x8xf32>
    %cst_8 = arith.constant 0.353553385 : f32
    %7 = vector.broadcast %cst_8 : f32 to vector<8x8xf32>
    %8 = arith.mulf %6, %7 : vector<8x8xf32>
    %c0_9 = arith.constant 0 : index
    %c0_10 = arith.constant 0 : index
    %c0_11 = arith.constant 0 : index
    %9 = vector.load %arg6[%c0_9, %c0_10, %c0_11] : memref<1x32x8xf32, #tpu.memory_space<vmem>>, vector<1x32x8xf32>
    %10 = vector.shape_cast %9 : vector<1x32x8xf32> to vector<32x8xf32>
    %cst_12 = arith.constant dense<0.000000e+00> : vector<16x8xf32>
    %11 = tpu.matmul %3, %10, %cst_12 {dimension_numbers = #tpu.dot_dimension_numbers<[1], [0], [0], [1], [0, 0, 1, 1], [], []>} : vector<16x32xf32>, vector<32x8xf32>, vector<16x8xf32> -> vector<16x8xf32>
    %c0_13 = arith.constant 0 : index
    %c0_14 = arith.constant 0 : index
    %c0_15 = arith.constant 0 : index
    %12 = vector.load %arg7[%c0_13, %c0_14, %c0_15] : memref<1x32x8xf32, #tpu.memory_space<vmem>>, vector<1x32x8xf32>
    %13 = vector.shape_cast %12 : vector<1x32x8xf32> to vector<32x8xf32>
    %cst_16 = arith.constant dense<0.000000e+00> : vector<16x8xf32>
    %14 = tpu.matmul %3, %13, %cst_16 {dimension_numbers = #tpu.dot_dimension_numbers<[1], [0], [0], [1], [0, 0, 1, 1], [], []>} : vector<16x32xf32>, vector<32x8xf32>, vector<16x8xf32> -> vector<16x8xf32>
    %15 = vector.shape_cast %8 : vector<8x8xf32> to vector<1x8x8xf32>
    %16 = vector.shape_cast %11 : vector<16x8xf32> to vector<1x16x8xf32>
    "tpu.trace_start"() <{level = 10 : i32, message = "bqd,bkd->bqk"}> : () -> ()
    %cst_17 = arith.constant dense<0.000000e+00> : vector<1x8x16xf32>
    %17 = tpu.matmul %15, %16, %cst_17 {dimension_numbers = #tpu.dot_dimension_numbers<[2], [2], [1], [1], [0, 0, 0, 1, 1, 1], [0], [0]>} : vector<1x8x8xf32>, vector<1x16x8xf32>, vector<1x8x16xf32> -> vector<1x8x16xf32>
    "tpu.trace_stop"() : () -> ()
    %c0_18 = arith.constant 0 : index
    %c0_19 = arith.constant 0 : index
    %c0_20 = arith.constant 0 : index
    %18 = vector.load %arg4[%c0_18, %c0_19, %c0_20] : memref<1x1x16xf32, #tpu.memory_space<vmem>>, vector<1x1x16xf32>
    %cst_21 = arith.constant 0.000000e+00 : f32
    %19 = vector.broadcast %cst_21 : f32 to vector<1x1x16xf32>
    %20 = arith.cmpf oeq, %18, %19 : vector<1x1x16xf32>
    %cst_22 = arith.constant -1.000000e+09 : f32
    %cst_23 = arith.constant 0.000000e+00 : f32
    %21 = vector.broadcast %cst_22 : f32 to vector<1x1x16xf32>
    %22 = vector.broadcast %cst_23 : f32 to vector<1x1x16xf32>
    %23 = arith.select %20, %21, %22 : vector<1x1x16xi1>, vector<1x1x16xf32>
    %24 = vector.broadcast %23 : vector<1x1x16xf32> to vector<1x8x16xf32>
    %25 = arith.addf %17, %24 : vector<1x8x16xf32>
    %cst_24 = arith.constant dense<0xFF800000> : vector<1x8xf32>
    %26 = vector.multi_reduction <maximumf>, %25, %cst_24 [2] : vector<1x8x16xf32> to vector<1x8xf32>
    %27 = vector.shape_cast %26 : vector<1x8xf32> to vector<1x8x1xf32>
    %28 = vector.broadcast %27 : vector<1x8x1xf32> to vector<1x8x16xf32>
    %29 = arith.subf %25, %28 : vector<1x8x16xf32>
    %30 = math.exp %29 : vector<1x8x16xf32>
    %cst_25 = arith.constant dense<0.000000e+00> : vector<1x8xf32>
    %31 = vector.multi_reduction <add>, %30, %cst_25 [2] : vector<1x8x16xf32> to vector<1x8xf32>
    %32 = vector.shape_cast %31 : vector<1x8xf32> to vector<1x8x1xf32>
    %33 = tpu.reciprocal %32 {approx = true} : vector<1x8x1xf32> -> vector<1x8x1xf32>
    %34 = arith.mulf %32, %33 : vector<1x8x1xf32>
    %cst_26 = arith.constant 2.000000e+00 : f32
    %35 = vector.broadcast %cst_26 : f32 to vector<1x8x1xf32>
    %36 = arith.subf %35, %34 : vector<1x8x1xf32>
    %37 = arith.mulf %33, %36 : vector<1x8x1xf32>
    %38 = vector.broadcast %37 : vector<1x8x1xf32> to vector<1x8x16xf32>
    %39 = arith.mulf %30, %38 : vector<1x8x16xf32>
    %40 = vector.shape_cast %39 : vector<1x8x16xf32> to vector<1x1x8x16xf32>
    %c0_27 = arith.constant 0 : index
    %c0_28 = arith.constant 0 : index
    %c0_29 = arith.constant 0 : index
    %c0_30 = arith.constant 0 : index
    %41 = vector.load %arg22[%c0_27, %c0_28, %c0_29, %c0_30] : memref<1x1x8x16xf32, #tpu.memory_space<vmem>>, vector<1x1x8x16xf32>
    tpu.vector_store %arg22[%c0_27, %c0_28, %c0_29, %c0_30], %40 {strides = array<i32>} : memref<1x1x8x16xf32, #tpu.memory_space<vmem>>, vector<1x1x8x16xf32>,
    %42 = vector.shape_cast %14 : vector<16x8xf32> to vector<1x16x8xf32>
    "tpu.trace_start"() <{level = 10 : i32, message = "bqk,bkd->bqd"}> : () -> ()
    %cst_31 = arith.constant dense<0.000000e+00> : vector<1x8x8xf32>
    %43 = tpu.matmul %39, %42, %cst_31 {dimension_numbers = #tpu.dot_dimension_numbers<[2], [1], [1], [2], [0, 0, 0, 1, 1, 2], [0], [0]>} : vector<1x8x16xf32>, vector<1x16x8xf32>, vector<1x8x8xf32> -> vector<1x8x8xf32>
    %c0_i32 = arith.constant 0 : i32
    "tpu.trace_stop"() : () -> ()
    %44 = arith.cmpi eq, %arg1, %c0_i32 : i32
    %45 = arith.extui %44 : i1 to i32
    %c0_i32_32 = arith.constant 0 : i32
    %46 = arith.cmpi ne, %45, %c0_i32_32 : i32
    scf.if %46 {
      %cst_42 = arith.constant 0.000000e+00 : f32
      %57 = vector.broadcast %cst_42 : f32 to vector<8x32xf32>
      %c0_43 = arith.constant 0 : index
      %c0_44 = arith.constant 0 : index
      %58 = vector.load %arg23[%c0_43, %c0_44] : memref<8x32xf32, #tpu.memory_space<vmem>>, vector<8x32xf32>
      tpu.vector_store %arg23[%c0_43, %c0_44], %57 {strides = array<i32>} : memref<8x32xf32, #tpu.memory_space<vmem>>, vector<8x32xf32>,
    } else {
    }
    %c0_33 = arith.constant 0 : index
    %c0_34 = arith.constant 0 : index
    %47 = vector.load %arg23[%c0_33, %c0_34] : memref<8x32xf32, #tpu.memory_space<vmem>>, vector<8x32xf32>
    %48 = vector.shape_cast %43 : vector<1x8x8xf32> to vector<8x8xf32>
    %c0_35 = arith.constant 0 : index
    %c0_36 = arith.constant 0 : index
    %c0_37 = arith.constant 0 : index
    %49 = vector.load %arg8[%c0_35, %c0_36, %c0_37] : memref<1x8x32xf32, #tpu.memory_space<vmem>>, vector<1x8x32xf32>
    %50 = vector.shape_cast %49 : vector<1x8x32xf32> to vector<8x32xf32>
    %cst_38 = arith.constant dense<0.000000e+00> : vector<8x32xf32>
    %51 = tpu.matmul %48, %50, %cst_38 {dimension_numbers = #tpu.dot_dimension_numbers<[1], [0], [0], [1], [0, 0, 1, 1], [], []>} : vector<8x8xf32>, vector<8x32xf32>, vector<8x32xf32> -> vector<8x32xf32>
    %52 = arith.addf %47, %51 : vector<8x32xf32>
    %c0_39 = arith.constant 0 : index
    %c0_40 = arith.constant 0 : index
    %53 = vector.load %arg23[%c0_39, %c0_40] : memref<8x32xf32, #tpu.memory_space<vmem>>, vector<8x32xf32>
    tpu.vector_store %arg23[%c0_39, %c0_40], %52 {strides = array<i32>} : memref<8x32xf32, #tpu.memory_space<vmem>>, vector<8x32xf32>,
    %c3_i32 = arith.constant 3 : i32
    %54 = arith.cmpi eq, %arg1, %c3_i32 : i32
    %55 = arith.extui %54 : i1 to i32
    %c0_i32_41 = arith.constant 0 : i32
    %56 = arith.cmpi ne, %55, %c0_i32_41 : i32
    scf.if %56 {
      %c0_42 = arith.constant 0 : index
      %c0_43 = arith.constant 0 : index
      %57 = vector.load %arg23[%c0_42, %c0_43] : memref<8x32xf32, #tpu.memory_space<vmem>>, vector<8x32xf32>
      %58 = arith.addf %57, %1 : vector<8x32xf32>
      %c0_44 = arith.constant 0 : index
      %c0_45 = arith.constant 0 : index
      %59 = vector.load %arg9[%c0_44, %c0_45] : memref<1x32xf32, #tpu.memory_space<vmem>>, vector<1x32xf32>
      %c0_46 = arith.constant 0 : index
      %c0_47 = arith.constant 0 : index
      %60 = vector.load %arg10[%c0_46, %c0_47] : memref<1x32xf32, #tpu.memory_space<vmem>>, vector<1x32xf32>
      %cst_48 = arith.constant dense<0.000000e+00> : vector<8xf32>
      %61 = vector.multi_reduction <add>, %58, %cst_48 [1] : vector<8x32xf32> to vector<8xf32>
      %62 = vector.shape_cast %61 : vector<8xf32> to vector<8x1xf32>
      %cst_49 = arith.constant 3.200000e+01 : f32
      %63 = vector.broadcast %cst_49 : f32 to vector<8x1xf32>
      %64 = arith.divf %62, %63 : vector<8x1xf32>
      %65 = vector.broadcast %64 : vector<8x1xf32> to vector<8x32xf32>
      %66 = arith.subf %58, %65 : vector<8x32xf32>
      %67 = arith.mulf %66, %66 : vector<8x32xf32>
      %cst_50 = arith.constant dense<0.000000e+00> : vector<8xf32>
      %68 = vector.multi_reduction <add>, %67, %cst_50 [1] : vector<8x32xf32> to vector<8xf32>
      %69 = vector.shape_cast %68 : vector<8xf32> to vector<8x1xf32>
      %cst_51 = arith.constant 3.200000e+01 : f32
      %70 = vector.broadcast %cst_51 : f32 to vector<8x1xf32>
      %71 = arith.divf %69, %70 : vector<8x1xf32>
      %cst_52 = arith.constant 9.99999997E-7 : f32
      %72 = vector.broadcast %cst_52 : f32 to vector<8x1xf32>
      %73 = arith.addf %71, %72 : vector<8x1xf32>
      %74 = math.rsqrt %73 : vector<8x1xf32>
      %75 = vector.broadcast %74 : vector<8x1xf32> to vector<8x32xf32>
      %76 = arith.mulf %66, %75 : vector<8x32xf32>
      %77 = vector.broadcast %59 : vector<1x32xf32> to vector<8x32xf32>
      %78 = arith.mulf %76, %77 : vector<8x32xf32>
      %79 = vector.broadcast %60 : vector<1x32xf32> to vector<8x32xf32>
      %80 = arith.addf %78, %79 : vector<8x32xf32>
      %c0_53 = arith.constant 0 : index
      %c0_54 = arith.constant 0 : index
      %81 = vector.load %arg11[%c0_53, %c0_54] : memref<1x32xf32, #tpu.memory_space<vmem>>, vector<1x32xf32>
      %c0_55 = arith.constant 0 : index
      %c0_56 = arith.constant 0 : index
      %82 = vector.load %arg12[%c0_55, %c0_56] : memref<1x32xf32, #tpu.memory_space<vmem>>, vector<1x32xf32>
      %cst_57 = arith.constant dense<0.000000e+00> : vector<8xf32>
      %83 = vector.multi_reduction <add>, %80, %cst_57 [1] : vector<8x32xf32> to vector<8xf32>
      %84 = vector.shape_cast %83 : vector<8xf32> to vector<8x1xf32>
      %cst_58 = arith.constant 3.200000e+01 : f32
      %85 = vector.broadcast %cst_58 : f32 to vector<8x1xf32>
      %86 = arith.divf %84, %85 : vector<8x1xf32>
      %87 = vector.broadcast %86 : vector<8x1xf32> to vector<8x32xf32>
      %88 = arith.subf %80, %87 : vector<8x32xf32>
      %89 = arith.mulf %88, %88 : vector<8x32xf32>
      %cst_59 = arith.constant dense<0.000000e+00> : vector<8xf32>
      %90 = vector.multi_reduction <add>, %89, %cst_59 [1] : vector<8x32xf32> to vector<8xf32>
      %91 = vector.shape_cast %90 : vector<8xf32> to vector<8x1xf32>
      %cst_60 = arith.constant 3.200000e+01 : f32
      %92 = vector.broadcast %cst_60 : f32 to vector<8x1xf32>
      %93 = arith.divf %91, %92 : vector<8x1xf32>
      %cst_61 = arith.constant 9.99999997E-7 : f32
      %94 = vector.broadcast %cst_61 : f32 to vector<8x1xf32>
      %95 = arith.addf %93, %94 : vector<8x1xf32>
      %96 = math.rsqrt %95 : vector<8x1xf32>
      %97 = vector.broadcast %96 : vector<8x1xf32> to vector<8x32xf32>
      %98 = arith.mulf %88, %97 : vector<8x32xf32>
      %99 = vector.broadcast %81 : vector<1x32xf32> to vector<8x32xf32>
      %100 = arith.mulf %98, %99 : vector<8x32xf32>
      %101 = vector.broadcast %82 : vector<1x32xf32> to vector<8x32xf32>
      %102 = arith.addf %100, %101 : vector<8x32xf32>
      %c0_62 = arith.constant 0 : index
      %c0_63 = arith.constant 0 : index
      %103 = vector.load %arg13[%c0_62, %c0_63] : memref<32x64xf32, #tpu.memory_space<vmem>>, vector<32x64xf32>
      %cst_64 = arith.constant dense<0.000000e+00> : vector<8x64xf32>
      %104 = tpu.matmul %102, %103, %cst_64 {dimension_numbers = #tpu.dot_dimension_numbers<[1], [0], [0], [1], [0, 0, 1, 1], [], []>} : vector<8x32xf32>, vector<32x64xf32>, vector<8x64xf32> -> vector<8x64xf32>
      %c0_65 = arith.constant 0 : index
      %c0_66 = arith.constant 0 : index
      %105 = vector.load %arg14[%c0_65, %c0_66] : memref<1x64xf32, #tpu.memory_space<vmem>>, vector<1x64xf32>
      %106 = vector.broadcast %105 : vector<1x64xf32> to vector<8x64xf32>
      %107 = arith.addf %104, %106 : vector<8x64xf32>
      %cst_67 = arith.constant 0.000000e+00 : f32
      %108 = vector.broadcast %cst_67 : f32 to vector<8x64xf32>
      %109 = arith.maximumf %107, %108 : vector<8x64xf32>
      %c0_68 = arith.constant 0 : index
      %c0_69 = arith.constant 0 : index
      %110 = vector.load %arg15[%c0_68, %c0_69] : memref<64x32xf32, #tpu.memory_space<vmem>>, vector<64x32xf32>
      %cst_70 = arith.constant dense<0.000000e+00> : vector<8x32xf32>
      %111 = tpu.matmul %109, %110, %cst_70 {dimension_numbers = #tpu.dot_dimension_numbers<[1], [0], [0], [1], [0, 0, 1, 1], [], []>} : vector<8x64xf32>, vector<64x32xf32>, vector<8x32xf32> -> vector<8x32xf32>
      %c0_71 = arith.constant 0 : index
      %c0_72 = arith.constant 0 : index
      %112 = vector.load %arg16[%c0_71, %c0_72] : memref<1x32xf32, #tpu.memory_space<vmem>>, vector<1x32xf32>
      %113 = vector.broadcast %112 : vector<1x32xf32> to vector<8x32xf32>
      %114 = arith.addf %111, %113 : vector<8x32xf32>
      %115 = arith.addf %114, %102 : vector<8x32xf32>
      %c0_73 = arith.constant 0 : index
      %c0_74 = arith.constant 0 : index
      %116 = vector.load %arg17[%c0_73, %c0_74] : memref<1x32xf32, #tpu.memory_space<vmem>>, vector<1x32xf32>
      %c0_75 = arith.constant 0 : index
      %c0_76 = arith.constant 0 : index
      %117 = vector.load %arg18[%c0_75, %c0_76] : memref<1x32xf32, #tpu.memory_space<vmem>>, vector<1x32xf32>
      %cst_77 = arith.constant dense<0.000000e+00> : vector<8xf32>
      %118 = vector.multi_reduction <add>, %115, %cst_77 [1] : vector<8x32xf32> to vector<8xf32>
      %119 = vector.shape_cast %118 : vector<8xf32> to vector<8x1xf32>
      %cst_78 = arith.constant 3.200000e+01 : f32
      %120 = vector.broadcast %cst_78 : f32 to vector<8x1xf32>
      %121 = arith.divf %119, %120 : vector<8x1xf32>
      %122 = vector.broadcast %121 : vector<8x1xf32> to vector<8x32xf32>
      %123 = arith.subf %115, %122 : vector<8x32xf32>
      %124 = arith.mulf %123, %123 : vector<8x32xf32>
      %cst_79 = arith.constant dense<0.000000e+00> : vector<8xf32>
      %125 = vector.multi_reduction <add>, %124, %cst_79 [1] : vector<8x32xf32> to vector<8xf32>
      %126 = vector.shape_cast %125 : vector<8xf32> to vector<8x1xf32>
      %cst_80 = arith.constant 3.200000e+01 : f32
      %127 = vector.broadcast %cst_80 : f32 to vector<8x1xf32>
      %128 = arith.divf %126, %127 : vector<8x1xf32>
      %cst_81 = arith.constant 9.99999997E-7 : f32
      %129 = vector.broadcast %cst_81 : f32 to vector<8x1xf32>
      %130 = arith.addf %128, %129 : vector<8x1xf32>
      %131 = math.rsqrt %130 : vector<8x1xf32>
      %132 = vector.broadcast %131 : vector<8x1xf32> to vector<8x32xf32>
      %133 = arith.mulf %123, %132 : vector<8x32xf32>
      %134 = vector.broadcast %116 : vector<1x32xf32> to vector<8x32xf32>
      %135 = arith.mulf %133, %134 : vector<8x32xf32>
      %136 = vector.broadcast %117 : vector<1x32xf32> to vector<8x32xf32>
      %137 = arith.addf %135, %136 : vector<8x32xf32>
      %c0_82 = arith.constant 0 : index
      %c0_83 = arith.constant 0 : index
      %138 = vector.load %arg19[%c0_82, %c0_83] : memref<1x32xf32, #tpu.memory_space<vmem>>, vector<1x32xf32>
      %c0_84 = arith.constant 0 : index
      %c0_85 = arith.constant 0 : index
      %139 = vector.load %arg20[%c0_84, %c0_85] : memref<1x32xf32, #tpu.memory_space<vmem>>, vector<1x32xf32>
      %cst_86 = arith.constant dense<0.000000e+00> : vector<8xf32>
      %140 = vector.multi_reduction <add>, %137, %cst_86 [1] : vector<8x32xf32> to vector<8xf32>
      %141 = vector.shape_cast %140 : vector<8xf32> to vector<8x1xf32>
      %cst_87 = arith.constant 3.200000e+01 : f32
      %142 = vector.broadcast %cst_87 : f32 to vector<8x1xf32>
      %143 = arith.divf %141, %142 : vector<8x1xf32>
      %144 = vector.broadcast %143 : vector<8x1xf32> to vector<8x32xf32>
      %145 = arith.subf %137, %144 : vector<8x32xf32>
      %146 = arith.mulf %145, %145 : vector<8x32xf32>
      %cst_88 = arith.constant dense<0.000000e+00> : vector<8xf32>
      %147 = vector.multi_reduction <add>, %146, %cst_88 [1] : vector<8x32xf32> to vector<8xf32>
      %148 = vector.shape_cast %147 : vector<8xf32> to vector<8x1xf32>
      %cst_89 = arith.constant 3.200000e+01 : f32
      %149 = vector.broadcast %cst_89 : f32 to vector<8x1xf32>
      %150 = arith.divf %148, %149 : vector<8x1xf32>
      %cst_90 = arith.constant 9.99999997E-7 : f32
      %151 = vector.broadcast %cst_90 : f32 to vector<8x1xf32>
      %152 = arith.addf %150, %151 : vector<8x1xf32>
      %153 = math.rsqrt %152 : vector<8x1xf32>
      %154 = vector.broadcast %153 : vector<8x1xf32> to vector<8x32xf32>
      %155 = arith.mulf %145, %154 : vector<8x32xf32>
      %156 = vector.broadcast %138 : vector<1x32xf32> to vector<8x32xf32>
      %157 = arith.mulf %155, %156 : vector<8x32xf32>
      %158 = vector.broadcast %139 : vector<1x32xf32> to vector<8x32xf32>
      %159 = arith.addf %157, %158 : vector<8x32xf32>
      %160 = vector.shape_cast %159 : vector<8x32xf32> to vector<1x8x32xf32>
      %c0_91 = arith.constant 0 : index
      %c0_92 = arith.constant 0 : index
      %c0_93 = arith.constant 0 : index
      %161 = vector.load %arg21[%c0_91, %c0_92, %c0_93] : memref<1x8x32xf32, #tpu.memory_space<vmem>>, vector<1x8x32xf32>
      tpu.vector_store %arg21[%c0_91, %c0_92, %c0_93], %160 {strides = array<i32>} : memref<1x8x32xf32, #tpu.memory_space<vmem>>, vector<1x8x32xf32>,
    } else {
    }
    return
  }
  func.func @transform_0(%arg0: i32, %arg1: i32) -> (i32, i32, i32) {
    %c0_i32 = arith.constant 0 : i32
    %c0_i32_0 = arith.constant 0 : i32
    %c0_i32_1 = arith.constant 0 : i32
    return %arg0, %c0_i32, %c0_i32_0 : i32, i32, i32
  }
  func.func @transform_1(%arg0: i32, %arg1: i32) -> (i32, i32, i32) {
    %c0_i32 = arith.constant 0 : i32
    %c0_i32_0 = arith.constant 0 : i32
    %c0_i32_1 = arith.constant 0 : i32
    return %arg0, %c0_i32, %c0_i32_0 : i32, i32, i32
  }
  func.func @transform_2(%arg0: i32, %arg1: i32) -> (i32, i32, i32) {
    %c0_i32 = arith.constant 0 : i32
    %c0_i32_0 = arith.constant 0 : i32
    %c0_i32_1 = arith.constant 0 : i32
    return %arg0, %c0_i32, %c0_i32_0 : i32, i32, i32
  }
  func.func @transform_3(%arg0: i32, %arg1: i32) -> (i32, i32, i32) {
    %c0_i32 = arith.constant 0 : i32
    %c0_i32_0 = arith.constant 0 : i32
    %c0_i32_1 = arith.constant 0 : i32
    return %arg1, %c0_i32, %c0_i32_0 : i32, i32, i32
  }
  func.func @transform_4(%arg0: i32, %arg1: i32) -> (i32, i32, i32) {
    %c0_i32 = arith.constant 0 : i32
    %c0_i32_0 = arith.constant 0 : i32
    %c0_i32_1 = arith.constant 0 : i32
    return %arg1, %c0_i32, %c0_i32_0 : i32, i32, i32
  }
  func.func @transform_5(%arg0: i32, %arg1: i32) -> (i32, i32, i32) {
    %c0_i32 = arith.constant 0 : i32
    %c0_i32_0 = arith.constant 0 : i32
    %c0_i32_1 = arith.constant 0 : i32
    return %arg1, %c0_i32, %c0_i32_0 : i32, i32, i32
  }
  func.func @transform_6(%arg0: i32, %arg1: i32) -> (i32, i32, i32) {
    %c0_i32 = arith.constant 0 : i32
    %c0_i32_0 = arith.constant 0 : i32
    %c0_i32_1 = arith.constant 0 : i32
    return %arg1, %c0_i32, %c0_i32_0 : i32, i32, i32
  }
  func.func @transform_7(%arg0: i32, %arg1: i32) -> (i32, i32) {
    %c0_i32 = arith.constant 0 : i32
    %c0_i32_0 = arith.constant 0 : i32
    %c0_i32_1 = arith.constant 0 : i32
    return %c0_i32, %c0_i32_0 : i32, i32
  }
  func.func @transform_8(%arg0: i32, %arg1: i32) -> (i32, i32) {
    %c0_i32 = arith.constant 0 : i32
    %c0_i32_0 = arith.constant 0 : i32
    %c0_i32_1 = arith.constant 0 : i32
    return %c0_i32, %c0_i32_0 : i32, i32
  }
  func.func @transform_9(%arg0: i32, %arg1: i32) -> (i32, i32) {
    %c0_i32 = arith.constant 0 : i32
    %c0_i32_0 = arith.constant 0 : i32
    %c0_i32_1 = arith.constant 0 : i32
    return %c0_i32, %c0_i32_0 : i32, i32
  }
  func.func @transform_10(%arg0: i32, %arg1: i32) -> (i32, i32) {
    %c0_i32 = arith.constant 0 : i32
    %c0_i32_0 = arith.constant 0 : i32
    %c0_i32_1 = arith.constant 0 : i32
    return %c0_i32, %c0_i32_0 : i32, i32
  }
  func.func @transform_11(%arg0: i32, %arg1: i32) -> (i32, i32) {
    %c0_i32 = arith.constant 0 : i32
    %c0_i32_0 = arith.constant 0 : i32
    %c0_i32_1 = arith.constant 0 : i32
    return %c0_i32, %c0_i32_0 : i32, i32
  }
  func.func @transform_12(%arg0: i32, %arg1: i32) -> (i32, i32) {
    %c0_i32 = arith.constant 0 : i32
    %c0_i32_0 = arith.constant 0 : i32
    %c0_i32_1 = arith.constant 0 : i32
    return %c0_i32, %c0_i32_0 : i32, i32
  }
  func.func @transform_13(%arg0: i32, %arg1: i32) -> (i32, i32) {
    %c0_i32 = arith.constant 0 : i32
    %c0_i32_0 = arith.constant 0 : i32
    %c0_i32_1 = arith.constant 0 : i32
    return %c0_i32, %c0_i32_0 : i32, i32
  }
  func.func @transform_14(%arg0: i32, %arg1: i32) -> (i32, i32) {
    %c0_i32 = arith.constant 0 : i32
    %c0_i32_0 = arith.constant 0 : i32
    %c0_i32_1 = arith.constant 0 : i32
    return %c0_i32, %c0_i32_0 : i32, i32
  }
  func.func @transform_15(%arg0: i32, %arg1: i32) -> (i32, i32) {
    %c0_i32 = arith.constant 0 : i32
    %c0_i32_0 = arith.constant 0 : i32
    %c0_i32_1 = arith.constant 0 : i32
    return %c0_i32, %c0_i32_0 : i32, i32
  }
  func.func @transform_16(%arg0: i32, %arg1: i32) -> (i32, i32) {
    %c0_i32 = arith.constant 0 : i32
    %c0_i32_0 = arith.constant 0 : i32
    %c0_i32_1 = arith.constant 0 : i32
    return %c0_i32, %c0_i32_0 : i32, i32
  }
  func.func @transform_17(%arg0: i32, %arg1: i32) -> (i32, i32) {
    %c0_i32 = arith.constant 0 : i32
    %c0_i32_0 = arith.constant 0 : i32
    %c0_i32_1 = arith.constant 0 : i32
    return %c0_i32, %c0_i32_0 : i32, i32
  }
  func.func @transform_18(%arg0: i32, %arg1: i32) -> (i32, i32) {
    %c0_i32 = arith.constant 0 : i32
    %c0_i32_0 = arith.constant 0 : i32
    %c0_i32_1 = arith.constant 0 : i32
    return %c0_i32, %c0_i32_0 : i32, i32
  }
  func.func @transform_19(%arg0: i32, %arg1: i32) -> (i32, i32, i32) {
    %c0_i32 = arith.constant 0 : i32
    %c0_i32_0 = arith.constant 0 : i32
    %c0_i32_1 = arith.constant 0 : i32
    return %arg0, %c0_i32, %c0_i32_0 : i32, i32, i32
  }
  func.func @transform_20(%arg0: i32, %arg1: i32) -> (i32, i32, i32, i32) {
    %c0_i32 = arith.constant 0 : i32
    %c0_i32_0 = arith.constant 0 : i32
    %c0_i32_1 = arith.constant 0 : i32
    return %arg0, %arg1, %c0_i32, %c0_i32_0 : i32, i32, i32, i32
  }
}

</mosaic_0001>

<llo_original>
// kernel: tpu_custom_call.1
$region0: #{tpu_custom_call.1}
  #allocation0 [shape = 'u32[]', space=smem, size = 0x4, offset = 0x4, fixed_abs, tag = 'smem constant byte address 0x4 - core index']
  #allocation1 [shape = 'u32[72,128]{1,0:T(1,128)}', space=vmem, size = 0x9000, scoped, tag = 'internal scratch']
  #allocation2 [shape = 'f32[8,32]{1,0:T(8,128)}', space=vmem, size = 0x1000, scoped, tag = 'scratch operand']
  %s0 = inlined_call_operand.vmem [shape: f32[2,8,32], index: 0, kind: input, shape index: {}]
  %s1 = inlined_call_operand.vmem [shape: f32[2,16,32], index: 1, kind: input, shape index: {}]
  %s2 = inlined_call_operand.vmem [shape: f32[2,1,16], index: 2, kind: input, shape index: {}]
  %s3 = inlined_call_operand.vmem [shape: f32[4,32,8], index: 3, kind: input, shape index: {}]
  %s4 = inlined_call_operand.vmem [shape: f32[4,32,8], index: 4, kind: input, shape index: {}]
  %s5 = inlined_call_operand.vmem [shape: f32[4,32,8], index: 5, kind: input, shape index: {}]
  %s6 = inlined_call_operand.vmem [shape: f32[4,8,32], index: 6, kind: input, shape index: {}]
  %s7 = inlined_call_operand.vmem [shape: f32[1,32], index: 7, kind: input, shape index: {}]
  %s8 = inlined_call_operand.vmem [shape: f32[1,32], index: 8, kind: input, shape index: {}]
  %s9 = inlined_call_operand.vmem [shape: f32[1,32], index: 9, kind: input, shape index: {}]
  %s10 = inlined_call_operand.vmem [shape: f32[1,32], index: 10, kind: input, shape index: {}]
  %s11 = inlined_call_operand.vmem [shape: f32[32,64], index: 11, kind: input, shape index: {}]
  %s12 = inlined_call_operand.vmem [shape: f32[1,64], index: 12, kind: input, shape index: {}]
  %s13 = inlined_call_operand.vmem [shape: f32[64,32], index: 13, kind: input, shape index: {}]
  %s14 = inlined_call_operand.vmem [shape: f32[1,32], index: 14, kind: input, shape index: {}]
  %s15 = inlined_call_operand.vmem [shape: f32[1,32], index: 15, kind: input, shape index: {}]
  %s16 = inlined_call_operand.vmem [shape: f32[1,32], index: 16, kind: input, shape index: {}]
  %s17 = inlined_call_operand.vmem [shape: f32[1,32], index: 17, kind: input, shape index: {}]
  %s18 = inlined_call_operand.vmem [shape: f32[1,32], index: 18, kind: input, shape index: {}]
  %s19 = inlined_call_operand.hbm [shape: f32[2,8,32], index: 19, kind: output, shape index: {0}]
  %s20 = inlined_call_operand.hbm [shape: f32[2,4,8,16], index: 20, kind: output, shape index: {1}]
  %21 = xla_tuple %s19, %s20
  %s22 = sld [smem:[#allocation0]]
  $region125: #{tpu_custom_call.1} parent=0
    _
  %s24 = ssub.s32 1, %s22
  %s25 = scalar_select 0, %s24, %s22
  $region1: #{tpu_custom_call.1} parent=0
    #allocation3 [shape = 'u8[8192]{0}', space=vmem, size = 0x2000, scoped, tag = 'output window, operand 0']
    #allocation4 [shape = 's32[2]{0}', space=sflag, size = 0x8, scoped, tag = 'scoped memory for tpu_custom_call.1']
    #allocation5 [shape = 'u8[8192]{0}', space=vmem, size = 0x2000, scoped, tag = 'output window, operand 1']
    #allocation6 [shape = 's32[2]{0}', space=sflag, size = 0x8, scoped, tag = 'scoped memory for tpu_custom_call.1']
    %26 = vsyncpa [#allocation4], 0
    %s27 = scalar_lea.sflag [#allocation4], 1
    %28 = vsyncpa %s27, 0
    %29 = vsyncpa [#allocation6], 0
    %s30 = scalar_lea.sflag [#allocation6], 1
    %31 = vsyncpa %s30, 0
    loop: start=0, step=1, limit=10
    $region2: #{tpu_custom_call.1} parent=1 // loop_pre_header
      _
    $region3: #{tpu_custom_call.1} parent=1 // loop_header
      %s33 = sphi 0, %s37
      %p34 = scmp.ge.s32.totalorder %s33, 10
      %s40 = sphi 0, %s52
      %s41 = sphi 0, %s48
      %s42 = sphi 0, %s40
      %s43 = sphi 0, %s41
      %s44 = sphi 0, %s42
      %s45 = sphi 0, %s43
      %s55 = sphi 0, %s57
      %s58 = sphi 0, %s55
      %s59 = sphi 0, %s58
      %s75 = sphi 0, %s59
      %s81 = sphi 0, %s83
      %s84 = sphi 0, %s81
      %s85 = sphi 0, %s84
      %s101 = sphi 0, %s85
      %s107 = sphi 0, %s109
      %s110 = sphi 0, %s107
      %s111 = sphi 0, %s110
      %s127 = sphi 0, %s111
      %s133 = sphi 0, %s135
      %s136 = sphi 0, %s133
      %s137 = sphi 0, %s136
      %s153 = sphi 0, %s137
      %s159 = sphi 0, %s161
      %s162 = sphi 0, %s159
      %s163 = sphi 0, %s162
      %s179 = sphi 0, %s163
      %s185 = sphi 0, %s187
      %s188 = sphi 0, %s185
      %s189 = sphi 0, %s188
      %s205 = sphi 0, %s189
      %s211 = sphi 0, %s213
      %s214 = sphi 0, %s211
      %s215 = sphi 0, %s214
      %s231 = sphi 0, %s215
      %s235 = sphi 0, %s235
      %s237 = sphi 0, %s235
      %s238 = sphi 0, %s237
      %s252 = sphi 0, %s238
      %s256 = sphi 0, %s256
      %s258 = sphi 0, %s256
      %s259 = sphi 0, %s258
      %s273 = sphi 0, %s259
      %s277 = sphi 0, %s277
      %s279 = sphi 0, %s277
      %s280 = sphi 0, %s279
      %s294 = sphi 0, %s280
      %s298 = sphi 0, %s298
      %s300 = sphi 0, %s298
      %s301 = sphi 0, %s300
      %s315 = sphi 0, %s301
      %s319 = sphi 0, %s319
      %s321 = sphi 0, %s319
      %s322 = sphi 0, %s321
      %s336 = sphi 0, %s322
      %s340 = sphi 0, %s340
      %s342 = sphi 0, %s340
      %s343 = sphi 0, %s342
      %s357 = sphi 0, %s343
      %s361 = sphi 0, %s361
      %s363 = sphi 0, %s361
      %s364 = sphi 0, %s363
      %s378 = sphi 0, %s364
      %s382 = sphi 0, %s382
      %s384 = sphi 0, %s382
      %s385 = sphi 0, %s384
      %s399 = sphi 0, %s385
      %s403 = sphi 0, %s403
      %s405 = sphi 0, %s403
      %s406 = sphi 0, %s405
      %s420 = sphi 0, %s406
      %s424 = sphi 0, %s424
      %s426 = sphi 0, %s424
      %s427 = sphi 0, %s426
      %s441 = sphi 0, %s427
      %s445 = sphi 0, %s445
      %s447 = sphi 0, %s445
      %s448 = sphi 0, %s447
      %s462 = sphi 0, %s448
      %s466 = sphi 0, %s466
      %s468 = sphi 0, %s466
      %s469 = sphi 0, %s468
      %s483 = sphi 0, %s469
      %s489 = sphi 0, %s491
      %s492 = sphi 0, %s489
      %s493 = sphi 0, %s492
      %s509 = sphi 0, %s493
      %s517 = sphi 0, %s519
      %s520 = sphi 0, %s517
      %s521 = sphi 0, %s520
      %s537 = sphi 0, %s521
    $region4: #{tpu_custom_call.1} parent=1 // loop_header_branch
      %36 = sbr.rel (%p34) target = $region8
    $region5: #{tpu_custom_call.1} parent=1 // loop_body
      %s38 = ssub.s32 %s33, 1
      %s39 = ssub.s32 %s33, 2
      %s46 = sadd.s32 1, %s41
      %p47 = scmp.ge.s32.totalorder %s46, 4
      %s48 = scalar_select %p47, 0, %s46
      %s49 = sadd.s32 1, %s40
      %s50 = scalar_select %p47, %s49, %s40
      %p51 = scmp.ge.s32.totalorder %s50, 2
      %s52 = scalar_select %p51, 0, %s50
      %s53 = ssub.s32 %s40, %s52
      %p54 = scmp.eq.s32.totalorder %s53, 0
      %s56 = sadd.s32 %s55, 1
      %s57 = scalar_select %p54, %s55, %s56
      %p60 = pneg %p54
      %p61 = scmp.eq.s32.totalorder %s33, 7
      %p62 = por %p60, %p61
      %p63 = scmp.ne.s32.totalorder %s55, %s58
      %p64 = scmp.eq.s32.totalorder %s33, 0
      %p65 = por %p63, %p64
      %p66 = scmp.ne.s32.totalorder %s55, %s58
      %p67 = scmp.eq.s32.totalorder %s38, 7
      %p68 = por %p66, %p67
      %p69 = scmp.ne.s32.totalorder %s58, %s59
      %p70 = scmp.eq.s32.totalorder %s38, 0
      %p71 = por %p69, %p70
      %p72 = scmp.ne.s32.totalorder %s58, %s59
      %p73 = scmp.eq.s32.totalorder %s39, 7
      %p74 = por %p72, %p73
      %p76 = scmp.ne.s32.totalorder %s59, %s75
      %p77 = scmp.eq.s32.totalorder %s39, 0
      %p78 = por %p76, %p77
      %s79 = ssub.s32 %s40, %s52
      %p80 = scmp.eq.s32.totalorder %s79, 0
      %s82 = sadd.s32 %s81, 1
      %s83 = scalar_select %p80, %s81, %s82
      %p86 = pneg %p80
      %p87 = scmp.eq.s32.totalorder %s33, 7
      %p88 = por %p86, %p87
      %p89 = scmp.ne.s32.totalorder %s81, %s84
      %p90 = scmp.eq.s32.totalorder %s33, 0
      %p91 = por %p89, %p90
      %p92 = scmp.ne.s32.totalorder %s81, %s84
      %p93 = scmp.eq.s32.totalorder %s38, 7
      %p94 = por %p92, %p93
      %p95 = scmp.ne.s32.totalorder %s84, %s85
      %p96 = scmp.eq.s32.totalorder %s38, 0
      %p97 = por %p95, %p96
      %p98 = scmp.ne.s32.totalorder %s84, %s85
      %p99 = scmp.eq.s32.totalorder %s39, 7
      %p100 = por %p98, %p99
      %p102 = scmp.ne.s32.totalorder %s85, %s101
      %p103 = scmp.eq.s32.totalorder %s39, 0
      %p104 = por %p102, %p103
      %s105 = ssub.s32 %s40, %s52
      %p106 = scmp.eq.s32.totalorder %s105, 0
      %s108 = sadd.s32 %s107, 1
      %s109 = scalar_select %p106, %s107, %s108
      %p112 = pneg %p106
      %p113 = scmp.eq.s32.totalorder %s33, 7
      %p114 = por %p112, %p113
      %p115 = scmp.ne.s32.totalorder %s107, %s110
      %p116 = scmp.eq.s32.totalorder %s33, 0
      %p117 = por %p115, %p116
      %p118 = scmp.ne.s32.totalorder %s107, %s110
      %p119 = scmp.eq.s32.totalorder %s38, 7
      %p120 = por %p118, %p119
      %p121 = scmp.ne.s32.totalorder %s110, %s111
      %p122 = scmp.eq.s32.totalorder %s38, 0
      %p123 = por %p121, %p122
      %p124 = scmp.ne.s32.totalorder %s110, %s111
      %p125 = scmp.eq.s32.totalorder %s39, 7
      %p126 = por %p124, %p125
      %p128 = scmp.ne.s32.totalorder %s111, %s127
      %p129 = scmp.eq.s32.totalorder %s39, 0
      %p130 = por %p128, %p129
      %s131 = ssub.s32 %s41, %s48
      %p132 = scmp.eq.s32.totalorder %s131, 0
      %s134 = sadd.s32 %s133, 1
      %s135 = scalar_select %p132, %s133, %s134
      %p138 = pneg %p132
      %p139 = scmp.eq.s32.totalorder %s33, 7
      %p140 = por %p138, %p139
      %p141 = scmp.ne.s32.totalorder %s133, %s136
      %p142 = scmp.eq.s32.totalorder %s33, 0
      %p143 = por %p141, %p142
      %p144 = scmp.ne.s32.totalorder %s133, %s136
      %p145 = scmp.eq.s32.totalorder %s38, 7
      %p146 = por %p144, %p145
      %p147 = scmp.ne.s32.totalorder %s136, %s137
      %p148 = scmp.eq.s32.totalorder %s38, 0
      %p149 = por %p147, %p148
      %p150 = scmp.ne.s32.totalorder %s136, %s137
      %p151 = scmp.eq.s32.totalorder %s39, 7
      %p152 = por %p150, %p151
      %p154 = scmp.ne.s32.totalorder %s137, %s153
      %p155 = scmp.eq.s32.totalorder %s39, 0
      %p156 = por %p154, %p155
      %s157 = ssub.s32 %s41, %s48
      %p158 = scmp.eq.s32.totalorder %s157, 0
      %s160 = sadd.s32 %s159, 1
      %s161 = scalar_select %p158, %s159, %s160
      %p164 = pneg %p158
      %p165 = scmp.eq.s32.totalorder %s33, 7
      %p166 = por %p164, %p165
      %p167 = scmp.ne.s32.totalorder %s159, %s162
      %p168 = scmp.eq.s32.totalorder %s33, 0
      %p169 = por %p167, %p168
      %p170 = scmp.ne.s32.totalorder %s159, %s162
      %p171 = scmp.eq.s32.totalorder %s38, 7
      %p172 = por %p170, %p171
      %p173 = scmp.ne.s32.totalorder %s162, %s163
      %p174 = scmp.eq.s32.totalorder %s38, 0
      %p175 = por %p173, %p174
      %p176 = scmp.ne.s32.totalorder %s162, %s163
      %p177 = scmp.eq.s32.totalorder %s39, 7
      %p178 = por %p176, %p177
      %p180 = scmp.ne.s32.totalorder %s163, %s179
      %p181 = scmp.eq.s32.totalorder %s39, 0
      %p182 = por %p180, %p181
      %s183 = ssub.s32 %s41, %s48
      %p184 = scmp.eq.s32.totalorder %s183, 0
      %s186 = sadd.s32 %s185, 1
      %s187 = scalar_select %p184, %s185, %s186
      %p190 = pneg %p184
      %p191 = scmp.eq.s32.totalorder %s33, 7
      %p192 = por %p190, %p191
      %p193 = scmp.ne.s32.totalorder %s185, %s188
      %p194 = scmp.eq.s32.totalorder %s33, 0
      %p195 = por %p193, %p194
      %p196 = scmp.ne.s32.totalorder %s185, %s188
      %p197 = scmp.eq.s32.totalorder %s38, 7
      %p198 = por %p196, %p197
      %p199 = scmp.ne.s32.totalorder %s188, %s189
      %p200 = scmp.eq.s32.totalorder %s38, 0
      %p201 = por %p199, %p200
      %p202 = scmp.ne.s32.totalorder %s188, %s189
      %p203 = scmp.eq.s32.totalorder %s39, 7
      %p204 = por %p202, %p203
      %p206 = scmp.ne.s32.totalorder %s189, %s205
      %p207 = scmp.eq.s32.totalorder %s39, 0
      %p208 = por %p206, %p207
      %s209 = ssub.s32 %s41, %s48
      %p210 = scmp.eq.s32.totalorder %s209, 0
      %s212 = sadd.s32 %s211, 1
      %s213 = scalar_select %p210, %s211, %s212
      %p216 = pneg %p210
      %p217 = scmp.eq.s32.totalorder %s33, 7
      %p218 = por %p216, %p217
      %p219 = scmp.ne.s32.totalorder %s211, %s214
      %p220 = scmp.eq.s32.totalorder %s33, 0
      %p221 = por %p219, %p220
      %p222 = scmp.ne.s32.totalorder %s211, %s214
      %p223 = scmp.eq.s32.totalorder %s38, 7
      %p224 = por %p222, %p223
      %p225 = scmp.ne.s32.totalorder %s214, %s215
      %p226 = scmp.eq.s32.totalorder %s38, 0
      %p227 = por %p225, %p226
      %p228 = scmp.ne.s32.totalorder %s214, %s215
      %p229 = scmp.eq.s32.totalorder %s39, 7
      %p230 = por %p228, %p229
      %p232 = scmp.ne.s32.totalorder %s215, %s231
      %p233 = scmp.eq.s32.totalorder %s39, 0
      %p234 = por %p232, %p233
      %s236 = sadd.s32 %s235, 1
      %p239 = scmp.eq.s32.totalorder %s33, 7
      %p240 = scmp.ne.s32.totalorder %s235, %s237
      %p241 = scmp.eq.s32.totalorder %s33, 0
      %p242 = por %p240, %p241
      %p243 = scmp.ne.s32.totalorder %s235, %s237
      %p244 = scmp.eq.s32.totalorder %s38, 7
      %p245 = por %p243, %p244
      %p246 = scmp.ne.s32.totalorder %s237, %s238
      %p247 = scmp.eq.s32.totalorder %s38, 0
      %p248 = por %p246, %p247
      %p249 = scmp.ne.s32.totalorder %s237, %s238
      %p250 = scmp.eq.s32.totalorder %s39, 7
      %p251 = por %p249, %p250
      %p253 = scmp.ne.s32.totalorder %s238, %s252
      %p254 = scmp.eq.s32.totalorder %s39, 0
      %p255 = por %p253, %p254
      %s257 = sadd.s32 %s256, 1
      %p260 = scmp.eq.s32.totalorder %s33, 7
      %p261 = scmp.ne.s32.totalorder %s256, %s258
      %p262 = scmp.eq.s32.totalorder %s33, 0
      %p263 = por %p261, %p262
      %p264 = scmp.ne.s32.totalorder %s256, %s258
      %p265 = scmp.eq.s32.totalorder %s38, 7
      %p266 = por %p264, %p265
      %p267 = scmp.ne.s32.totalorder %s258, %s259
      %p268 = scmp.eq.s32.totalorder %s38, 0
      %p269 = por %p267, %p268
      %p270 = scmp.ne.s32.totalorder %s258, %s259
      %p271 = scmp.eq.s32.totalorder %s39, 7
      %p272 = por %p270, %p271
      %p274 = scmp.ne.s32.totalorder %s259, %s273
      %p275 = scmp.eq.s32.totalorder %s39, 0
      %p276 = por %p274, %p275
      %s278 = sadd.s32 %s277, 1
      %p281 = scmp.eq.s32.totalorder %s33, 7
      %p282 = scmp.ne.s32.totalorder %s277, %s279
      %p283 = scmp.eq.s32.totalorder %s33, 0
      %p284 = por %p282, %p283
      %p285 = scmp.ne.s32.totalorder %s277, %s279
      %p286 = scmp.eq.s32.totalorder %s38, 7
      %p287 = por %p285, %p286
      %p288 = scmp.ne.s32.totalorder %s279, %s280
      %p289 = scmp.eq.s32.totalorder %s38, 0
      %p290 = por %p288, %p289
      %p291 = scmp.ne.s32.totalorder %s279, %s280
      %p292 = scmp.eq.s32.totalorder %s39, 7
      %p293 = por %p291, %p292
      %p295 = scmp.ne.s32.totalorder %s280, %s294
      %p296 = scmp.eq.s32.totalorder %s39, 0
      %p297 = por %p295, %p296
      %s299 = sadd.s32 %s298, 1
      %p302 = scmp.eq.s32.totalorder %s33, 7
      %p303 = scmp.ne.s32.totalorder %s298, %s300
      %p304 = scmp.eq.s32.totalorder %s33, 0
      %p305 = por %p303, %p304
      %p306 = scmp.ne.s32.totalorder %s298, %s300
      %p307 = scmp.eq.s32.totalorder %s38, 7
      %p308 = por %p306, %p307
      %p309 = scmp.ne.s32.totalorder %s300, %s301
      %p310 = scmp.eq.s32.totalorder %s38, 0
      %p311 = por %p309, %p310
      %p312 = scmp.ne.s32.totalorder %s300, %s301
      %p313 = scmp.eq.s32.totalorder %s39, 7
      %p314 = por %p312, %p313
      %p316 = scmp.ne.s32.totalorder %s301, %s315
      %p317 = scmp.eq.s32.totalorder %s39, 0
      %p318 = por %p316, %p317
      %s320 = sadd.s32 %s319, 1
      %p323 = scmp.eq.s32.totalorder %s33, 7
      %p324 = scmp.ne.s32.totalorder %s319, %s321
      %p325 = scmp.eq.s32.totalorder %s33, 0
      %p326 = por %p324, %p325
      %p327 = scmp.ne.s32.totalorder %s319, %s321
      %p328 = scmp.eq.s32.totalorder %s38, 7
      %p329 = por %p327, %p328
      %p330 = scmp.ne.s32.totalorder %s321, %s322
      %p331 = scmp.eq.s32.totalorder %s38, 0
      %p332 = por %p330, %p331
      %p333 = scmp.ne.s32.totalorder %s321, %s322
      %p334 = scmp.eq.s32.totalorder %s39, 7
      %p335 = por %p333, %p334
      %p337 = scmp.ne.s32.totalorder %s322, %s336
      %p338 = scmp.eq.s32.totalorder %s39, 0
      %p339 = por %p337, %p338
      %s341 = sadd.s32 %s340, 1
      %p344 = scmp.eq.s32.totalorder %s33, 7
      %p345 = scmp.ne.s32.totalorder %s340, %s342
      %p346 = scmp.eq.s32.totalorder %s33, 0
      %p347 = por %p345, %p346
      %p348 = scmp.ne.s32.totalorder %s340, %s342
      %p349 = scmp.eq.s32.totalorder %s38, 7
      %p350 = por %p348, %p349
      %p351 = scmp.ne.s32.totalorder %s342, %s343
      %p352 = scmp.eq.s32.totalorder %s38, 0
      %p353 = por %p351, %p352
      %p354 = scmp.ne.s32.totalorder %s342, %s343
      %p355 = scmp.eq.s32.totalorder %s39, 7
      %p356 = por %p354, %p355
      %p358 = scmp.ne.s32.totalorder %s343, %s357
      %p359 = scmp.eq.s32.totalorder %s39, 0
      %p360 = por %p358, %p359
      %s362 = sadd.s32 %s361, 1
      %p365 = scmp.eq.s32.totalorder %s33, 7
      %p366 = scmp.ne.s32.totalorder %s361, %s363
      %p367 = scmp.eq.s32.totalorder %s33, 0
      %p368 = por %p366, %p367
      %p369 = scmp.ne.s32.totalorder %s361, %s363
      %p370 = scmp.eq.s32.totalorder %s38, 7
      %p371 = por %p369, %p370
      %p372 = scmp.ne.s32.totalorder %s363, %s364
      %p373 = scmp.eq.s32.totalorder %s38, 0
      %p374 = por %p372, %p373
      %p375 = scmp.ne.s32.totalorder %s363, %s364
      %p376 = scmp.eq.s32.totalorder %s39, 7
      %p377 = por %p375, %p376
      %p379 = scmp.ne.s32.totalorder %s364, %s378
      %p380 = scmp.eq.s32.totalorder %s39, 0
      %p381 = por %p379, %p380
      %s383 = sadd.s32 %s382, 1
      %p386 = scmp.eq.s32.totalorder %s33, 7
      %p387 = scmp.ne.s32.totalorder %s382, %s384
      %p388 = scmp.eq.s32.totalorder %s33, 0
      %p389 = por %p387, %p388
      %p390 = scmp.ne.s32.totalorder %s382, %s384
      %p391 = scmp.eq.s32.totalorder %s38, 7
      %p392 = por %p390, %p391
      %p393 = scmp.ne.s32.totalorder %s384, %s385
      %p394 = scmp.eq.s32.totalorder %s38, 0
      %p395 = por %p393, %p394
      %p396 = scmp.ne.s32.totalorder %s384, %s385
      %p397 = scmp.eq.s32.totalorder %s39, 7
      %p398 = por %p396, %p397
      %p400 = scmp.ne.s32.totalorder %s385, %s399
      %p401 = scmp.eq.s32.totalorder %s39, 0
      %p402 = por %p400, %p401
      %s404 = sadd.s32 %s403, 1
      %p407 = scmp.eq.s32.totalorder %s33, 7
      %p408 = scmp.ne.s32.totalorder %s403, %s405
      %p409 = scmp.eq.s32.totalorder %s33, 0
      %p410 = por %p408, %p409
      %p411 = scmp.ne.s32.totalorder %s403, %s405
      %p412 = scmp.eq.s32.totalorder %s38, 7
      %p413 = por %p411, %p412
      %p414 = scmp.ne.s32.totalorder %s405, %s406
      %p415 = scmp.eq.s32.totalorder %s38, 0
      %p416 = por %p414, %p415
      %p417 = scmp.ne.s32.totalorder %s405, %s406
      %p418 = scmp.eq.s32.totalorder %s39, 7
      %p419 = por %p417, %p418
      %p421 = scmp.ne.s32.totalorder %s406, %s420
      %p422 = scmp.eq.s32.totalorder %s39, 0
      %p423 = por %p421, %p422
      %s425 = sadd.s32 %s424, 1
      %p428 = scmp.eq.s32.totalorder %s33, 7
      %p429 = scmp.ne.s32.totalorder %s424, %s426
      %p430 = scmp.eq.s32.totalorder %s33, 0
      %p431 = por %p429, %p430
      %p432 = scmp.ne.s32.totalorder %s424, %s426
      %p433 = scmp.eq.s32.totalorder %s38, 7
      %p434 = por %p432, %p433
      %p435 = scmp.ne.s32.totalorder %s426, %s427
      %p436 = scmp.eq.s32.totalorder %s38, 0
      %p437 = por %p435, %p436
      %p438 = scmp.ne.s32.totalorder %s426, %s427
      %p439 = scmp.eq.s32.totalorder %s39, 7
      %p440 = por %p438, %p439
      %p442 = scmp.ne.s32.totalorder %s427, %s441
      %p443 = scmp.eq.s32.totalorder %s39, 0
      %p444 = por %p442, %p443
      %s446 = sadd.s32 %s445, 1
      %p449 = scmp.eq.s32.totalorder %s33, 7
      %p450 = scmp.ne.s32.totalorder %s445, %s447
      %p451 = scmp.eq.s32.totalorder %s33, 0
      %p452 = por %p450, %p451
      %p453 = scmp.ne.s32.totalorder %s445, %s447
      %p454 = scmp.eq.s32.totalorder %s38, 7
      %p455 = por %p453, %p454
      %p456 = scmp.ne.s32.totalorder %s447, %s448
      %p457 = scmp.eq.s32.totalorder %s38, 0
      %p458 = por %p456, %p457
      %p459 = scmp.ne.s32.totalorder %s447, %s448
      %p460 = scmp.eq.s32.totalorder %s39, 7
      %p461 = por %p459, %p460
      %p463 = scmp.ne.s32.totalorder %s448, %s462
      %p464 = scmp.eq.s32.totalorder %s39, 0
      %p465 = por %p463, %p464
      %s467 = sadd.s32 %s466, 1
      %p470 = scmp.eq.s32.totalorder %s33, 7
      %p471 = scmp.ne.s32.totalorder %s466, %s468
      %p472 = scmp.eq.s32.totalorder %s33, 0
      %p473 = por %p471, %p472
      %p474 = scmp.ne.s32.totalorder %s466, %s468
      %p475 = scmp.eq.s32.totalorder %s38, 7
      %p476 = por %p474, %p475
      %p477 = scmp.ne.s32.totalorder %s468, %s469
      %p478 = scmp.eq.s32.totalorder %s38, 0
      %p479 = por %p477, %p478
      %p480 = scmp.ne.s32.totalorder %s468, %s469
      %p481 = scmp.eq.s32.totalorder %s39, 7
      %p482 = por %p480, %p481
      %p484 = scmp.ne.s32.totalorder %s469, %s483
      %p485 = scmp.eq.s32.totalorder %s39, 0
      %p486 = por %p484, %p485
      %s487 = ssub.s32 %s40, %s52
      %p488 = scmp.eq.s32.totalorder %s487, 0
      %s490 = sadd.s32 %s489, 1
      %s491 = scalar_select %p488, %s489, %s490
      %p494 = pneg %p488
      %p495 = scmp.eq.s32.totalorder %s33, 7
      %p496 = por %p494, %p495
      %p497 = scmp.ne.s32.totalorder %s489, %s492
      %p498 = scmp.eq.s32.totalorder %s33, 0
      %p499 = por %p497, %p498
      %p500 = scmp.ne.s32.totalorder %s489, %s492
      %p501 = scmp.eq.s32.totalorder %s38, 7
      %p502 = por %p500, %p501
      %p503 = scmp.ne.s32.totalorder %s492, %s493
      %p504 = scmp.eq.s32.totalorder %s38, 0
      %p505 = por %p503, %p504
      %p506 = scmp.ne.s32.totalorder %s492, %s493
      %p507 = scmp.eq.s32.totalorder %s39, 7
      %p508 = por %p506, %p507
      %p510 = scmp.ne.s32.totalorder %s493, %s509
      %p511 = scmp.eq.s32.totalorder %s39, 0
      %p512 = por %p510, %p511
      %s513 = ssub.s32 %s40, %s52
      %s514 = ssub.s32 %s41, %s48
      %s515 = sor.u32 %s513, %s514
      %p516 = scmp.eq.s32.totalorder %s515, 0
      %s518 = sadd.s32 %s517, 1
      %s519 = scalar_select %p516, %s517, %s518
      %p522 = pneg %p516
      %p523 = scmp.eq.s32.totalorder %s33, 7
      %p524 = por %p522, %p523
      %p525 = scmp.ne.s32.totalorder %s517, %s520
      %p526 = scmp.eq.s32.totalorder %s33, 0
      %p527 = por %p525, %p526
      %p528 = scmp.ne.s32.totalorder %s517, %s520
      %p529 = scmp.eq.s32.totalorder %s38, 7
      %p530 = por %p528, %p529
      %p531 = scmp.ne.s32.totalorder %s520, %s521
      %p532 = scmp.eq.s32.totalorder %s38, 0
      %p533 = por %p531, %p532
      %p534 = scmp.ne.s32.totalorder %s520, %s521
      %p535 = scmp.eq.s32.totalorder %s39, 7
      %p536 = por %p534, %p535
      %p538 = scmp.ne.s32.totalorder %s521, %s537
      %p539 = scmp.eq.s32.totalorder %s39, 0
      %p540 = por %p538, %p539
      %p541 = scmp.le.s32.totalorder 1, %s33
      %p542 = scmp.lt.s32.totalorder %s33, 9
      %p543 = pnand %p541, %p542
      %p544 = pneg %p543
      // Predicated region
      $region9: #{tpu_custom_call.1} parent=5 // pred_check
        _
      $region10: #{tpu_custom_call.1} parent=5 // pred_check_branch
        %546 = sbr.rel (%p543) target = $region12
      $region11: #{tpu_custom_call.1} parent=5 // pred_region
        %s547 = ssub.s32 %s33, 1
        // Predicated region
        $region13: #{tpu_custom_call.1} parent=11 // pred_check
          %p548 = pneg %p248
        $region14: #{tpu_custom_call.1} parent=11 // pred_check_branch
          %550 = sbr.rel (%p548) target = $region16
        $region15: #{tpu_custom_call.1} parent=11 // pred_region
          _
        $region16: #{tpu_custom_call.1} parent=11 // pred_fallthru
          _
        // Predicated region
        $region17: #{tpu_custom_call.1} parent=11 // pred_check
          %p551 = pneg %p269
        $region18: #{tpu_custom_call.1} parent=11 // pred_check_branch
          %553 = sbr.rel (%p551) target = $region20
        $region19: #{tpu_custom_call.1} parent=11 // pred_region
          _
        $region20: #{tpu_custom_call.1} parent=11 // pred_fallthru
          _
        // Predicated region
        $region21: #{tpu_custom_call.1} parent=11 // pred_check
          %p554 = pneg %p290
        $region22: #{tpu_custom_call.1} parent=11 // pred_check_branch
          %556 = sbr.rel (%p554) target = $region24
        $region23: #{tpu_custom_call.1} parent=11 // pred_region
          _
        $region24: #{tpu_custom_call.1} parent=11 // pred_fallthru
          _
        // Predicated region
        $region25: #{tpu_custom_call.1} parent=11 // pred_check
          %p557 = pneg %p311
        $region26: #{tpu_custom_call.1} parent=11 // pred_check_branch
          %559 = sbr.rel (%p557) target = $region28
        $region27: #{tpu_custom_call.1} parent=11 // pred_region
          _
        $region28: #{tpu_custom_call.1} parent=11 // pred_fallthru
          _
        // Predicated region
        $region29: #{tpu_custom_call.1} parent=11 // pred_check
          %p560 = pneg %p332
        $region30: #{tpu_custom_call.1} parent=11 // pred_check_branch
          %562 = sbr.rel (%p560) target = $region32
        $region31: #{tpu_custom_call.1} parent=11 // pred_region
          _
        $region32: #{tpu_custom_call.1} parent=11 // pred_fallthru
          _
        // Predicated region
        $region33: #{tpu_custom_call.1} parent=11 // pred_check
          %p563 = pneg %p353
        $region34: #{tpu_custom_call.1} parent=11 // pred_check_branch
          %565 = sbr.rel (%p563) target = $region36
        $region35: #{tpu_custom_call.1} parent=11 // pred_region
          _
        $region36: #{tpu_custom_call.1} parent=11 // pred_fallthru
          _
        // Predicated region
        $region37: #{tpu_custom_call.1} parent=11 // pred_check
          %p566 = pneg %p374
        $region38: #{tpu_custom_call.1} parent=11 // pred_check_branch
          %568 = sbr.rel (%p566) target = $region40
        $region39: #{tpu_custom_call.1} parent=11 // pred_region
          _
        $region40: #{tpu_custom_call.1} parent=11 // pred_fallthru
          _
        // Predicated region
        $region41: #{tpu_custom_call.1} parent=11 // pred_check
          %p569 = pneg %p395
        $region42: #{tpu_custom_call.1} parent=11 // pred_check_branch
          %571 = sbr.rel (%p569) target = $region44
        $region43: #{tpu_custom_call.1} parent=11 // pred_region
          _
        $region44: #{tpu_custom_call.1} parent=11 // pred_fallthru
          _
        // Predicated region
        $region45: #{tpu_custom_call.1} parent=11 // pred_check
          %p572 = pneg %p416
        $region46: #{tpu_custom_call.1} parent=11 // pred_check_branch
          %574 = sbr.rel (%p572) target = $region48
        $region47: #{tpu_custom_call.1} parent=11 // pred_region
          _
        $region48: #{tpu_custom_call.1} parent=11 // pred_fallthru
          _
        // Predicated region
        $region49: #{tpu_custom_call.1} parent=11 // pred_check
          %p575 = pneg %p437
        $region50: #{tpu_custom_call.1} parent=11 // pred_check_branch
          %577 = sbr.rel (%p575) target = $region52
        $region51: #{tpu_custom_call.1} parent=11 // pred_region
          _
        $region52: #{tpu_custom_call.1} parent=11 // pred_fallthru
          _
        // Predicated region
        $region53: #{tpu_custom_call.1} parent=11 // pred_check
          %p578 = pneg %p458
        $region54: #{tpu_custom_call.1} parent=11 // pred_check_branch
          %580 = sbr.rel (%p578) target = $region56
        $region55: #{tpu_custom_call.1} parent=11 // pred_region
          _
        $region56: #{tpu_custom_call.1} parent=11 // pred_fallthru
          _
        // Predicated region
        $region57: #{tpu_custom_call.1} parent=11 // pred_check
          %p581 = pneg %p479
        $region58: #{tpu_custom_call.1} parent=11 // pred_check_branch
          %583 = sbr.rel (%p581) target = $region60
        $region59: #{tpu_custom_call.1} parent=11 // pred_region
          _
        $region60: #{tpu_custom_call.1} parent=11 // pred_fallthru
          _
      $region12: #{tpu_custom_call.1} parent=5 // pred_fallthru
        _
      %p584 = scmp.lt.s32.totalorder %s33, 8
      // Predicated region
      $region61: #{tpu_custom_call.1} parent=5 // pred_check
        %p585 = pneg %p584
      $region62: #{tpu_custom_call.1} parent=5 // pred_check_branch
        %587 = sbr.rel (%p585) target = $region64
      $region63: #{tpu_custom_call.1} parent=5 // pred_region
        // Predicated region
        $region65: #{tpu_custom_call.1} parent=63 // pred_check
          %p588 = pneg %p65
        $region66: #{tpu_custom_call.1} parent=63 // pred_check_branch
          %590 = sbr.rel (%p588) target = $region68
        $region67: #{tpu_custom_call.1} parent=63 // pred_region
          %p591 = scmp.lt.s32.totalorder %s40, 1
          %s592 = scalar_select %p591, %s40, 1
          %s593 = smul.addr %s592, 8
          %s594 = scalar_lea.vmem %s0, %s593
        $region68: #{tpu_custom_call.1} parent=63 // pred_fallthru
          _
        // Predicated region
        $region69: #{tpu_custom_call.1} parent=63 // pred_check
          %p595 = pneg %p91
        $region70: #{tpu_custom_call.1} parent=63 // pred_check_branch
          %597 = sbr.rel (%p595) target = $region72
        $region71: #{tpu_custom_call.1} parent=63 // pred_region
          %p598 = scmp.lt.s32.totalorder %s40, 1
          %s599 = scalar_select %p598, %s40, 1
          %s600 = smul.addr %s599, 2
          %s601 = smul.addr %s600, 8
          %s602 = scalar_lea.vmem %s1, %s601
        $region72: #{tpu_custom_call.1} parent=63 // pred_fallthru
          _
        // Predicated region
        $region73: #{tpu_custom_call.1} parent=63 // pred_check
          %p603 = pneg %p117
        $region74: #{tpu_custom_call.1} parent=63 // pred_check_branch
          %605 = sbr.rel (%p603) target = $region76
        $region75: #{tpu_custom_call.1} parent=63 // pred_region
          %p606 = scmp.lt.s32.totalorder %s40, 1
          %s607 = scalar_select %p606, %s40, 1
          %s608 = scalar_lea.vmem %s2, %s607
        $region76: #{tpu_custom_call.1} parent=63 // pred_fallthru
          _
        // Predicated region
        $region77: #{tpu_custom_call.1} parent=63 // pred_check
          %p609 = pneg %p143
        $region78: #{tpu_custom_call.1} parent=63 // pred_check_branch
          %611 = sbr.rel (%p609) target = $region80
        $region79: #{tpu_custom_call.1} parent=63 // pred_region
          %p612 = scmp.lt.s32.totalorder %s41, 3
          %s613 = scalar_select %p612, %s41, 3
          %s614 = smul.addr %s613, 4
          %s615 = smul.addr %s614, 8
          %s616 = scalar_lea.vmem %s3, %s615
        $region80: #{tpu_custom_call.1} parent=63 // pred_fallthru
          _
        // Predicated region
        $region81: #{tpu_custom_call.1} parent=63 // pred_check
          %p617 = pneg %p169
        $region82: #{tpu_custom_call.1} parent=63 // pred_check_branch
          %619 = sbr.rel (%p617) target = $region84
        $region83: #{tpu_custom_call.1} parent=63 // pred_region
          %p620 = scmp.lt.s32.totalorder %s41, 3
          %s621 = scalar_select %p620, %s41, 3
          %s622 = smul.addr %s621, 4
          %s623 = smul.addr %s622, 8
          %s624 = scalar_lea.vmem %s4, %s623
        $region84: #{tpu_custom_call.1} parent=63 // pred_fallthru
          _
        // Predicated region
        $region85: #{tpu_custom_call.1} parent=63 // pred_check
          %p625 = pneg %p195
        $region86: #{tpu_custom_call.1} parent=63 // pred_check_branch
          %627 = sbr.rel (%p625) target = $region88
        $region87: #{tpu_custom_call.1} parent=63 // pred_region
          %p628 = scmp.lt.s32.totalorder %s41, 3
          %s629 = scalar_select %p628, %s41, 3
          %s630 = smul.addr %s629, 4
          %s631 = smul.addr %s630, 8
          %s632 = scalar_lea.vmem %s5, %s631
        $region88: #{tpu_custom_call.1} parent=63 // pred_fallthru
          _
        // Predicated region
        $region89: #{tpu_custom_call.1} parent=63 // pred_check
          %p633 = pneg %p221
        $region90: #{tpu_custom_call.1} parent=63 // pred_check_branch
          %635 = sbr.rel (%p633) target = $region92
        $region91: #{tpu_custom_call.1} parent=63 // pred_region
          %p636 = scmp.lt.s32.totalorder %s41, 3
          %s637 = scalar_select %p636, %s41, 3
          %s638 = smul.addr %s637, 8
          %s639 = scalar_lea.vmem %s6, %s638
        $region92: #{tpu_custom_call.1} parent=63 // pred_fallthru
          _
      $region64: #{tpu_custom_call.1} parent=5 // pred_fallthru
        _
      %p640 = scmp.le.s32.totalorder 1, %s33
      %p641 = scmp.lt.s32.totalorder %s33, 9
      %p642 = pnand %p640, %p641
      %p643 = pneg %p642
      // Predicated region
      $region93: #{tpu_custom_call.1} parent=5 // pred_check
        _
      $region94: #{tpu_custom_call.1} parent=5 // pred_check_branch
        %645 = sbr.rel (%p642) target = $region96
      $region95: #{tpu_custom_call.1} parent=5 // pred_region
        %s646 = ssub.s32 %s33, 1
        %p647 = scmp.lt.s32.totalorder %s42, 1
        %s648 = scalar_select %p647, %s42, 1
        %s649 = smul.addr %s648, 8
        %s650 = scalar_lea.vmem %s0, %s649
        %p651 = pneg %p71
        %p652 = pneg %p68
        %p653 = scmp.lt.s32.totalorder %s42, 1
        %s654 = scalar_select %p653, %s42, 1
        %s655 = smul.addr %s654, 2
        %s656 = smul.addr %s655, 8
        %s657 = scalar_lea.vmem %s1, %s656
        %p658 = pneg %p97
        %p659 = pneg %p94
        %p660 = scmp.lt.s32.totalorder %s42, 1
        %s661 = scalar_select %p660, %s42, 1
        %s662 = scalar_lea.vmem %s2, %s661
        %p663 = pneg %p123
        %p664 = pneg %p120
        %p665 = scmp.lt.s32.totalorder %s43, 3
        %s666 = scalar_select %p665, %s43, 3
        %s667 = smul.addr %s666, 4
        %s668 = smul.addr %s667, 8
        %s669 = scalar_lea.vmem %s3, %s668
        %p670 = pneg %p149
        %p671 = pneg %p146
        %p672 = scmp.lt.s32.totalorder %s43, 3
        %s673 = scalar_select %p672, %s43, 3
        %s674 = smul.addr %s673, 4
        %s675 = smul.addr %s674, 8
        %s676 = scalar_lea.vmem %s4, %s675
        %p677 = pneg %p175
        %p678 = pneg %p172
        %p679 = scmp.lt.s32.totalorder %s43, 3
        %s680 = scalar_select %p679, %s43, 3
        %s681 = smul.addr %s680, 4
        %s682 = smul.addr %s681, 8
        %s683 = scalar_lea.vmem %s5, %s682
        %p684 = pneg %p201
        %p685 = pneg %p198
        %p686 = scmp.lt.s32.totalorder %s43, 3
        %s687 = scalar_select %p686, %s43, 3
        %s688 = smul.addr %s687, 8
        %s689 = scalar_lea.vmem %s6, %s688
        %p690 = pneg %p227
        %p691 = pneg %p224
        %p692 = pneg %p248
        %p693 = pneg %p245
        %p694 = pneg %p269
        %p695 = pneg %p266
        %p696 = pneg %p290
        %p697 = pneg %p287
        %p698 = pneg %p311
        %p699 = pneg %p308
        %p700 = pneg %p332
        %p701 = pneg %p329
        %p702 = pneg %p353
        %p703 = pneg %p350
        %p704 = pneg %p374
        %p705 = pneg %p371
        %p706 = pneg %p395
        %p707 = pneg %p392
        %p708 = pneg %p416
        %p709 = pneg %p413
        %p710 = pneg %p437
        %p711 = pneg %p434
        %p712 = pneg %p458
        %p713 = pneg %p455
        %p714 = pneg %p479
        %p715 = pneg %p476
        %p716 = pneg %p505
        %p717 = pneg %p502
        %s718 = sand.u32 %s492, 1
        %s719 = scalar_lea.sflag [#allocation4], %s718
        %s720 = sand.u32 %s492, 1
        %s721 = smul.addr %s720, 8
        %s722 = scalar_lea.vmem [#allocation3], %s721
        %p723 = pneg %p533
        %p724 = pneg %p530
        %s725 = sand.u32 %s520, 1
        %s726 = scalar_lea.sflag [#allocation6], %s725
        %s727 = sand.u32 %s520, 1
        %s728 = smul.addr %s727, 8
        %s729 = scalar_lea.vmem [#allocation5], %s728
        %p730 = scmp.lt.s32.totalorder %s42, 1
        %s731 = scalar_select %p730, %s42, 1
        %s732 = smul.addr %s731, 8
        %s733 = scalar_lea.vmem %s0, %s732
        %p734 = scmp.lt.s32.totalorder %s42, 1
        %s735 = scalar_select %p734, %s42, 1
        %s736 = smul.addr %s735, 2
        %s737 = smul.addr %s736, 8
        %s738 = scalar_lea.vmem %s1, %s737
        %p739 = scmp.lt.s32.totalorder %s42, 1
        %s740 = scalar_select %p739, %s42, 1
        %s741 = scalar_lea.vmem %s2, %s740
        %p742 = scmp.lt.s32.totalorder %s43, 3
        %s743 = scalar_select %p742, %s43, 3
        %s744 = smul.addr %s743, 4
        %s745 = smul.addr %s744, 8
        %s746 = scalar_lea.vmem %s3, %s745
        %p747 = scmp.lt.s32.totalorder %s43, 3
        %s748 = scalar_select %p747, %s43, 3
        %s749 = smul.addr %s748, 4
        %s750 = smul.addr %s749, 8
        %s751 = scalar_lea.vmem %s4, %s750
        %p752 = scmp.lt.s32.totalorder %s43, 3
        %s753 = scalar_select %p752, %s43, 3
        %s754 = smul.addr %s753, 4
        %s755 = smul.addr %s754, 8
        %s756 = scalar_lea.vmem %s5, %s755
        %p757 = scmp.lt.s32.totalorder %s43, 3
        %s758 = scalar_select %p757, %s43, 3
        %s759 = smul.addr %s758, 8
        %s760 = scalar_lea.vmem %s6, %s759
        %v761 = vld [vmem:[%s733] sm:$0xff]
        %v762 = vld [vmem:[%s738] sm:$0xff]
        %v763 = vld [vmem:[%s738 + $0x8] sm:$0xff]
        %v764 = vld [vmem:[%s746] sm:$0xff]
        %v765 = vld [vmem:[%s746 + $0x8] sm:$0xff]
        %v766 = vld [vmem:[%s746 + $0x10] sm:$0xff]
        %v767 = vld [vmem:[%s746 + $0x18] sm:$0xff]
        %vm768 = vcmask 261120
        %v770 = vsel %vm768, %v761, 0
        %772 = vmatpush.msra.mxu0 0.0
        %773 = vmatpush.msra.mxu0 0.0
        %774 = vmatpush.msra.mxu0 0.0
        %775 = vmatpush.msra.mxu0 0.0
        %776 = vmatpush.msra.mxu0 0.0
        %777 = vmatpush.msra.mxu0 0.0
        %778 = vmatpush.msra.mxu0 0.0
        %779 = vmatpush.msra.mxu0 0.0
        %780 = vmatpush.msra.mxu0 0.0
        %781 = vmatpush.msra.mxu0 0.0
        %782 = vmatpush.msra.mxu0 0.0
        %783 = vmatpush.msra.mxu0 0.0
        %784 = vmatpush.msra.mxu0 %v767
        %785 = vmatpush.msra.mxu0 %v766
        %786 = vmatpush.msra.mxu0 %v765
        %787 = vmatpush.msra.mxu0 %v764
        %788 = vmatmul.f32.gmra.mxu0 %v770
        %v789 = vpop.f32.mrf.mxu0
        %v790 = vadd.f32 0.0, %v789
        %791 = vdwg.mxu0
        %v792 = vmul.f32 %v790, 0.35355338
        %v793 = vld [vmem:[%s751] sm:$0xff]
        %v794 = vld [vmem:[%s751 + $0x8] sm:$0xff]
        %v795 = vld [vmem:[%s751 + $0x10] sm:$0xff]
        %v796 = vld [vmem:[%s751 + $0x18] sm:$0xff]
        %v798 = vsel %vm768, %v762, 0
        %v801 = vsel %vm768, %v763, 0
        %803 = vmatpush.msra.mxu0 0.0
        %804 = vmatpush.msra.mxu0 0.0
        %805 = vmatpush.msra.mxu0 0.0
        %806 = vmatpush.msra.mxu0 0.0
        %807 = vmatpush.msra.mxu0 0.0
        %808 = vmatpush.msra.mxu0 0.0
        %809 = vmatpush.msra.mxu0 0.0
        %810 = vmatpush.msra.mxu0 0.0
        %811 = vmatpush.msra.mxu0 0.0
        %812 = vmatpush.msra.mxu0 0.0
        %813 = vmatpush.msra.mxu0 0.0
        %814 = vmatpush.msra.mxu0 0.0
        %815 = vmatpush.msra.mxu0 %v796
        %816 = vmatpush.msra.mxu0 %v795
        %817 = vmatpush.msra.mxu0 %v794
        %818 = vmatpush.msra.mxu0 %v793
        %819 = vmatmul.f32.gmra.mxu0 %v798
        %v820 = vpop.f32.mrf.mxu0
        %v821 = vadd.f32 0.0, %v820
        %822 = vmatmul.f32.gmra.mxu0 %v801
        %v823 = vpop.f32.mrf.mxu0
        %v824 = vadd.f32 0.0, %v823
        %825 = vdwg.mxu0
        %v826 = vld [vmem:[%s756] sm:$0xff]
        %v827 = vld [vmem:[%s756 + $0x8] sm:$0xff]
        %v828 = vld [vmem:[%s756 + $0x10] sm:$0xff]
        %v829 = vld [vmem:[%s756 + $0x18] sm:$0xff]
        %830 = vmatpush.msra.mxu0 0.0
        %831 = vmatpush.msra.mxu0 0.0
        %832 = vmatpush.msra.mxu0 0.0
        %833 = vmatpush.msra.mxu0 0.0
        %834 = vmatpush.msra.mxu0 0.0
        %835 = vmatpush.msra.mxu0 0.0
        %836 = vmatpush.msra.mxu0 0.0
        %837 = vmatpush.msra.mxu0 0.0
        %838 = vmatpush.msra.mxu0 0.0
        %839 = vmatpush.msra.mxu0 0.0
        %840 = vmatpush.msra.mxu0 0.0
        %841 = vmatpush.msra.mxu0 0.0
        %842 = vmatpush.msra.mxu0 %v829
        %843 = vmatpush.msra.mxu0 %v828
        %844 = vmatpush.msra.mxu0 %v827
        %845 = vmatpush.msra.mxu0 %v826
        %846 = vmatmul.f32.gmra.mxu0 %v798
        %v847 = vpop.f32.mrf.mxu0
        %v848 = vadd.f32 0.0, %v847
        %849 = vmatmul.f32.gmra.mxu0 %v801
        %v850 = vpop.f32.mrf.mxu0
        %v851 = vadd.f32 0.0, %v850
        %852 = vdwg.mxu0
        %v853 = vld [vmem:[%s741] sm:$0x1]
        %vm854 = vcmp.eq.f32.partialorder %v853, 0.0
        %v855 = vsel %vm854, -1e+09, 0.0
        %v857 = vperm.slane %v855, 0
        %vm859 = vcmask 64512
        %v861 = vsel %vm859, %v792, 0
        %v864 = vsel %vm859, %v821, 0
        %v867 = vsel %vm859, %v824, 0
        %869 = vmatpush.xpose.msra.mxu0 0.0
        %870 = vmatpush.xpose.msra.mxu0 0.0
        %871 = vmatpush.xpose.msra.mxu0 0.0
        %872 = vmatpush.xpose.msra.mxu0 0.0
        %873 = vmatpush.xpose.msra.mxu0 0.0
        %874 = vmatpush.xpose.msra.mxu0 0.0
        %875 = vmatpush.xpose.msra.mxu0 0.0
        %876 = vmatpush.xpose.msra.mxu0 0.0
        %877 = vmatpush.xpose.msra.mxu0 0.0
        %878 = vmatpush.xpose.msra.mxu0 0.0
        %879 = vmatpush.xpose.msra.mxu0 0.0
        %880 = vmatpush.xpose.msra.mxu0 0.0
        %881 = vmatpush.xpose.msra.mxu0 0.0
        %882 = vmatpush.xpose.msra.mxu0 0.0
        %883 = vmatpush.xpose.msra.mxu0 %v867
        %884 = vmatpush.xpose.msra.mxu0 %v864
        %885 = vmatmul.f32.gmra.mxu0 %v861
        %v886 = vpop.f32.mrf.mxu0
        %v887 = vadd.f32 %v857, %v886
        %888 = vdwg.mxu0
        %vm889 = vcmask 130048
        %v890 = vsel %vm889, %v887, -inf
        %891 = vmax.xlane.f32.xlu0 %v890
        %v892 = vpop.xlane.xlu0 %891
        %v893 = vsub.f32 %v887, %v892
        %v894 = vmul.f32 %v893, 1.442695
        %v895 = vpow.pop %v894
        %v896 = vsel %vm889, %v895, 0.0
        %897 = vadd.xlane.f32.xlu0 %v896
        %v898 = vpop.xlane.xlu0 %897
        %v899 = vrcp.pop %v898
        %v900 = vmul.f32 %v898, %v899
        %v901 = vsub.f32 2.0, %v900
        %v902 = vmul.f32 %v899, %v901
        %v903 = vmul.f32 %v895, %v902
        %904 = vst.msk [vmem:[%s729] sm:$0xff] %vm889, %v903
        %v906 = vsel %vm889, %v903, 0
        %908 = vmatpush.msra.mxu0 0.0
        %909 = vmatpush.msra.mxu0 0.0
        %910 = vmatpush.msra.mxu0 0.0
        %911 = vmatpush.msra.mxu0 0.0
        %912 = vmatpush.msra.mxu0 0.0
        %913 = vmatpush.msra.mxu0 0.0
        %914 = vmatpush.msra.mxu0 0.0
        %915 = vmatpush.msra.mxu0 0.0
        %916 = vmatpush.msra.mxu0 0.0
        %917 = vmatpush.msra.mxu0 0.0
        %918 = vmatpush.msra.mxu0 0.0
        %919 = vmatpush.msra.mxu0 0.0
        %920 = vmatpush.msra.mxu0 0.0
        %921 = vmatpush.msra.mxu0 0.0
        %922 = vmatpush.msra.mxu0 %v851
        %923 = vmatpush.msra.mxu0 %v848
        %924 = vmatmul.f32.gmra.mxu0 %v906
        %v925 = vpop.f32.mrf.mxu0
        %v926 = vadd.f32 0.0, %v925
        %927 = vdwg.mxu0
        %p928 = scmp.eq.s32.totalorder %s43, 0
        // Predicated region
        $region97: #{tpu_custom_call.1} parent=95 // pred_check
          %p929 = pneg %p928
        $region98: #{tpu_custom_call.1} parent=95 // pred_check_branch
          %931 = sbr.rel (%p929) target = $region100
        $region99: #{tpu_custom_call.1} parent=95 // pred_region
          %932 = vst.msk [vmem:[#allocation2] sm:$0xff] %vm768, 0.0
        $region100: #{tpu_custom_call.1} parent=95 // pred_fallthru
          _
        %v933 = vld [vmem:[#allocation2] sm:$0xff]
        %v934 = vld [vmem:[%s760] sm:$0xff]
        %v936 = vsel %vm859, %v926, 0
        %938 = vmatpush.msra.mxu0 0.0
        %939 = vmatpush.msra.mxu0 0.0
        %940 = vmatpush.msra.mxu0 0.0
        %941 = vmatpush.msra.mxu0 0.0
        %942 = vmatpush.msra.mxu0 0.0
        %943 = vmatpush.msra.mxu0 0.0
        %944 = vmatpush.msra.mxu0 0.0
        %945 = vmatpush.msra.mxu0 0.0
        %946 = vmatpush.msra.mxu0 0.0
        %947 = vmatpush.msra.mxu0 0.0
        %948 = vmatpush.msra.mxu0 0.0
        %949 = vmatpush.msra.mxu0 0.0
        %950 = vmatpush.msra.mxu0 0.0
        %951 = vmatpush.msra.mxu0 0.0
        %952 = vmatpush.msra.mxu0 0.0
        %953 = vmatpush.msra.mxu0 %v934
        %954 = vmatmul.f32.gmra.mxu0 %v936
        %v955 = vpop.f32.mrf.mxu0
        %v956 = vadd.f32 0.0, %v955
        %957 = vdwg.mxu0
        %v958 = vadd.f32 %v933, %v956
        %959 = vst.msk [vmem:[#allocation2] sm:$0xff] %vm768, %v958
        %p960 = scmp.eq.s32.totalorder %s43, 3
        // Predicated region
        $region101: #{tpu_custom_call.1} parent=95 // pred_check
          %p961 = pneg %p960
        $region102: #{tpu_custom_call.1} parent=95 // pred_check_branch
          %963 = sbr.rel (%p961) target = $region104
        $region103: #{tpu_custom_call.1} parent=95 // pred_region
          %v964 = vld [vmem:[#allocation2] sm:$0xff]
          %v965 = vadd.f32 %v964, %v761
          %v966 = vld [vmem:[%s7] sm:$0x1]
          %v967 = vld [vmem:[%s8] sm:$0x1]
          %v968 = vsel %vm768, %v965, 0.0
          %969 = vadd.xlane.f32.xlu0 %v968
          %v970 = vpop.xlane.xlu0 %969
          %v971 = vrcp.pop 32.0
          %v972 = vmul.f32 32.0, %v971
          %v973 = vsub.f32 1.0, %v972
          %v974 = vmul.f32 %v971, %v973
          %v975 = vadd.f32 %v971, %v974
          %vm976 = vweird.f32 %v971
          %v977 = vsel %vm976, %v971, %v975
          %v978 = vmul.f32 %v970, %v977
          %v979 = vsub.f32 %v965, %v978
          %v980 = vmul.f32 %v979, %v979
          %v981 = vsel %vm768, %v980, 0.0
          %982 = vadd.xlane.f32.xlu0 %v981
          %v983 = vpop.xlane.xlu0 %982
          %v984 = vmul.f32 %v983, %v977
          %v985 = vadd.f32 %v984, 1e-06
          %v986 = vrsqrt.pop %v985
          %v987 = vmul.f32 %v986, %v985
          %v988 = vmul.f32 %v987, %v986
          %v989 = vmul.f32 0.5, %v988
          %v990 = vsub.f32 1.5, %v989
          %v991 = vmul.f32 %v986, %v990
          %vm992 = vweird.f32 %v985
          %vm993 = vweird.f32 %v986
          %vm994 = vmor %vm992, %vm993
          %v995 = vsel %vm994, %v986, %v991
          %v996 = vmul.f32 %v979, %v995
          %v998 = vperm.slane %v966, 0
          %v1000 = vmul.f32 %v996, %v998
          %v1002 = vperm.slane %v967, 0
          %v1004 = vadd.f32 %v1000, %v1002
          %v1005 = vld [vmem:[%s9] sm:$0x1]
          %v1006 = vld [vmem:[%s10] sm:$0x1]
          %v1007 = vsel %vm768, %v1004, 0.0
          %1008 = vadd.xlane.f32.xlu0 %v1007
          %v1009 = vpop.xlane.xlu0 %1008
          %v1010 = vmul.f32 %v1009, %v977
          %v1011 = vsub.f32 %v1004, %v1010
          %v1012 = vmul.f32 %v1011, %v1011
          %v1013 = vsel %vm768, %v1012, 0.0
          %1014 = vadd.xlane.f32.xlu0 %v1013
          %v1015 = vpop.xlane.xlu0 %1014
          %v1016 = vmul.f32 %v1015, %v977
          %v1017 = vadd.f32 %v1016, 1e-06
          %v1018 = vrsqrt.pop %v1017
          %v1019 = vmul.f32 %v1018, %v1017
          %v1020 = vmul.f32 %v1019, %v1018
          %v1021 = vmul.f32 0.5, %v1020
          %v1022 = vsub.f32 1.5, %v1021
          %v1023 = vmul.f32 %v1018, %v1022
          %vm1024 = vweird.f32 %v1017
          %vm1025 = vweird.f32 %v1018
          %vm1026 = vmor %vm1024, %vm1025
          %v1027 = vsel %vm1026, %v1018, %v1023
          %v1028 = vmul.f32 %v1011, %v1027
          %v1030 = vperm.slane %v1005, 0
          %v1032 = vmul.f32 %v1028, %v1030
          %v1034 = vperm.slane %v1006, 0
          %v1036 = vadd.f32 %v1032, %v1034
          %v1037 = vld [vmem:[%s11] sm:$0xff]
          %v1038 = vld [vmem:[%s11 + $0x8] sm:$0xff]
          %v1039 = vld [vmem:[%s11 + $0x10] sm:$0xff]
          %v1040 = vld [vmem:[%s11 + $0x18] sm:$0xff]
          %v1041 = vld [vmem:[%s12] sm:$0x1]
          %v1043 = vperm.slane %v1041, 0
          %v1046 = vsel %vm768, %v1036, 0
          %1048 = vmatpush.msra.mxu0 0.0
          %1049 = vmatpush.msra.mxu0 0.0
          %1050 = vmatpush.msra.mxu0 0.0
          %1051 = vmatpush.msra.mxu0 0.0
          %1052 = vmatpush.msra.mxu0 0.0
          %1053 = vmatpush.msra.mxu0 0.0
          %1054 = vmatpush.msra.mxu0 0.0
          %1055 = vmatpush.msra.mxu0 0.0
          %1056 = vmatpush.msra.mxu0 0.0
          %1057 = vmatpush.msra.mxu0 0.0
          %1058 = vmatpush.msra.mxu0 0.0
          %1059 = vmatpush.msra.mxu0 0.0
          %1060 = vmatpush.msra.mxu0 %v1040
          %1061 = vmatpush.msra.mxu0 %v1039
          %1062 = vmatpush.msra.mxu0 %v1038
          %1063 = vmatpush.msra.mxu0 %v1037
          %1064 = vmatmul.f32.gmra.mxu0 %v1046
          %v1065 = vpop.f32.mrf.mxu0
          %v1066 = vadd.f32 %v1043, %v1065
          %1067 = vdwg.mxu0
          %v1068 = vmax.f32 %v1066, 0.0
          %v1069 = vld [vmem:[%s13] sm:$0xff]
          %v1070 = vld [vmem:[%s13 + $0x8] sm:$0xff]
          %v1071 = vld [vmem:[%s13 + $0x10] sm:$0xff]
          %v1072 = vld [vmem:[%s13 + $0x18] sm:$0xff]
          %v1073 = vld [vmem:[%s13 + $0x20] sm:$0xff]
          %v1074 = vld [vmem:[%s13 + $0x28] sm:$0xff]
          %v1075 = vld [vmem:[%s13 + $0x30] sm:$0xff]
          %v1076 = vld [vmem:[%s13 + $0x38] sm:$0xff]
          %v1077 = vld [vmem:[%s14] sm:$0x1]
          %v1079 = vperm.slane %v1077, 0
          %vm1081 = vcmask 523264
          %v1083 = vsel %vm1081, %v1068, 0
          %1085 = vmatpush.msra.mxu0 0.0
          %1086 = vmatpush.msra.mxu0 0.0
          %1087 = vmatpush.msra.mxu0 0.0
          %1088 = vmatpush.msra.mxu0 0.0
          %1089 = vmatpush.msra.mxu0 0.0
          %1090 = vmatpush.msra.mxu0 0.0
          %1091 = vmatpush.msra.mxu0 0.0
          %1092 = vmatpush.msra.mxu0 0.0
          %1093 = vmatpush.msra.mxu0 %v1076
          %1094 = vmatpush.msra.mxu0 %v1075
          %1095 = vmatpush.msra.mxu0 %v1074
          %1096 = vmatpush.msra.mxu0 %v1073
          %1097 = vmatpush.msra.mxu0 %v1072
          %1098 = vmatpush.msra.mxu0 %v1071
          %1099 = vmatpush.msra.mxu0 %v1070
          %1100 = vmatpush.msra.mxu0 %v1069
          %1101 = vmatmul.f32.gmra.mxu0 %v1083
          %v1102 = vpop.f32.mrf.mxu0
          %v1103 = vadd.f32 %v1079, %v1102
          %1104 = vdwg.mxu0
          %v1105 = vadd.f32 %v1103, %v1036
          %v1106 = vld [vmem:[%s15] sm:$0x1]
          %v1107 = vld [vmem:[%s16] sm:$0x1]
          %v1108 = vsel %vm768, %v1105, 0.0
          %1109 = vadd.xlane.f32.xlu0 %v1108
          %v1110 = vpop.xlane.xlu0 %1109
          %v1111 = vmul.f32 %v1110, %v977
          %v1112 = vsub.f32 %v1105, %v1111
          %v1113 = vmul.f32 %v1112, %v1112
          %v1114 = vsel %vm768, %v1113, 0.0
          %1115 = vadd.xlane.f32.xlu0 %v1114
          %v1116 = vpop.xlane.xlu0 %1115
          %v1117 = vmul.f32 %v1116, %v977
          %v1118 = vadd.f32 %v1117, 1e-06
          %v1119 = vrsqrt.pop %v1118
          %v1120 = vmul.f32 %v1119, %v1118
          %v1121 = vmul.f32 %v1120, %v1119
          %v1122 = vmul.f32 0.5, %v1121
          %v1123 = vsub.f32 1.5, %v1122
          %v1124 = vmul.f32 %v1119, %v1123
          %vm1125 = vweird.f32 %v1118
          %vm1126 = vweird.f32 %v1119
          %vm1127 = vmor %vm1125, %vm1126
          %v1128 = vsel %vm1127, %v1119, %v1124
          %v1129 = vmul.f32 %v1112, %v1128
          %v1131 = vperm.slane %v1106, 0
          %v1133 = vmul.f32 %v1129, %v1131
          %v1135 = vperm.slane %v1107, 0
          %v1137 = vadd.f32 %v1133, %v1135
          %v1138 = vld [vmem:[%s17] sm:$0x1]
          %v1139 = vld [vmem:[%s18] sm:$0x1]
          %v1140 = vsel %vm768, %v1137, 0.0
          %1141 = vadd.xlane.f32.xlu0 %v1140
          %v1142 = vpop.xlane.xlu0 %1141
          %v1143 = vmul.f32 %v1142, %v977
          %v1144 = vsub.f32 %v1137, %v1143
          %v1145 = vmul.f32 %v1144, %v1144
          %v1146 = vsel %vm768, %v1145, 0.0
          %1147 = vadd.xlane.f32.xlu0 %v1146
          %v1148 = vpop.xlane.xlu0 %1147
          %v1149 = vmul.f32 %v1148, %v977
          %v1150 = vadd.f32 %v1149, 1e-06
          %v1151 = vrsqrt.pop %v1150
          %v1152 = vmul.f32 %v1151, %v1150
          %v1153 = vmul.f32 %v1152, %v1151
          %v1154 = vmul.f32 0.5, %v1153
          %v1155 = vsub.f32 1.5, %v1154
          %v1156 = vmul.f32 %v1151, %v1155
          %vm1157 = vweird.f32 %v1150
          %vm1158 = vweird.f32 %v1151
          %vm1159 = vmor %vm1157, %vm1158
          %v1160 = vsel %vm1159, %v1151, %v1156
          %v1161 = vmul.f32 %v1144, %v1160
          %v1163 = vperm.slane %v1138, 0
          %v1165 = vmul.f32 %v1161, %v1163
          %v1167 = vperm.slane %v1139, 0
          %v1169 = vadd.f32 %v1165, %v1167
          %1170 = vst.msk [vmem:[%s722] sm:$0xff] %vm768, %v1169
        $region104: #{tpu_custom_call.1} parent=95 // pred_fallthru
          _
        %s1171 = sand.u32 %s492, 1
        %s1172 = scalar_lea.sflag [#allocation4], %s1171
        %s1173 = sand.u32 %s492, 1
        %s1174 = smul.addr %s1173, 8
        %s1175 = scalar_lea.vmem [#allocation3], %s1174
        %s1176 = sand.u32 %s520, 1
        %s1177 = scalar_lea.sflag [#allocation6], %s1176
        %s1178 = sand.u32 %s520, 1
        %s1179 = smul.addr %s1178, 8
        %s1180 = scalar_lea.vmem [#allocation5], %s1179
        // Predicated region
        $region105: #{tpu_custom_call.1} parent=95 // pred_check
          %p1181 = pneg %p502
        $region106: #{tpu_custom_call.1} parent=95 // pred_check_branch
          %1183 = sbr.rel (%p1181) target = $region108
        $region107: #{tpu_custom_call.1} parent=95 // pred_region
          %1185 = vsyncadd %s1172, 0
          %s1186 = smul.addr %s42, 8
          %s1187 = scalar_lea.hbm %s19, %s1186
          %s1189 = sshll.u32 %s1175, 4
          %s1190 = int_to_ptr.vmem [resolvable:$true] %s1189
          %s1191 = sshll.u32 %s1187, 4
          %s1192 = int_to_ptr.hbm [resolvable:$true] %s1191
          %1194 = dma.vmem_to_hbm [thread:$0]  %s1190, 128, %s1192, %s1172
        $region108: #{tpu_custom_call.1} parent=95 // pred_fallthru
          _
        // Predicated region
        $region109: #{tpu_custom_call.1} parent=95 // pred_check
          %p1195 = pneg %p530
        $region110: #{tpu_custom_call.1} parent=95 // pred_check_branch
          %1197 = sbr.rel (%p1195) target = $region112
        $region111: #{tpu_custom_call.1} parent=95 // pred_region
          %1199 = vsyncadd %s1177, 0
          %s1200 = smul.addr %s42, 4
          %s1201 = sadd.s32 %s43, %s1200
          %s1202 = smul.addr %s1201, 8
          %s1203 = scalar_lea.hbm %s20, %s1202
          %s1205 = sshll.u32 %s1180, 4
          %s1206 = int_to_ptr.vmem [resolvable:$true] %s1205
          %s1207 = sshll.u32 %s1203, 4
          %s1208 = int_to_ptr.hbm [resolvable:$true] %s1207
          %1210 = dma.vmem_to_hbm [thread:$0]  %s1206, 128, %s1208, %s1177
        $region112: #{tpu_custom_call.1} parent=95 // pred_fallthru
          _
      $region96: #{tpu_custom_call.1} parent=5 // pred_fallthru
        _
      %p1211 = scmp.le.s32.totalorder 2, %s33
      // Predicated region
      $region113: #{tpu_custom_call.1} parent=5 // pred_check
        %p1212 = pneg %p1211
      $region114: #{tpu_custom_call.1} parent=5 // pred_check_branch
        %1214 = sbr.rel (%p1212) target = $region116
      $region115: #{tpu_custom_call.1} parent=5 // pred_region
        %s1215 = ssub.s32 %s33, 2
        // Predicated region
        $region117: #{tpu_custom_call.1} parent=115 // pred_check
          %p1216 = pneg %p508
        $region118: #{tpu_custom_call.1} parent=115 // pred_check_branch
          %1218 = sbr.rel (%p1216) target = $region120
        $region119: #{tpu_custom_call.1} parent=115 // pred_region
          %s1219 = sand.u32 %s493, 1
          %s1220 = scalar_lea.sflag [#allocation4], %s1219
          %s1221 = sand.u32 %s493, 1
          %s1222 = smul.addr %s1221, 8
          %s1223 = scalar_lea.vmem [#allocation3], %s1222
          %1225 = dma.done %s1220, 128
        $region120: #{tpu_custom_call.1} parent=115 // pred_fallthru
          _
        // Predicated region
        $region121: #{tpu_custom_call.1} parent=115 // pred_check
          %p1226 = pneg %p536
        $region122: #{tpu_custom_call.1} parent=115 // pred_check_branch
          %1228 = sbr.rel (%p1226) target = $region124
        $region123: #{tpu_custom_call.1} parent=115 // pred_region
          %s1229 = sand.u32 %s521, 1
          %s1230 = scalar_lea.sflag [#allocation6], %s1229
          %s1231 = sand.u32 %s521, 1
          %s1232 = smul.addr %s1231, 8
          %s1233 = scalar_lea.vmem [#allocation5], %s1232
          %1235 = dma.done %s1230, 128
        $region124: #{tpu_custom_call.1} parent=115 // pred_fallthru
          _
      $region116: #{tpu_custom_call.1} parent=5 // pred_fallthru
        _
    $region6: #{tpu_custom_call.1} parent=1 // loop_footer
      %s37 = sadd.s32 1, %s33
    $region7: #{tpu_custom_call.1} parent=1 // loop_footer_branch
      %32 = sbr.rel target = $region3
    $region8: #{tpu_custom_call.1} parent=1 // loop_exit
      _
    %1236 = vsyncpa [#allocation4], 1
    %s1237 = scalar_lea.sflag [#allocation4], 1
    %1238 = vsyncpa %s1237, 1
    %1239 = vsyncpa [#allocation6], 1
    %s1240 = scalar_lea.sflag [#allocation6], 1
    %1241 = vsyncpa %s1240, 1

// kernel: tpu_custom_call.1
$region0: #{tpu_custom_call.1}
  #allocation0 [shape = 'u32[]', space=smem, size = 0x4, offset = 0x4, fixed_abs, tag = 'smem constant byte address 0x4 - core index']
  #allocation1 [shape = 'u32[72,128]{1,0:T(1,128)}', space=vmem, size = 0x9000, scoped, tag = 'internal scratch']
  #allocation2 [shape = 'f32[8,32]{1,0:T(8,128)}', space=vmem, size = 0x1000, scoped, tag = 'scratch operand']
  %s0 = inlined_call_operand.vmem [shape: f32[2,8,32], index: 0, kind: input, shape index: {}]
  %s1 = inlined_call_operand.vmem [shape: f32[2,16,32], index: 1, kind: input, shape index: {}]
  %s2 = inlined_call_operand.vmem [shape: f32[2,1,16], index: 2, kind: input, shape index: {}]
  %s3 = inlined_call_operand.vmem [shape: f32[4,32,8], index: 3, kind: input, shape index: {}]
  %s4 = inlined_call_operand.vmem [shape: f32[4,32,8], index: 4, kind: input, shape index: {}]
  %s5 = inlined_call_operand.vmem [shape: f32[4,32,8], index: 5, kind: input, shape index: {}]
  %s6 = inlined_call_operand.vmem [shape: f32[4,8,32], index: 6, kind: input, shape index: {}]
  %s7 = inlined_call_operand.vmem [shape: f32[1,32], index: 7, kind: input, shape index: {}]
  %s8 = inlined_call_operand.vmem [shape: f32[1,32], index: 8, kind: input, shape index: {}]
  %s9 = inlined_call_operand.vmem [shape: f32[1,32], index: 9, kind: input, shape index: {}]
  %s10 = inlined_call_operand.vmem [shape: f32[1,32], index: 10, kind: input, shape index: {}]
  %s11 = inlined_call_operand.vmem [shape: f32[32,64], index: 11, kind: input, shape index: {}]
  %s12 = inlined_call_operand.vmem [shape: f32[1,64], index: 12, kind: input, shape index: {}]
  %s13 = inlined_call_operand.vmem [shape: f32[64,32], index: 13, kind: input, shape index: {}]
  %s14 = inlined_call_operand.vmem [shape: f32[1,32], index: 14, kind: input, shape index: {}]
  %s15 = inlined_call_operand.vmem [shape: f32[1,32], index: 15, kind: input, shape index: {}]
  %s16 = inlined_call_operand.vmem [shape: f32[1,32], index: 16, kind: input, shape index: {}]
  %s17 = inlined_call_operand.vmem [shape: f32[1,32], index: 17, kind: input, shape index: {}]
  %s18 = inlined_call_operand.vmem [shape: f32[1,32], index: 18, kind: input, shape index: {}]
  %s19 = inlined_call_operand.hbm [shape: f32[2,8,32], index: 19, kind: output, shape index: {0}]
  %s20 = inlined_call_operand.hbm [shape: f32[2,4,8,16], index: 20, kind: output, shape index: {1}]
  %21 = xla_tuple %s19, %s20
  %s22 = sld [smem:[#allocation0]]
  $region125: #{tpu_custom_call.1} parent=0
    _
  %s24 = ssub.s32 1, %s22
  %s25 = scalar_select 0, %s24, %s22
  $region1: #{tpu_custom_call.1} parent=0
    #allocation3 [shape = 'u8[8192]{0}', space=vmem, size = 0x2000, scoped, tag = 'output window, operand 0']
    #allocation4 [shape = 's32[2]{0}', space=sflag, size = 0x8, scoped, tag = 'scoped memory for tpu_custom_call.1']
    #allocation5 [shape = 'u8[8192]{0}', space=vmem, size = 0x2000, scoped, tag = 'output window, operand 1']
    #allocation6 [shape = 's32[2]{0}', space=sflag, size = 0x8, scoped, tag = 'scoped memory for tpu_custom_call.1']
    %26 = vsyncpa [#allocation4], 0
    %s27 = scalar_lea.sflag [#allocation4], 1
    %28 = vsyncpa %s27, 0
    %29 = vsyncpa [#allocation6], 0
    %s30 = scalar_lea.sflag [#allocation6], 1
    %31 = vsyncpa %s30, 0
    loop: start=0, step=1, limit=10
    $region2: #{tpu_custom_call.1} parent=1 // loop_pre_header
      _
    $region3: #{tpu_custom_call.1} parent=1 // loop_header
      %s33 = sphi 0, %s37
      %p34 = scmp.ge.s32.totalorder %s33, 10
      %s40 = sphi 0, %s52
      %s41 = sphi 0, %s48
      %s42 = sphi 0, %s40
      %s43 = sphi 0, %s41
      %s44 = sphi 0, %s42
      %s45 = sphi 0, %s43
      %s55 = sphi 0, %s57
      %s58 = sphi 0, %s55
      %s59 = sphi 0, %s58
      %s75 = sphi 0, %s59
      %s81 = sphi 0, %s83
      %s84 = sphi 0, %s81
      %s85 = sphi 0, %s84
      %s101 = sphi 0, %s85
      %s107 = sphi 0, %s109
      %s110 = sphi 0, %s107
      %s111 = sphi 0, %s110
      %s127 = sphi 0, %s111
      %s133 = sphi 0, %s135
      %s136 = sphi 0, %s133
      %s137 = sphi 0, %s136
      %s153 = sphi 0, %s137
      %s159 = sphi 0, %s161
      %s162 = sphi 0, %s159
      %s163 = sphi 0, %s162
      %s179 = sphi 0, %s163
      %s185 = sphi 0, %s187
      %s188 = sphi 0, %s185
      %s189 = sphi 0, %s188
      %s205 = sphi 0, %s189
      %s211 = sphi 0, %s213
      %s214 = sphi 0, %s211
      %s215 = sphi 0, %s214
      %s231 = sphi 0, %s215
      %s235 = sphi 0, %s235
      %s237 = sphi 0, %s235
      %s238 = sphi 0, %s237
      %s252 = sphi 0, %s238
      %s256 = sphi 0, %s256
      %s258 = sphi 0, %s256
      %s259 = sphi 0, %s258
      %s273 = sphi 0, %s259
      %s277 = sphi 0, %s277
      %s279 = sphi 0, %s277
      %s280 = sphi 0, %s279
      %s294 = sphi 0, %s280
      %s298 = sphi 0, %s298
      %s300 = sphi 0, %s298
      %s301 = sphi 0, %s300
      %s315 = sphi 0, %s301
      %s319 = sphi 0, %s319
      %s321 = sphi 0, %s319
      %s322 = sphi 0, %s321
      %s336 = sphi 0, %s322
      %s340 = sphi 0, %s340
      %s342 = sphi 0, %s340
      %s343 = sphi 0, %s342
      %s357 = sphi 0, %s343
      %s361 = sphi 0, %s361
      %s363 = sphi 0, %s361
      %s364 = sphi 0, %s363
      %s378 = sphi 0, %s364
      %s382 = sphi 0, %s382
      %s384 = sphi 0, %s382
      %s385 = sphi 0, %s384
      %s399 = sphi 0, %s385
      %s403 = sphi 0, %s403
      %s405 = sphi 0, %s403
      %s406 = sphi 0, %s405
      %s420 = sphi 0, %s406
      %s424 = sphi 0, %s424
      %s426 = sphi 0, %s424
      %s427 = sphi 0, %s426
      %s441 = sphi 0, %s427
      %s445 = sphi 0, %s445
      %s447 = sphi 0, %s445
      %s448 = sphi 0, %s447
      %s462 = sphi 0, %s448
      %s466 = sphi 0, %s466
      %s468 = sphi 0, %s466
      %s469 = sphi 0, %s468
      %s483 = sphi 0, %s469
      %s489 = sphi 0, %s491
      %s492 = sphi 0, %s489
      %s493 = sphi 0, %s492
      %s509 = sphi 0, %s493
      %s517 = sphi 0, %s519
      %s520 = sphi 0, %s517
      %s521 = sphi 0, %s520
      %s537 = sphi 0, %s521
    $region4: #{tpu_custom_call.1} parent=1 // loop_header_branch
      %36 = sbr.rel (%p34) target = $region8
    $region5: #{tpu_custom_call.1} parent=1 // loop_body
      %s38 = ssub.s32 %s33, 1
      %s39 = ssub.s32 %s33, 2
      %s46 = sadd.s32 1, %s41
      %p47 = scmp.ge.s32.totalorder %s46, 4
      %s48 = scalar_select %p47, 0, %s46
      %s49 = sadd.s32 1, %s40
      %s50 = scalar_select %p47, %s49, %s40
      %p51 = scmp.ge.s32.totalorder %s50, 2
      %s52 = scalar_select %p51, 0, %s50
      %s53 = ssub.s32 %s40, %s52
      %p54 = scmp.eq.s32.totalorder %s53, 0
      %s56 = sadd.s32 %s55, 1
      %s57 = scalar_select %p54, %s55, %s56
      %p60 = pneg %p54
      %p61 = scmp.eq.s32.totalorder %s33, 7
      %p62 = por %p60, %p61
      %p63 = scmp.ne.s32.totalorder %s55, %s58
      %p64 = scmp.eq.s32.totalorder %s33, 0
      %p65 = por %p63, %p64
      %p66 = scmp.ne.s32.totalorder %s55, %s58
      %p67 = scmp.eq.s32.totalorder %s38, 7
      %p68 = por %p66, %p67
      %p69 = scmp.ne.s32.totalorder %s58, %s59
      %p70 = scmp.eq.s32.totalorder %s38, 0
      %p71 = por %p69, %p70
      %p72 = scmp.ne.s32.totalorder %s58, %s59
      %p73 = scmp.eq.s32.totalorder %s39, 7
      %p74 = por %p72, %p73
      %p76 = scmp.ne.s32.totalorder %s59, %s75
      %p77 = scmp.eq.s32.totalorder %s39, 0
      %p78 = por %p76, %p77
      %s79 = ssub.s32 %s40, %s52
      %p80 = scmp.eq.s32.totalorder %s79, 0
      %s82 = sadd.s32 %s81, 1
      %s83 = scalar_select %p80, %s81, %s82
      %p86 = pneg %p80
      %p87 = scmp.eq.s32.totalorder %s33, 7
      %p88 = por %p86, %p87
      %p89 = scmp.ne.s32.totalorder %s81, %s84
      %p90 = scmp.eq.s32.totalorder %s33, 0
      %p91 = por %p89, %p90
      %p92 = scmp.ne.s32.totalorder %s81, %s84
      %p93 = scmp.eq.s32.totalorder %s38, 7
      %p94 = por %p92, %p93
      %p95 = scmp.ne.s32.totalorder %s84, %s85
      %p96 = scmp.eq.s32.totalorder %s38, 0
      %p97 = por %p95, %p96
      %p98 = scmp.ne.s32.totalorder %s84, %s85
      %p99 = scmp.eq.s32.totalorder %s39, 7
      %p100 = por %p98, %p99
      %p102 = scmp.ne.s32.totalorder %s85, %s101
      %p103 = scmp.eq.s32.totalorder %s39, 0
      %p104 = por %p102, %p103
      %s105 = ssub.s32 %s40, %s52
      %p106 = scmp.eq.s32.totalorder %s105, 0
      %s108 = sadd.s32 %s107, 1
      %s109 = scalar_select %p106, %s107, %s108
      %p112 = pneg %p106
      %p113 = scmp.eq.s32.totalorder %s33, 7
      %p114 = por %p112, %p113
      %p115 = scmp.ne.s32.totalorder %s107, %s110
      %p116 = scmp.eq.s32.totalorder %s33, 0
      %p117 = por %p115, %p116
      %p118 = scmp.ne.s32.totalorder %s107, %s110
      %p119 = scmp.eq.s32.totalorder %s38, 7
      %p120 = por %p118, %p119
      %p121 = scmp.ne.s32.totalorder %s110, %s111
      %p122 = scmp.eq.s32.totalorder %s38, 0
      %p123 = por %p121, %p122
      %p124 = scmp.ne.s32.totalorder %s110, %s111
      %p125 = scmp.eq.s32.totalorder %s39, 7
      %p126 = por %p124, %p125
      %p128 = scmp.ne.s32.totalorder %s111, %s127
      %p129 = scmp.eq.s32.totalorder %s39, 0
      %p130 = por %p128, %p129
      %s131 = ssub.s32 %s41, %s48
      %p132 = scmp.eq.s32.totalorder %s131, 0
      %s134 = sadd.s32 %s133, 1
      %s135 = scalar_select %p132, %s133, %s134
      %p138 = pneg %p132
      %p139 = scmp.eq.s32.totalorder %s33, 7
      %p140 = por %p138, %p139
      %p141 = scmp.ne.s32.totalorder %s133, %s136
      %p142 = scmp.eq.s32.totalorder %s33, 0
      %p143 = por %p141, %p142
      %p144 = scmp.ne.s32.totalorder %s133, %s136
      %p145 = scmp.eq.s32.totalorder %s38, 7
      %p146 = por %p144, %p145
      %p147 = scmp.ne.s32.totalorder %s136, %s137
      %p148 = scmp.eq.s32.totalorder %s38, 0
      %p149 = por %p147, %p148
      %p150 = scmp.ne.s32.totalorder %s136, %s137
      %p151 = scmp.eq.s32.totalorder %s39, 7
      %p152 = por %p150, %p151
      %p154 = scmp.ne.s32.totalorder %s137, %s153
      %p155 = scmp.eq.s32.totalorder %s39, 0
      %p156 = por %p154, %p155
      %s157 = ssub.s32 %s41, %s48
      %p158 = scmp.eq.s32.totalorder %s157, 0
      %s160 = sadd.s32 %s159, 1
      %s161 = scalar_select %p158, %s159, %s160
      %p164 = pneg %p158
      %p165 = scmp.eq.s32.totalorder %s33, 7
      %p166 = por %p164, %p165
      %p167 = scmp.ne.s32.totalorder %s159, %s162
      %p168 = scmp.eq.s32.totalorder %s33, 0
      %p169 = por %p167, %p168
      %p170 = scmp.ne.s32.totalorder %s159, %s162
      %p171 = scmp.eq.s32.totalorder %s38, 7
      %p172 = por %p170, %p171
      %p173 = scmp.ne.s32.totalorder %s162, %s163
      %p174 = scmp.eq.s32.totalorder %s38, 0
      %p175 = por %p173, %p174
      %p176 = scmp.ne.s32.totalorder %s162, %s163
      %p177 = scmp.eq.s32.totalorder %s39, 7
      %p178 = por %p176, %p177
      %p180 = scmp.ne.s32.totalorder %s163, %s179
      %p181 = scmp.eq.s32.totalorder %s39, 0
      %p182 = por %p180, %p181
      %s183 = ssub.s32 %s41, %s48
      %p184 = scmp.eq.s32.totalorder %s183, 0
      %s186 = sadd.s32 %s185, 1
      %s187 = scalar_select %p184, %s185, %s186
      %p190 = pneg %p184
      %p191 = scmp.eq.s32.totalorder %s33, 7
      %p192 = por %p190, %p191
      %p193 = scmp.ne.s32.totalorder %s185, %s188
      %p194 = scmp.eq.s32.totalorder %s33, 0
      %p195 = por %p193, %p194
      %p196 = scmp.ne.s32.totalorder %s185, %s188
      %p197 = scmp.eq.s32.totalorder %s38, 7
      %p198 = por %p196, %p197
      %p199 = scmp.ne.s32.totalorder %s188, %s189
      %p200 = scmp.eq.s32.totalorder %s38, 0
      %p201 = por %p199, %p200
      %p202 = scmp.ne.s32.totalorder %s188, %s189
      %p203 = scmp.eq.s32.totalorder %s39, 7
      %p204 = por %p202, %p203
      %p206 = scmp.ne.s32.totalorder %s189, %s205
      %p207 = scmp.eq.s32.totalorder %s39, 0
      %p208 = por %p206, %p207
      %s209 = ssub.s32 %s41, %s48
      %p210 = scmp.eq.s32.totalorder %s209, 0
      %s212 = sadd.s32 %s211, 1
      %s213 = scalar_select %p210, %s211, %s212
      %p216 = pneg %p210
      %p217 = scmp.eq.s32.totalorder %s33, 7
      %p218 = por %p216, %p217
      %p219 = scmp.ne.s32.totalorder %s211, %s214
      %p220 = scmp.eq.s32.totalorder %s33, 0
      %p221 = por %p219, %p220
      %p222 = scmp.ne.s32.totalorder %s211, %s214
      %p223 = scmp.eq.s32.totalorder %s38, 7
      %p224 = por %p222, %p223
      %p225 = scmp.ne.s32.totalorder %s214, %s215
      %p226 = scmp.eq.s32.totalorder %s38, 0
      %p227 = por %p225, %p226
      %p228 = scmp.ne.s32.totalorder %s214, %s215
      %p229 = scmp.eq.s32.totalorder %s39, 7
      %p230 = por %p228, %p229
      %p232 = scmp.ne.s32.totalorder %s215, %s231
      %p233 = scmp.eq.s32.totalorder %s39, 0
      %p234 = por %p232, %p233
      %s236 = sadd.s32 %s235, 1
      %p239 = scmp.eq.s32.totalorder %s33, 7
      %p240 = scmp.ne.s32.totalorder %s235, %s237
      %p241 = scmp.eq.s32.totalorder %s33, 0
      %p242 = por %p240, %p241
      %p243 = scmp.ne.s32.totalorder %s235, %s237
      %p244 = scmp.eq.s32.totalorder %s38, 7
      %p245 = por %p243, %p244
      %p246 = scmp.ne.s32.totalorder %s237, %s238
      %p247 = scmp.eq.s32.totalorder %s38, 0
      %p248 = por %p246, %p247
      %p249 = scmp.ne.s32.totalorder %s237, %s238
      %p250 = scmp.eq.s32.totalorder %s39, 7
      %p251 = por %p249, %p250
      %p253 = scmp.ne.s32.totalorder %s238, %s252
      %p254 = scmp.eq.s32.totalorder %s39, 0
      %p255 = por %p253, %p254
      %s257 = sadd.s32 %s256, 1
      %p260 = scmp.eq.s32.totalorder %s33, 7
      %p261 = scmp.ne.s32.totalorder %s256, %s258
      %p262 = scmp.eq.s32.totalorder %s33, 0
      %p263 = por %p261, %p262
      %p264 = scmp.ne.s32.totalorder %s256, %s258
      %p265 = scmp.eq.s32.totalorder %s38, 7
      %p266 = por %p264, %p265
      %p267 = scmp.ne.s32.totalorder %s258, %s259
      %p268 = scmp.eq.s32.totalorder %s38, 0
      %p269 = por %p267, %p268
      %p270 = scmp.ne.s32.totalorder %s258, %s259
      %p271 = scmp.eq.s32.totalorder %s39, 7
      %p272 = por %p270, %p271
      %p274 = scmp.ne.s32.totalorder %s259, %s273
      %p275 = scmp.eq.s32.totalorder %s39, 0
      %p276 = por %p274, %p275
      %s278 = sadd.s32 %s277, 1
      %p281 = scmp.eq.s32.totalorder %s33, 7
      %p282 = scmp.ne.s32.totalorder %s277, %s279
      %p283 = scmp.eq.s32.totalorder %s33, 0
      %p284 = por %p282, %p283
      %p285 = scmp.ne.s32.totalorder %s277, %s279
      %p286 = scmp.eq.s32.totalorder %s38, 7
      %p287 = por %p285, %p286
      %p288 = scmp.ne.s32.totalorder %s279, %s280
      %p289 = scmp.eq.s32.totalorder %s38, 0
      %p290 = por %p288, %p289
      %p291 = scmp.ne.s32.totalorder %s279, %s280
      %p292 = scmp.eq.s32.totalorder %s39, 7
      %p293 = por %p291, %p292
      %p295 = scmp.ne.s32.totalorder %s280, %s294
      %p296 = scmp.eq.s32.totalorder %s39, 0
      %p297 = por %p295, %p296
      %s299 = sadd.s32 %s298, 1
      %p302 = scmp.eq.s32.totalorder %s33, 7
      %p303 = scmp.ne.s32.totalorder %s298, %s300
      %p304 = scmp.eq.s32.totalorder %s33, 0
      %p305 = por %p303, %p304
      %p306 = scmp.ne.s32.totalorder %s298, %s300
      %p307 = scmp.eq.s32.totalorder %s38, 7
      %p308 = por %p306, %p307
      %p309 = scmp.ne.s32.totalorder %s300, %s301
      %p310 = scmp.eq.s32.totalorder %s38, 0
      %p311 = por %p309, %p310
      %p312 = scmp.ne.s32.totalorder %s300, %s301
      %p313 = scmp.eq.s32.totalorder %s39, 7
      %p314 = por %p312, %p313
      %p316 = scmp.ne.s32.totalorder %s301, %s315
      %p317 = scmp.eq.s32.totalorder %s39, 0
      %p318 = por %p316, %p317
      %s320 = sadd.s32 %s319, 1
      %p323 = scmp.eq.s32.totalorder %s33, 7
      %p324 = scmp.ne.s32.totalorder %s319, %s321
      %p325 = scmp.eq.s32.totalorder %s33, 0
      %p326 = por %p324, %p325
      %p327 = scmp.ne.s32.totalorder %s319, %s321
      %p328 = scmp.eq.s32.totalorder %s38, 7
      %p329 = por %p327, %p328
      %p330 = scmp.ne.s32.totalorder %s321, %s322
      %p331 = scmp.eq.s32.totalorder %s38, 0
      %p332 = por %p330, %p331
      %p333 = scmp.ne.s32.totalorder %s321, %s322
      %p334 = scmp.eq.s32.totalorder %s39, 7
      %p335 = por %p333, %p334
      %p337 = scmp.ne.s32.totalorder %s322, %s336
      %p338 = scmp.eq.s32.totalorder %s39, 0
      %p339 = por %p337, %p338
      %s341 = sadd.s32 %s340, 1
      %p344 = scmp.eq.s32.totalorder %s33, 7
      %p345 = scmp.ne.s32.totalorder %s340, %s342
      %p346 = scmp.eq.s32.totalorder %s33, 0
      %p347 = por %p345, %p346
      %p348 = scmp.ne.s32.totalorder %s340, %s342
      %p349 = scmp.eq.s32.totalorder %s38, 7
      %p350 = por %p348, %p349
      %p351 = scmp.ne.s32.totalorder %s342, %s343
      %p352 = scmp.eq.s32.totalorder %s38, 0
      %p353 = por %p351, %p352
      %p354 = scmp.ne.s32.totalorder %s342, %s343
      %p355 = scmp.eq.s32.totalorder %s39, 7
      %p356 = por %p354, %p355
      %p358 = scmp.ne.s32.totalorder %s343, %s357
      %p359 = scmp.eq.s32.totalorder %s39, 0
      %p360 = por %p358, %p359
      %s362 = sadd.s32 %s361, 1
      %p365 = scmp.eq.s32.totalorder %s33, 7
      %p366 = scmp.ne.s32.totalorder %s361, %s363
      %p367 = scmp.eq.s32.totalorder %s33, 0
      %p368 = por %p366, %p367
      %p369 = scmp.ne.s32.totalorder %s361, %s363
      %p370 = scmp.eq.s32.totalorder %s38, 7
      %p371 = por %p369, %p370
      %p372 = scmp.ne.s32.totalorder %s363, %s364
      %p373 = scmp.eq.s32.totalorder %s38, 0
      %p374 = por %p372, %p373
      %p375 = scmp.ne.s32.totalorder %s363, %s364
      %p376 = scmp.eq.s32.totalorder %s39, 7
      %p377 = por %p375, %p376
      %p379 = scmp.ne.s32.totalorder %s364, %s378
      %p380 = scmp.eq.s32.totalorder %s39, 0
      %p381 = por %p379, %p380
      %s383 = sadd.s32 %s382, 1
      %p386 = scmp.eq.s32.totalorder %s33, 7
      %p387 = scmp.ne.s32.totalorder %s382, %s384
      %p388 = scmp.eq.s32.totalorder %s33, 0
      %p389 = por %p387, %p388
      %p390 = scmp.ne.s32.totalorder %s382, %s384
      %p391 = scmp.eq.s32.totalorder %s38, 7
      %p392 = por %p390, %p391
      %p393 = scmp.ne.s32.totalorder %s384, %s385
      %p394 = scmp.eq.s32.totalorder %s38, 0
      %p395 = por %p393, %p394
      %p396 = scmp.ne.s32.totalorder %s384, %s385
      %p397 = scmp.eq.s32.totalorder %s39, 7
      %p398 = por %p396, %p397
      %p400 = scmp.ne.s32.totalorder %s385, %s399
      %p401 = scmp.eq.s32.totalorder %s39, 0
      %p402 = por %p400, %p401
      %s404 = sadd.s32 %s403, 1
      %p407 = scmp.eq.s32.totalorder %s33, 7
      %p408 = scmp.ne.s32.totalorder %s403, %s405
      %p409 = scmp.eq.s32.totalorder %s33, 0
      %p410 = por %p408, %p409
      %p411 = scmp.ne.s32.totalorder %s403, %s405
      %p412 = scmp.eq.s32.totalorder %s38, 7
      %p413 = por %p411, %p412
      %p414 = scmp.ne.s32.totalorder %s405, %s406
      %p415 = scmp.eq.s32.totalorder %s38, 0
      %p416 = por %p414, %p415
      %p417 = scmp.ne.s32.totalorder %s405, %s406
      %p418 = scmp.eq.s32.totalorder %s39, 7
      %p419 = por %p417, %p418
      %p421 = scmp.ne.s32.totalorder %s406, %s420
      %p422 = scmp.eq.s32.totalorder %s39, 0
      %p423 = por %p421, %p422
      %s425 = sadd.s32 %s424, 1
      %p428 = scmp.eq.s32.totalorder %s33, 7
      %p429 = scmp.ne.s32.totalorder %s424, %s426
      %p430 = scmp.eq.s32.totalorder %s33, 0
      %p431 = por %p429, %p430
      %p432 = scmp.ne.s32.totalorder %s424, %s426
      %p433 = scmp.eq.s32.totalorder %s38, 7
      %p434 = por %p432, %p433
      %p435 = scmp.ne.s32.totalorder %s426, %s427
      %p436 = scmp.eq.s32.totalorder %s38, 0
      %p437 = por %p435, %p436
      %p438 = scmp.ne.s32.totalorder %s426, %s427
      %p439 = scmp.eq.s32.totalorder %s39, 7
      %p440 = por %p438, %p439
      %p442 = scmp.ne.s32.totalorder %s427, %s441
      %p443 = scmp.eq.s32.totalorder %s39, 0
      %p444 = por %p442, %p443
      %s446 = sadd.s32 %s445, 1
      %p449 = scmp.eq.s32.totalorder %s33, 7
      %p450 = scmp.ne.s32.totalorder %s445, %s447
      %p451 = scmp.eq.s32.totalorder %s33, 0
      %p452 = por %p450, %p451
      %p453 = scmp.ne.s32.totalorder %s445, %s447
      %p454 = scmp.eq.s32.totalorder %s38, 7
      %p455 = por %p453, %p454
      %p456 = scmp.ne.s32.totalorder %s447, %s448
      %p457 = scmp.eq.s32.totalorder %s38, 0
      %p458 = por %p456, %p457
      %p459 = scmp.ne.s32.totalorder %s447, %s448
      %p460 = scmp.eq.s32.totalorder %s39, 7
      %p461 = por %p459, %p460
      %p463 = scmp.ne.s32.totalorder %s448, %s462
      %p464 = scmp.eq.s32.totalorder %s39, 0
      %p465 = por %p463, %p464
      %s467 = sadd.s32 %s466, 1
      %p470 = scmp.eq.s32.totalorder %s33, 7
      %p471 = scmp.ne.s32.totalorder %s466, %s468
      %p472 = scmp.eq.s32.totalorder %s33, 0
      %p473 = por %p471, %p472
      %p474 = scmp.ne.s32.totalorder %s466, %s468
      %p475 = scmp.eq.s32.totalorder %s38, 7
      %p476 = por %p474, %p475
      %p477 = scmp.ne.s32.totalorder %s468, %s469
      %p478 = scmp.eq.s32.totalorder %s38, 0
      %p479 = por %p477, %p478
      %p480 = scmp.ne.s32.totalorder %s468, %s469
      %p481 = scmp.eq.s32.totalorder %s39, 7
      %p482 = por %p480, %p481
      %p484 = scmp.ne.s32.totalorder %s469, %s483
      %p485 = scmp.eq.s32.totalorder %s39, 0
      %p486 = por %p484, %p485
      %s487 = ssub.s32 %s40, %s52
      %p488 = scmp.eq.s32.totalorder %s487, 0
      %s490 = sadd.s32 %s489, 1
      %s491 = scalar_select %p488, %s489, %s490
      %p494 = pneg %p488
      %p495 = scmp.eq.s32.totalorder %s33, 7
      %p496 = por %p494, %p495
      %p497 = scmp.ne.s32.totalorder %s489, %s492
      %p498 = scmp.eq.s32.totalorder %s33, 0
      %p499 = por %p497, %p498
      %p500 = scmp.ne.s32.totalorder %s489, %s492
      %p501 = scmp.eq.s32.totalorder %s38, 7
      %p502 = por %p500, %p501
      %p503 = scmp.ne.s32.totalorder %s492, %s493
      %p504 = scmp.eq.s32.totalorder %s38, 0
      %p505 = por %p503, %p504
      %p506 = scmp.ne.s32.totalorder %s492, %s493
      %p507 = scmp.eq.s32.totalorder %s39, 7
      %p508 = por %p506, %p507
      %p510 = scmp.ne.s32.totalorder %s493, %s509
      %p511 = scmp.eq.s32.totalorder %s39, 0
      %p512 = por %p510, %p511
      %s513 = ssub.s32 %s40, %s52
      %s514 = ssub.s32 %s41, %s48
      %s515 = sor.u32 %s513, %s514
      %p516 = scmp.eq.s32.totalorder %s515, 0
      %s518 = sadd.s32 %s517, 1
      %s519 = scalar_select %p516, %s517, %s518
      %p522 = pneg %p516
      %p523 = scmp.eq.s32.totalorder %s33, 7
      %p524 = por %p522, %p523
      %p525 = scmp.ne.s32.totalorder %s517, %s520
      %p526 = scmp.eq.s32.totalorder %s33, 0
      %p527 = por %p525, %p526
      %p528 = scmp.ne.s32.totalorder %s517, %s520
      %p529 = scmp.eq.s32.totalorder %s38, 7
      %p530 = por %p528, %p529
      %p531 = scmp.ne.s32.totalorder %s520, %s521
      %p532 = scmp.eq.s32.totalorder %s38, 0
      %p533 = por %p531, %p532
      %p534 = scmp.ne.s32.totalorder %s520, %s521
      %p535 = scmp.eq.s32.totalorder %s39, 7
      %p536 = por %p534, %p535
      %p538 = scmp.ne.s32.totalorder %s521, %s537
      %p539 = scmp.eq.s32.totalorder %s39, 0
      %p540 = por %p538, %p539
      %p541 = scmp.le.s32.totalorder 1, %s33
      %p542 = scmp.lt.s32.totalorder %s33, 9
      %p543 = pnand %p541, %p542
      %p544 = pneg %p543
      // Predicated region
      $region9: #{tpu_custom_call.1} parent=5 // pred_check
        _
      $region10: #{tpu_custom_call.1} parent=5 // pred_check_branch
        %546 = sbr.rel (%p543) target = $region12
      $region11: #{tpu_custom_call.1} parent=5 // pred_region
        %s547 = ssub.s32 %s33, 1
        // Predicated region
        $region13: #{tpu_custom_call.1} parent=11 // pred_check
          %p548 = pneg %p248
        $region14: #{tpu_custom_call.1} parent=11 // pred_check_branch
          %550 = sbr.rel (%p548) target = $region16
        $region15: #{tpu_custom_call.1} parent=11 // pred_region
          _
        $region16: #{tpu_custom_call.1} parent=11 // pred_fallthru
          _
        // Predicated region
        $region17: #{tpu_custom_call.1} parent=11 // pred_check
          %p551 = pneg %p269
        $region18: #{tpu_custom_call.1} parent=11 // pred_check_branch
          %553 = sbr.rel (%p551) target = $region20
        $region19: #{tpu_custom_call.1} parent=11 // pred_region
          _
        $region20: #{tpu_custom_call.1} parent=11 // pred_fallthru
          _
        // Predicated region
        $region21: #{tpu_custom_call.1} parent=11 // pred_check
          %p554 = pneg %p290
        $region22: #{tpu_custom_call.1} parent=11 // pred_check_branch
          %556 = sbr.rel (%p554) target = $region24
        $region23: #{tpu_custom_call.1} parent=11 // pred_region
          _
        $region24: #{tpu_custom_call.1} parent=11 // pred_fallthru
          _
        // Predicated region
        $region25: #{tpu_custom_call.1} parent=11 // pred_check
          %p557 = pneg %p311
        $region26: #{tpu_custom_call.1} parent=11 // pred_check_branch
          %559 = sbr.rel (%p557) target = $region28
        $region27: #{tpu_custom_call.1} parent=11 // pred_region
          _
        $region28: #{tpu_custom_call.1} parent=11 // pred_fallthru
          _
        // Predicated region
        $region29: #{tpu_custom_call.1} parent=11 // pred_check
          %p560 = pneg %p332
        $region30: #{tpu_custom_call.1} parent=11 // pred_check_branch
          %562 = sbr.rel (%p560) target = $region32
        $region31: #{tpu_custom_call.1} parent=11 // pred_region
          _
        $region32: #{tpu_custom_call.1} parent=11 // pred_fallthru
          _
        // Predicated region
        $region33: #{tpu_custom_call.1} parent=11 // pred_check
          %p563 = pneg %p353
        $region34: #{tpu_custom_call.1} parent=11 // pred_check_branch
          %565 = sbr.rel (%p563) target = $region36
        $region35: #{tpu_custom_call.1} parent=11 // pred_region
          _
        $region36: #{tpu_custom_call.1} parent=11 // pred_fallthru
          _
        // Predicated region
        $region37: #{tpu_custom_call.1} parent=11 // pred_check
          %p566 = pneg %p374
        $region38: #{tpu_custom_call.1} parent=11 // pred_check_branch
          %568 = sbr.rel (%p566) target = $region40
        $region39: #{tpu_custom_call.1} parent=11 // pred_region
          _
        $region40: #{tpu_custom_call.1} parent=11 // pred_fallthru
          _
        // Predicated region
        $region41: #{tpu_custom_call.1} parent=11 // pred_check
          %p569 = pneg %p395
        $region42: #{tpu_custom_call.1} parent=11 // pred_check_branch
          %571 = sbr.rel (%p569) target = $region44
        $region43: #{tpu_custom_call.1} parent=11 // pred_region
          _
        $region44: #{tpu_custom_call.1} parent=11 // pred_fallthru
          _
        // Predicated region
        $region45: #{tpu_custom_call.1} parent=11 // pred_check
          %p572 = pneg %p416
        $region46: #{tpu_custom_call.1} parent=11 // pred_check_branch
          %574 = sbr.rel (%p572) target = $region48
        $region47: #{tpu_custom_call.1} parent=11 // pred_region
          _
        $region48: #{tpu_custom_call.1} parent=11 // pred_fallthru
          _
        // Predicated region
        $region49: #{tpu_custom_call.1} parent=11 // pred_check
          %p575 = pneg %p437
        $region50: #{tpu_custom_call.1} parent=11 // pred_check_branch
          %577 = sbr.rel (%p575) target = $region52
        $region51: #{tpu_custom_call.1} parent=11 // pred_region
          _
        $region52: #{tpu_custom_call.1} parent=11 // pred_fallthru
          _
        // Predicated region
        $region53: #{tpu_custom_call.1} parent=11 // pred_check
          %p578 = pneg %p458
        $region54: #{tpu_custom_call.1} parent=11 // pred_check_branch
          %580 = sbr.rel (%p578) target = $region56
        $region55: #{tpu_custom_call.1} parent=11 // pred_region
          _
        $region56: #{tpu_custom_call.1} parent=11 // pred_fallthru
          _
        // Predicated region
        $region57: #{tpu_custom_call.1} parent=11 // pred_check
          %p581 = pneg %p479
        $region58: #{tpu_custom_call.1} parent=11 // pred_check_branch
          %583 = sbr.rel (%p581) target = $region60
        $region59: #{tpu_custom_call.1} parent=11 // pred_region
          _
        $region60: #{tpu_custom_call.1} parent=11 // pred_fallthru
          _
      $region12: #{tpu_custom_call.1} parent=5 // pred_fallthru
        _
      %p584 = scmp.lt.s32.totalorder %s33, 8
      // Predicated region
      $region61: #{tpu_custom_call.1} parent=5 // pred_check
        %p585 = pneg %p584
      $region62: #{tpu_custom_call.1} parent=5 // pred_check_branch
        %587 = sbr.rel (%p585) target = $region64
      $region63: #{tpu_custom_call.1} parent=5 // pred_region
        // Predicated region
        $region65: #{tpu_custom_call.1} parent=63 // pred_check
          %p588 = pneg %p65
        $region66: #{tpu_custom_call.1} parent=63 // pred_check_branch
          %590 = sbr.rel (%p588) target = $region68
        $region67: #{tpu_custom_call.1} parent=63 // pred_region
          %p591 = scmp.lt.s32.totalorder %s40, 1
          %s592 = scalar_select %p591, %s40, 1
          %s593 = smul.addr %s592, 8
          %s594 = scalar_lea.vmem %s0, %s593
        $region68: #{tpu_custom_call.1} parent=63 // pred_fallthru
          _
        // Predicated region
        $region69: #{tpu_custom_call.1} parent=63 // pred_check
          %p595 = pneg %p91
        $region70: #{tpu_custom_call.1} parent=63 // pred_check_branch
          %597 = sbr.rel (%p595) target = $region72
        $region71: #{tpu_custom_call.1} parent=63 // pred_region
          %p598 = scmp.lt.s32.totalorder %s40, 1
          %s599 = scalar_select %p598, %s40, 1
          %s600 = smul.addr %s599, 2
          %s601 = smul.addr %s600, 8
          %s602 = scalar_lea.vmem %s1, %s601
        $region72: #{tpu_custom_call.1} parent=63 // pred_fallthru
          _
        // Predicated region
        $region73: #{tpu_custom_call.1} parent=63 // pred_check
          %p603 = pneg %p117
        $region74: #{tpu_custom_call.1} parent=63 // pred_check_branch
          %605 = sbr.rel (%p603) target = $region76
        $region75: #{tpu_custom_call.1} parent=63 // pred_region
          %p606 = scmp.lt.s32.totalorder %s40, 1
          %s607 = scalar_select %p606, %s40, 1
          %s608 = scalar_lea.vmem %s2, %s607
        $region76: #{tpu_custom_call.1} parent=63 // pred_fallthru
          _
        // Predicated region
        $region77: #{tpu_custom_call.1} parent=63 // pred_check
          %p609 = pneg %p143
        $region78: #{tpu_custom_call.1} parent=63 // pred_check_branch
          %611 = sbr.rel (%p609) target = $region80
        $region79: #{tpu_custom_call.1} parent=63 // pred_region
          %p612 = scmp.lt.s32.totalorder %s41, 3
          %s613 = scalar_select %p612, %s41, 3
          %s614 = smul.addr %s613, 4
          %s615 = smul.addr %s614, 8
          %s616 = scalar_lea.vmem %s3, %s615
        $region80: #{tpu_custom_call.1} parent=63 // pred_fallthru
          _
        // Predicated region
        $region81: #{tpu_custom_call.1} parent=63 // pred_check
          %p617 = pneg %p169
        $region82: #{tpu_custom_call.1} parent=63 // pred_check_branch
          %619 = sbr.rel (%p617) target = $region84
        $region83: #{tpu_custom_call.1} parent=63 // pred_region
          %p620 = scmp.lt.s32.totalorder %s41, 3
          %s621 = scalar_select %p620, %s41, 3
          %s622 = smul.addr %s621, 4
          %s623 = smul.addr %s622, 8
          %s624 = scalar_lea.vmem %s4, %s623
        $region84: #{tpu_custom_call.1} parent=63 // pred_fallthru
          _
        // Predicated region
        $region85: #{tpu_custom_call.1} parent=63 // pred_check
          %p625 = pneg %p195
        $region86: #{tpu_custom_call.1} parent=63 // pred_check_branch
          %627 = sbr.rel (%p625) target = $region88
        $region87: #{tpu_custom_call.1} parent=63 // pred_region
          %p628 = scmp.lt.s32.totalorder %s41, 3
          %s629 = scalar_select %p628, %s41, 3
          %s630 = smul.addr %s629, 4
          %s631 = smul.addr %s630, 8
          %s632 = scalar_lea.vmem %s5, %s631
        $region88: #{tpu_custom_call.1} parent=63 // pred_fallthru
          _
        // Predicated region
        $region89: #{tpu_custom_call.1} parent=63 // pred_check
          %p633 = pneg %p221
        $region90: #{tpu_custom_call.1} parent=63 // pred_check_branch
          %635 = sbr.rel (%p633) target = $region92
        $region91: #{tpu_custom_call.1} parent=63 // pred_region
          %p636 = scmp.lt.s32.totalorder %s41, 3
          %s637 = scalar_select %p636, %s41, 3
          %s638 = smul.addr %s637, 8
          %s639 = scalar_lea.vmem %s6, %s638
        $region92: #{tpu_custom_call.1} parent=63 // pred_fallthru
          _
      $region64: #{tpu_custom_call.1} parent=5 // pred_fallthru
        _
      %p640 = scmp.le.s32.totalorder 1, %s33
      %p641 = scmp.lt.s32.totalorder %s33, 9
      %p642 = pnand %p640, %p641
      %p643 = pneg %p642
      // Predicated region
      $region93: #{tpu_custom_call.1} parent=5 // pred_check
        _
      $region94: #{tpu_custom_call.1} parent=5 // pred_check_branch
        %645 = sbr.rel (%p642) target = $region96
      $region95: #{tpu_custom_call.1} parent=5 // pred_region
        %s646 = ssub.s32 %s33, 1
        %p647 = scmp.lt.s32.totalorder %s42, 1
        %s648 = scalar_select %p647, %s42, 1
        %s649 = smul.addr %s648, 8
        %s650 = scalar_lea.vmem %s0, %s649
        %p651 = pneg %p71
        %p652 = pneg %p68
        %p653 = scmp.lt.s32.totalorder %s42, 1
        %s654 = scalar_select %p653, %s42, 1
        %s655 = smul.addr %s654, 2
        %s656 = smul.addr %s655, 8
        %s657 = scalar_lea.vmem %s1, %s656
        %p658 = pneg %p97
        %p659 = pneg %p94
        %p660 = scmp.lt.s32.totalorder %s42, 1
        %s661 = scalar_select %p660, %s42, 1
        %s662 = scalar_lea.vmem %s2, %s661
        %p663 = pneg %p123
        %p664 = pneg %p120
        %p665 = scmp.lt.s32.totalorder %s43, 3
        %s666 = scalar_select %p665, %s43, 3
        %s667 = smul.addr %s666, 4
        %s668 = smul.addr %s667, 8
        %s669 = scalar_lea.vmem %s3, %s668
        %p670 = pneg %p149
        %p671 = pneg %p146
        %p672 = scmp.lt.s32.totalorder %s43, 3
        %s673 = scalar_select %p672, %s43, 3
        %s674 = smul.addr %s673, 4
        %s675 = smul.addr %s674, 8
        %s676 = scalar_lea.vmem %s4, %s675
        %p677 = pneg %p175
        %p678 = pneg %p172
        %p679 = scmp.lt.s32.totalorder %s43, 3
        %s680 = scalar_select %p679, %s43, 3
        %s681 = smul.addr %s680, 4
        %s682 = smul.addr %s681, 8
        %s683 = scalar_lea.vmem %s5, %s682
        %p684 = pneg %p201
        %p685 = pneg %p198
        %p686 = scmp.lt.s32.totalorder %s43, 3
        %s687 = scalar_select %p686, %s43, 3
        %s688 = smul.addr %s687, 8
        %s689 = scalar_lea.vmem %s6, %s688
        %p690 = pneg %p227
        %p691 = pneg %p224
        %p692 = pneg %p248
        %p693 = pneg %p245
        %p694 = pneg %p269
        %p695 = pneg %p266
        %p696 = pneg %p290
        %p697 = pneg %p287
        %p698 = pneg %p311
        %p699 = pneg %p308
        %p700 = pneg %p332
        %p701 = pneg %p329
        %p702 = pneg %p353
        %p703 = pneg %p350
        %p704 = pneg %p374
        %p705 = pneg %p371
        %p706 = pneg %p395
        %p707 = pneg %p392
        %p708 = pneg %p416
        %p709 = pneg %p413
        %p710 = pneg %p437
        %p711 = pneg %p434
        %p712 = pneg %p458
        %p713 = pneg %p455
        %p714 = pneg %p479
        %p715 = pneg %p476
        %p716 = pneg %p505
        %p717 = pneg %p502
        %s718 = sand.u32 %s492, 1
        %s719 = scalar_lea.sflag [#allocation4], %s718
        %s720 = sand.u32 %s492, 1
        %s721 = smul.addr %s720, 8
        %s722 = scalar_lea.vmem [#allocation3], %s721
        %p723 = pneg %p533
        %p724 = pneg %p530
        %s725 = sand.u32 %s520, 1
        %s726 = scalar_lea.sflag [#allocation6], %s725
        %s727 = sand.u32 %s520, 1
        %s728 = smul.addr %s727, 8
        %s729 = scalar_lea.vmem [#allocation5], %s728
        %p730 = scmp.lt.s32.totalorder %s42, 1
        %s731 = scalar_select %p730, %s42, 1
        %s732 = smul.addr %s731, 8
        %s733 = scalar_lea.vmem %s0, %s732
        %p734 = scmp.lt.s32.totalorder %s42, 1
        %s735 = scalar_select %p734, %s42, 1
        %s736 = smul.addr %s735, 2
        %s737 = smul.addr %s736, 8
        %s738 = scalar_lea.vmem %s1, %s737
        %p739 = scmp.lt.s32.totalorder %s42, 1
        %s740 = scalar_select %p739, %s42, 1
        %s741 = scalar_lea.vmem %s2, %s740
        %p742 = scmp.lt.s32.totalorder %s43, 3
        %s743 = scalar_select %p742, %s43, 3
        %s744 = smul.addr %s743, 4
        %s745 = smul.addr %s744, 8
        %s746 = scalar_lea.vmem %s3, %s745
        %p747 = scmp.lt.s32.totalorder %s43, 3
        %s748 = scalar_select %p747, %s43, 3
        %s749 = smul.addr %s748, 4
        %s750 = smul.addr %s749, 8
        %s751 = scalar_lea.vmem %s4, %s750
        %p752 = scmp.lt.s32.totalorder %s43, 3
        %s753 = scalar_select %p752, %s43, 3
        %s754 = smul.addr %s753, 4
        %s755 = smul.addr %s754, 8
        %s756 = scalar_lea.vmem %s5, %s755
        %p757 = scmp.lt.s32.totalorder %s43, 3
        %s758 = scalar_select %p757, %s43, 3
        %s759 = smul.addr %s758, 8
        %s760 = scalar_lea.vmem %s6, %s759
        %v761 = vld [vmem:[%s733] sm:$0xff]
        %v762 = vld [vmem:[%s738] sm:$0xff]
        %v763 = vld [vmem:[%s738 + $0x8] sm:$0xff]
        %v764 = vld [vmem:[%s746] sm:$0xff]
        %v765 = vld [vmem:[%s746 + $0x8] sm:$0xff]
        %v766 = vld [vmem:[%s746 + $0x10] sm:$0xff]
        %v767 = vld [vmem:[%s746 + $0x18] sm:$0xff]
        %vm768 = vcmask 261120
        %v770 = vsel %vm768, %v761, 0
        %772 = vmatpush.msra.mxu0 0.0
        %773 = vmatpush.msra.mxu0 0.0
        %774 = vmatpush.msra.mxu0 0.0
        %775 = vmatpush.msra.mxu0 0.0
        %776 = vmatpush.msra.mxu0 0.0
        %777 = vmatpush.msra.mxu0 0.0
        %778 = vmatpush.msra.mxu0 0.0
        %779 = vmatpush.msra.mxu0 0.0
        %780 = vmatpush.msra.mxu0 0.0
        %781 = vmatpush.msra.mxu0 0.0
        %782 = vmatpush.msra.mxu0 0.0
        %783 = vmatpush.msra.mxu0 0.0
        %784 = vmatpush.msra.mxu0 %v767
        %785 = vmatpush.msra.mxu0 %v766
        %786 = vmatpush.msra.mxu0 %v765
        %787 = vmatpush.msra.mxu0 %v764
        %788 = vmatmul.f32.gmra.mxu0 %v770
        %v789 = vpop.f32.mrf.mxu0
        %v790 = vadd.f32 0.0, %v789
        %791 = vdwg.mxu0
        %v792 = vmul.f32 %v790, 0.35355338
        %v793 = vld [vmem:[%s751] sm:$0xff]
        %v794 = vld [vmem:[%s751 + $0x8] sm:$0xff]
        %v795 = vld [vmem:[%s751 + $0x10] sm:$0xff]
        %v796 = vld [vmem:[%s751 + $0x18] sm:$0xff]
        %v798 = vsel %vm768, %v762, 0
        %v801 = vsel %vm768, %v763, 0
        %803 = vmatpush.msra.mxu0 0.0
        %804 = vmatpush.msra.mxu0 0.0
        %805 = vmatpush.msra.mxu0 0.0
        %806 = vmatpush.msra.mxu0 0.0
        %807 = vmatpush.msra.mxu0 0.0
        %808 = vmatpush.msra.mxu0 0.0
        %809 = vmatpush.msra.mxu0 0.0
        %810 = vmatpush.msra.mxu0 0.0
        %811 = vmatpush.msra.mxu0 0.0
        %812 = vmatpush.msra.mxu0 0.0
        %813 = vmatpush.msra.mxu0 0.0
        %814 = vmatpush.msra.mxu0 0.0
        %815 = vmatpush.msra.mxu0 %v796
        %816 = vmatpush.msra.mxu0 %v795
        %817 = vmatpush.msra.mxu0 %v794
        %818 = vmatpush.msra.mxu0 %v793
        %819 = vmatmul.f32.gmra.mxu0 %v798
        %v820 = vpop.f32.mrf.mxu0
        %v821 = vadd.f32 0.0, %v820
        %822 = vmatmul.f32.gmra.mxu0 %v801
        %v823 = vpop.f32.mrf.mxu0
        %v824 = vadd.f32 0.0, %v823
        %825 = vdwg.mxu0
        %v826 = vld [vmem:[%s756] sm:$0xff]
        %v827 = vld [vmem:[%s756 + $0x8] sm:$0xff]
        %v828 = vld [vmem:[%s756 + $0x10] sm:$0xff]
        %v829 = vld [vmem:[%s756 + $0x18] sm:$0xff]
        %830 = vmatpush.msra.mxu0 0.0
        %831 = vmatpush.msra.mxu0 0.0
        %832 = vmatpush.msra.mxu0 0.0
        %833 = vmatpush.msra.mxu0 0.0
        %834 = vmatpush.msra.mxu0 0.0
        %835 = vmatpush.msra.mxu0 0.0
        %836 = vmatpush.msra.mxu0 0.0
        %837 = vmatpush.msra.mxu0 0.0
        %838 = vmatpush.msra.mxu0 0.0
        %839 = vmatpush.msra.mxu0 0.0
        %840 = vmatpush.msra.mxu0 0.0
        %841 = vmatpush.msra.mxu0 0.0
        %842 = vmatpush.msra.mxu0 %v829
        %843 = vmatpush.msra.mxu0 %v828
        %844 = vmatpush.msra.mxu0 %v827
        %845 = vmatpush.msra.mxu0 %v826
        %846 = vmatmul.f32.gmra.mxu0 %v798
        %v847 = vpop.f32.mrf.mxu0
        %v848 = vadd.f32 0.0, %v847
        %849 = vmatmul.f32.gmra.mxu0 %v801
        %v850 = vpop.f32.mrf.mxu0
        %v851 = vadd.f32 0.0, %v850
        %852 = vdwg.mxu0
        %v853 = vld [vmem:[%s741] sm:$0x1]
        %vm854 = vcmp.eq.f32.partialorder %v853, 0.0
        %v855 = vsel %vm854, -1e+09, 0.0
        %v857 = vperm.slane %v855, 0
        %vm859 = vcmask 64512
        %v861 = vsel %vm859, %v792, 0
        %v864 = vsel %vm859, %v821, 0
        %v867 = vsel %vm859, %v824, 0
        %869 = vmatpush.xpose.msra.mxu0 0.0
        %870 = vmatpush.xpose.msra.mxu0 0.0
        %871 = vmatpush.xpose.msra.mxu0 0.0
        %872 = vmatpush.xpose.msra.mxu0 0.0
        %873 = vmatpush.xpose.msra.mxu0 0.0
        %874 = vmatpush.xpose.msra.mxu0 0.0
        %875 = vmatpush.xpose.msra.mxu0 0.0
        %876 = vmatpush.xpose.msra.mxu0 0.0
        %877 = vmatpush.xpose.msra.mxu0 0.0
        %878 = vmatpush.xpose.msra.mxu0 0.0
        %879 = vmatpush.xpose.msra.mxu0 0.0
        %880 = vmatpush.xpose.msra.mxu0 0.0
        %881 = vmatpush.xpose.msra.mxu0 0.0
        %882 = vmatpush.xpose.msra.mxu0 0.0
        %883 = vmatpush.xpose.msra.mxu0 %v867
        %884 = vmatpush.xpose.msra.mxu0 %v864
        %885 = vmatmul.f32.gmra.mxu0 %v861
        %v886 = vpop.f32.mrf.mxu0
        %v887 = vadd.f32 %v857, %v886
        %888 = vdwg.mxu0
        %vm889 = vcmask 130048
        %v890 = vsel %vm889, %v887, -inf
        %891 = vmax.xlane.f32.xlu0 %v890
        %v892 = vpop.xlane.xlu0 %891
        %v893 = vsub.f32 %v887, %v892
        %v894 = vmul.f32 %v893, 1.442695
        %v895 = vpow.pop %v894
        %v896 = vsel %vm889, %v895, 0.0
        %897 = vadd.xlane.f32.xlu0 %v896
        %v898 = vpop.xlane.xlu0 %897
        %v899 = vrcp.pop %v898
        %v900 = vmul.f32 %v898, %v899
        %v901 = vsub.f32 2.0, %v900
        %v902 = vmul.f32 %v899, %v901
        %v903 = vmul.f32 %v895, %v902
        %904 = vst.msk [vmem:[%s729] sm:$0xff] %vm889, %v903
        %v906 = vsel %vm889, %v903, 0
        %908 = vmatpush.msra.mxu0 0.0
        %909 = vmatpush.msra.mxu0 0.0
        %910 = vmatpush.msra.mxu0 0.0
        %911 = vmatpush.msra.mxu0 0.0
        %912 = vmatpush.msra.mxu0 0.0
        %913 = vmatpush.msra.mxu0 0.0
        %914 = vmatpush.msra.mxu0 0.0
        %915 = vmatpush.msra.mxu0 0.0
        %916 = vmatpush.msra.mxu0 0.0
        %917 = vmatpush.msra.mxu0 0.0
        %918 = vmatpush.msra.mxu0 0.0
        %919 = vmatpush.msra.mxu0 0.0
        %920 = vmatpush.msra.mxu0 0.0
        %921 = vmatpush.msra.mxu0 0.0
        %922 = vmatpush.msra.mxu0 %v851
        %923 = vmatpush.msra.mxu0 %v848
        %924 = vmatmul.f32.gmra.mxu0 %v906
        %v925 = vpop.f32.mrf.mxu0
        %v926 = vadd.f32 0.0, %v925
        %927 = vdwg.mxu0
        %p928 = scmp.eq.s32.totalorder %s43, 0
        // Predicated region
        $region97: #{tpu_custom_call.1} parent=95 // pred_check
          %p929 = pneg %p928
        $region98: #{tpu_custom_call.1} parent=95 // pred_check_branch
          %931 = sbr.rel (%p929) target = $region100
        $region99: #{tpu_custom_call.1} parent=95 // pred_region
          %932 = vst.msk [vmem:[#allocation2] sm:$0xff] %vm768, 0.0
        $region100: #{tpu_custom_call.1} parent=95 // pred_fallthru
          _
        %v933 = vld [vmem:[#allocation2] sm:$0xff]
        %v934 = vld [vmem:[%s760] sm:$0xff]
        %v936 = vsel %vm859, %v926, 0
        %938 = vmatpush.msra.mxu0 0.0
        %939 = vmatpush.msra.mxu0 0.0
        %940 = vmatpush.msra.mxu0 0.0
        %941 = vmatpush.msra.mxu0 0.0
        %942 = vmatpush.msra.mxu0 0.0
        %943 = vmatpush.msra.mxu0 0.0
        %944 = vmatpush.msra.mxu0 0.0
        %945 = vmatpush.msra.mxu0 0.0
        %946 = vmatpush.msra.mxu0 0.0
        %947 = vmatpush.msra.mxu0 0.0
        %948 = vmatpush.msra.mxu0 0.0
        %949 = vmatpush.msra.mxu0 0.0
        %950 = vmatpush.msra.mxu0 0.0
        %951 = vmatpush.msra.mxu0 0.0
        %952 = vmatpush.msra.mxu0 0.0
        %953 = vmatpush.msra.mxu0 %v934
        %954 = vmatmul.f32.gmra.mxu0 %v936
        %v955 = vpop.f32.mrf.mxu0
        %v956 = vadd.f32 0.0, %v955
        %957 = vdwg.mxu0
        %v958 = vadd.f32 %v933, %v956
        %959 = vst.msk [vmem:[#allocation2] sm:$0xff] %vm768, %v958
        %p960 = scmp.eq.s32.totalorder %s43, 3
        // Predicated region
        $region101: #{tpu_custom_call.1} parent=95 // pred_check
          %p961 = pneg %p960
        $region102: #{tpu_custom_call.1} parent=95 // pred_check_branch
          %963 = sbr.rel (%p961) target = $region104
        $region103: #{tpu_custom_call.1} parent=95 // pred_region
          %v964 = vld [vmem:[#allocation2] sm:$0xff]
          %v965 = vadd.f32 %v964, %v761
          %v966 = vld [vmem:[%s7] sm:$0x1]
          %v967 = vld [vmem:[%s8] sm:$0x1]
          %v968 = vsel %vm768, %v965, 0.0
          %969 = vadd.xlane.f32.xlu0 %v968
          %v970 = vpop.xlane.xlu0 %969
          %v971 = vrcp.pop 32.0
          %v972 = vmul.f32 32.0, %v971
          %v973 = vsub.f32 1.0, %v972
          %v974 = vmul.f32 %v971, %v973
          %v975 = vadd.f32 %v971, %v974
          %vm976 = vweird.f32 %v971
          %v977 = vsel %vm976, %v971, %v975
          %v978 = vmul.f32 %v970, %v977
          %v979 = vsub.f32 %v965, %v978
          %v980 = vmul.f32 %v979, %v979
          %v981 = vsel %vm768, %v980, 0.0
          %982 = vadd.xlane.f32.xlu0 %v981
          %v983 = vpop.xlane.xlu0 %982
          %v984 = vmul.f32 %v983, %v977
          %v985 = vadd.f32 %v984, 1e-06
          %v986 = vrsqrt.pop %v985
          %v987 = vmul.f32 %v986, %v985
          %v988 = vmul.f32 %v987, %v986
          %v989 = vmul.f32 0.5, %v988
          %v990 = vsub.f32 1.5, %v989
          %v991 = vmul.f32 %v986, %v990
          %vm992 = vweird.f32 %v985
          %vm993 = vweird.f32 %v986
          %vm994 = vmor %vm992, %vm993
          %v995 = vsel %vm994, %v986, %v991
          %v996 = vmul.f32 %v979, %v995
          %v998 = vperm.slane %v966, 0
          %v1000 = vmul.f32 %v996, %v998
          %v1002 = vperm.slane %v967, 0
          %v1004 = vadd.f32 %v1000, %v1002
          %v1005 = vld [vmem:[%s9] sm:$0x1]
          %v1006 = vld [vmem:[%s10] sm:$0x1]
          %v1007 = vsel %vm768, %v1004, 0.0
          %1008 = vadd.xlane.f32.xlu0 %v1007
          %v1009 = vpop.xlane.xlu0 %1008
          %v1010 = vmul.f32 %v1009, %v977
          %v1011 = vsub.f32 %v1004, %v1010
          %v1012 = vmul.f32 %v1011, %v1011
          %v1013 = vsel %vm768, %v1012, 0.0
          %1014 = vadd.xlane.f32.xlu0 %v1013
          %v1015 = vpop.xlane.xlu0 %1014
          %v1016 = vmul.f32 %v1015, %v977
          %v1017 = vadd.f32 %v1016, 1e-06
          %v1018 = vrsqrt.pop %v1017
          %v1019 = vmul.f32 %v1018, %v1017
          %v1020 = vmul.f32 %v1019, %v1018
          %v1021 = vmul.f32 0.5, %v1020
          %v1022 = vsub.f32 1.5, %v1021
          %v1023 = vmul.f32 %v1018, %v1022
          %vm1024 = vweird.f32 %v1017
          %vm1025 = vweird.f32 %v1018
          %vm1026 = vmor %vm1024, %vm1025
          %v1027 = vsel %vm1026, %v1018, %v1023
          %v1028 = vmul.f32 %v1011, %v1027
          %v1030 = vperm.slane %v1005, 0
          %v1032 = vmul.f32 %v1028, %v1030
          %v1034 = vperm.slane %v1006, 0
          %v1036 = vadd.f32 %v1032, %v1034
          %v1037 = vld [vmem:[%s11] sm:$0xff]
          %v1038 = vld [vmem:[%s11 + $0x8] sm:$0xff]
          %v1039 = vld [vmem:[%s11 + $0x10] sm:$0xff]
          %v1040 = vld [vmem:[%s11 + $0x18] sm:$0xff]
          %v1041 = vld [vmem:[%s12] sm:$0x1]
          %v1043 = vperm.slane %v1041, 0
          %v1046 = vsel %vm768, %v1036, 0
          %1048 = vmatpush.msra.mxu0 0.0
          %1049 = vmatpush.msra.mxu0 0.0
          %1050 = vmatpush.msra.mxu0 0.0
          %1051 = vmatpush.msra.mxu0 0.0
          %1052 = vmatpush.msra.mxu0 0.0
          %1053 = vmatpush.msra.mxu0 0.0
          %1054 = vmatpush.msra.mxu0 0.0
          %1055 = vmatpush.msra.mxu0 0.0
          %1056 = vmatpush.msra.mxu0 0.0
          %1057 = vmatpush.msra.mxu0 0.0
          %1058 = vmatpush.msra.mxu0 0.0
          %1059 = vmatpush.msra.mxu0 0.0
          %1060 = vmatpush.msra.mxu0 %v1040
          %1061 = vmatpush.msra.mxu0 %v1039
          %1062 = vmatpush.msra.mxu0 %v1038
          %1063 = vmatpush.msra.mxu0 %v1037
          %1064 = vmatmul.f32.gmra.mxu0 %v1046
          %v1065 = vpop.f32.mrf.mxu0
          %v1066 = vadd.f32 %v1043, %v1065
          %1067 = vdwg.mxu0
          %v1068 = vmax.f32 %v1066, 0.0
          %v1069 = vld [vmem:[%s13] sm:$0xff]
          %v1070 = vld [vmem:[%s13 + $0x8] sm:$0xff]
          %v1071 = vld [vmem:[%s13 + $0x10] sm:$0xff]
          %v1072 = vld [vmem:[%s13 + $0x18] sm:$0xff]
          %v1073 = vld [vmem:[%s13 + $0x20] sm:$0xff]
          %v1074 = vld [vmem:[%s13 + $0x28] sm:$0xff]
          %v1075 = vld [vmem:[%s13 + $0x30] sm:$0xff]
          %v1076 = vld [vmem:[%s13 + $0x38] sm:$0xff]
          %v1077 = vld [vmem:[%s14] sm:$0x1]
          %v1079 = vperm.slane %v1077, 0
          %vm1081 = vcmask 523264
          %v1083 = vsel %vm1081, %v1068, 0
          %1085 = vmatpush.msra.mxu0 0.0
          %1086 = vmatpush.msra.mxu0 0.0
          %1087 = vmatpush.msra.mxu0 0.0
          %1088 = vmatpush.msra.mxu0 0.0
          %1089 = vmatpush.msra.mxu0 0.0
          %1090 = vmatpush.msra.mxu0 0.0
          %1091 = vmatpush.msra.mxu0 0.0
          %1092 = vmatpush.msra.mxu0 0.0
          %1093 = vmatpush.msra.mxu0 %v1076
          %1094 = vmatpush.msra.mxu0 %v1075
          %1095 = vmatpush.msra.mxu0 %v1074
          %1096 = vmatpush.msra.mxu0 %v1073
          %1097 = vmatpush.msra.mxu0 %v1072
          %1098 = vmatpush.msra.mxu0 %v1071
          %1099 = vmatpush.msra.mxu0 %v1070
          %1100 = vmatpush.msra.mxu0 %v1069
          %1101 = vmatmul.f32.gmra.mxu0 %v1083
          %v1102 = vpop.f32.mrf.mxu0
          %v1103 = vadd.f32 %v1079, %v1102
          %1104 = vdwg.mxu0
          %v1105 = vadd.f32 %v1103, %v1036
          %v1106 = vld [vmem:[%s15] sm:$0x1]
          %v1107 = vld [vmem:[%s16] sm:$0x1]
          %v1108 = vsel %vm768, %v1105, 0.0
          %1109 = vadd.xlane.f32.xlu0 %v1108
          %v1110 = vpop.xlane.xlu0 %1109
          %v1111 = vmul.f32 %v1110, %v977
          %v1112 = vsub.f32 %v1105, %v1111
          %v1113 = vmul.f32 %v1112, %v1112
          %v1114 = vsel %vm768, %v1113, 0.0
          %1115 = vadd.xlane.f32.xlu0 %v1114
          %v1116 = vpop.xlane.xlu0 %1115
          %v1117 = vmul.f32 %v1116, %v977
          %v1118 = vadd.f32 %v1117, 1e-06
          %v1119 = vrsqrt.pop %v1118
          %v1120 = vmul.f32 %v1119, %v1118
          %v1121 = vmul.f32 %v1120, %v1119
          %v1122 = vmul.f32 0.5, %v1121
          %v1123 = vsub.f32 1.5, %v1122
          %v1124 = vmul.f32 %v1119, %v1123
          %vm1125 = vweird.f32 %v1118
          %vm1126 = vweird.f32 %v1119
          %vm1127 = vmor %vm1125, %vm1126
          %v1128 = vsel %vm1127, %v1119, %v1124
          %v1129 = vmul.f32 %v1112, %v1128
          %v1131 = vperm.slane %v1106, 0
          %v1133 = vmul.f32 %v1129, %v1131
          %v1135 = vperm.slane %v1107, 0
          %v1137 = vadd.f32 %v1133, %v1135
          %v1138 = vld [vmem:[%s17] sm:$0x1]
          %v1139 = vld [vmem:[%s18] sm:$0x1]
          %v1140 = vsel %vm768, %v1137, 0.0
          %1141 = vadd.xlane.f32.xlu0 %v1140
          %v1142 = vpop.xlane.xlu0 %1141
          %v1143 = vmul.f32 %v1142, %v977
          %v1144 = vsub.f32 %v1137, %v1143
          %v1145 = vmul.f32 %v1144, %v1144
          %v1146 = vsel %vm768, %v1145, 0.0
          %1147 = vadd.xlane.f32.xlu0 %v1146
          %v1148 = vpop.xlane.xlu0 %1147
          %v1149 = vmul.f32 %v1148, %v977
          %v1150 = vadd.f32 %v1149, 1e-06
          %v1151 = vrsqrt.pop %v1150
          %v1152 = vmul.f32 %v1151, %v1150
          %v1153 = vmul.f32 %v1152, %v1151
          %v1154 = vmul.f32 0.5, %v1153
          %v1155 = vsub.f32 1.5, %v1154
          %v1156 = vmul.f32 %v1151, %v1155
          %vm1157 = vweird.f32 %v1150
          %vm1158 = vweird.f32 %v1151
          %vm1159 = vmor %vm1157, %vm1158
          %v1160 = vsel %vm1159, %v1151, %v1156
          %v1161 = vmul.f32 %v1144, %v1160
          %v1163 = vperm.slane %v1138, 0
          %v1165 = vmul.f32 %v1161, %v1163
          %v1167 = vperm.slane %v1139, 0
          %v1169 = vadd.f32 %v1165, %v1167
          %1170 = vst.msk [vmem:[%s722] sm:$0xff] %vm768, %v1169
        $region104: #{tpu_custom_call.1} parent=95 // pred_fallthru
          _
        %s1171 = sand.u32 %s492, 1
        %s1172 = scalar_lea.sflag [#allocation4], %s1171
        %s1173 = sand.u32 %s492, 1
        %s1174 = smul.addr %s1173, 8
        %s1175 = scalar_lea.vmem [#allocation3], %s1174
        %s1176 = sand.u32 %s520, 1
        %s1177 = scalar_lea.sflag [#allocation6], %s1176
        %s1178 = sand.u32 %s520, 1
        %s1179 = smul.addr %s1178, 8
        %s1180 = scalar_lea.vmem [#allocation5], %s1179
        // Predicated region
        $region105: #{tpu_custom_call.1} parent=95 // pred_check
          %p1181 = pneg %p502
        $region106: #{tpu_custom_call.1} parent=95 // pred_check_branch
          %1183 = sbr.rel (%p1181) target = $region108
        $region107: #{tpu_custom_call.1} parent=95 // pred_region
          %1185 = vsyncadd %s1172, 0
          %s1186 = smul.addr %s42, 8
          %s1187 = scalar_lea.hbm %s19, %s1186
          %s1189 = sshll.u32 %s1175, 4
          %s1190 = int_to_ptr.vmem [resolvable:$true] %s1189
          %s1191 = sshll.u32 %s1187, 4
          %s1192 = int_to_ptr.hbm [resolvable:$true] %s1191
          %1194 = dma.vmem_to_hbm [thread:$0]  %s1190, 128, %s1192, %s1172
        $region108: #{tpu_custom_call.1} parent=95 // pred_fallthru
          _
        // Predicated region
        $region109: #{tpu_custom_call.1} parent=95 // pred_check
          %p1195 = pneg %p530
        $region110: #{tpu_custom_call.1} parent=95 // pred_check_branch
          %1197 = sbr.rel (%p1195) target = $region112
        $region111: #{tpu_custom_call.1} parent=95 // pred_region
          %1199 = vsyncadd %s1177, 0
          %s1200 = smul.addr %s42, 4
          %s1201 = sadd.s32 %s43, %s1200
          %s1202 = smul.addr %s1201, 8
          %s1203 = scalar_lea.hbm %s20, %s1202
          %s1205 = sshll.u32 %s1180, 4
          %s1206 = int_to_ptr.vmem [resolvable:$true] %s1205
          %s1207 = sshll.u32 %s1203, 4
          %s1208 = int_to_ptr.hbm [resolvable:$true] %s1207
          %1210 = dma.vmem_to_hbm [thread:$0]  %s1206, 128, %s1208, %s1177
        $region112: #{tpu_custom_call.1} parent=95 // pred_fallthru
          _
      $region96: #{tpu_custom_call.1} parent=5 // pred_fallthru
        _
      %p1211 = scmp.le.s32.totalorder 2, %s33
      // Predicated region
      $region113: #{tpu_custom_call.1} parent=5 // pred_check
        %p1212 = pneg %p1211
      $region114: #{tpu_custom_call.1} parent=5 // pred_check_branch
        %1214 = sbr.rel (%p1212) target = $region116
      $region115: #{tpu_custom_call.1} parent=5 // pred_region
        %s1215 = ssub.s32 %s33, 2
        // Predicated region
        $region117: #{tpu_custom_call.1} parent=115 // pred_check
          %p1216 = pneg %p508
        $region118: #{tpu_custom_call.1} parent=115 // pred_check_branch
          %1218 = sbr.rel (%p1216) target = $region120
        $region119: #{tpu_custom_call.1} parent=115 // pred_region
          %s1219 = sand.u32 %s493, 1
          %s1220 = scalar_lea.sflag [#allocation4], %s1219
          %s1221 = sand.u32 %s493, 1
          %s1222 = smul.addr %s1221, 8
          %s1223 = scalar_lea.vmem [#allocation3], %s1222
          %1225 = dma.done %s1220, 128
        $region120: #{tpu_custom_call.1} parent=115 // pred_fallthru
          _
        // Predicated region
        $region121: #{tpu_custom_call.1} parent=115 // pred_check
          %p1226 = pneg %p536
        $region122: #{tpu_custom_call.1} parent=115 // pred_check_branch
          %1228 = sbr.rel (%p1226) target = $region124
        $region123: #{tpu_custom_call.1} parent=115 // pred_region
          %s1229 = sand.u32 %s521, 1
          %s1230 = scalar_lea.sflag [#allocation6], %s1229
          %s1231 = sand.u32 %s521, 1
          %s1232 = smul.addr %s1231, 8
          %s1233 = scalar_lea.vmem [#allocation5], %s1232
          %1235 = dma.done %s1230, 128
        $region124: #{tpu_custom_call.1} parent=115 // pred_fallthru
          _
      $region116: #{tpu_custom_call.1} parent=5 // pred_fallthru
        _
    $region6: #{tpu_custom_call.1} parent=1 // loop_footer
      %s37 = sadd.s32 1, %s33
    $region7: #{tpu_custom_call.1} parent=1 // loop_footer_branch
      %32 = sbr.rel target = $region3
    $region8: #{tpu_custom_call.1} parent=1 // loop_exit
      _
    %1236 = vsyncpa [#allocation4], 1
    %s1237 = scalar_lea.sflag [#allocation4], 1
    %1238 = vsyncpa %s1237, 1
    %1239 = vsyncpa [#allocation6], 1
    %s1240 = scalar_lea.sflag [#allocation6], 1
    %1241 = vsyncpa %s1240, 1

</llo_original>
